<compile_context>
chip_gen: v6e
topology: v6e:2x2x1
jax: 0.10.0
libtpu: 0.0.40
codegen_flags: <defaults>
</compile_context>

<pallas_src>
import math
import jax
import jax.numpy as jnp
from jax import lax
from jax.experimental import pallas as pl
from jax.experimental.pallas import tpu as pltpu

D_MODEL = 32
N_HEADS = 4
D_K = D_MODEL // N_HEADS
D_FF = 64
N_LAYERS = 2
VOCAB = 11
EPS = 1e-6


# ----------------------------- in-kernel helpers -----------------------------

def _layer_norm(x, a, b):
    # PyTorch LayerNorm (Annotated Transformer): a*(x-mean)/(std+eps)+b,
    # where tensor.std() is Bessel-corrected (unbiased, divide by n-1).
    n = x.shape[-1]
    mean = jnp.mean(x, axis=-1, keepdims=True)
    var = jnp.sum((x - mean) ** 2, axis=-1, keepdims=True) * (1.0 / (n - 1))
    std = jnp.sqrt(var)
    return a * (x - mean) * pl.reciprocal(std + EPS) + b


def _self_attention(nx, mask, wqkv, bqkv, wo, bo):
    # Fused QKV projection: (L, D) @ (D, 3D) -> (L, 3D); heads handled in-kernel
    # with static lane slices (no HBM-resident transposes).
    qkv = jnp.dot(nx, wqkv, preferred_element_type=jnp.float32) + bqkv
    scale = 1.0 / math.sqrt(D_K)
    out = None
    for h in range(N_HEADS):
        lo = h * D_K
        qh = qkv[:, lo:lo + D_K]
        kh = qkv[:, D_MODEL + lo:D_MODEL + lo + D_K]
        vh = qkv[:, 2 * D_MODEL + lo:2 * D_MODEL + lo + D_K]
        # q @ k^T without an explicit transpose: contract last dims.
        scores = lax.dot_general(qh, kh, (((1,), (1,)), ((), ())),
                                 preferred_element_type=jnp.float32) * scale
        scores = jnp.where(mask == 0.0, -1e9, scores)       # masked_fill(mask==0, -1e9)
        scores = scores - jnp.max(scores, axis=-1, keepdims=True)
        p = jnp.exp(scores)
        p = p * pl.reciprocal(jnp.sum(p, axis=-1, keepdims=True))  # exact (approx=False)
        head = jnp.dot(p, vh, preferred_element_type=jnp.float32)  # (L, dk)
        # concat(heads) @ Wo  ==  sum_h head_h @ Wo[h*dk:(h+1)*dk, :]
        contrib = jnp.dot(head, wo[lo:lo + D_K, :],
                          preferred_element_type=jnp.float32)
        out = contrib if out is None else out + contrib
    return out + bo


# ------------------------------- fused kernel --------------------------------

def _encoder_kernel(x_ref, mask_ref,
                    wqkv_ref, bqkv_ref, wo_ref, bo_ref,
                    w1_ref, b1_ref, w2_ref, b2_ref,
                    ln1a_ref, ln1b_ref, ln2a_ref, ln2b_ref,
                    na_ref, nb_ref, o_ref):
    x = x_ref[0]          # (L, D) activations for this batch element
    mask = mask_ref[0]    # (L, L) float mask (1 keep / 0 masked)

    # Static unroll over the N_LAYERS=2 stacked layers; all weights VMEM-resident.
    for l in range(N_LAYERS):
        # SublayerConnection 1: x + SelfAttn(LayerNorm(x))   (dropout = identity)
        nx = _layer_norm(x, ln1a_ref[l], ln1b_ref[l])
        x = x + _self_attention(nx, mask, wqkv_ref[l], bqkv_ref[l],
                                wo_ref[l], bo_ref[l])
        # SublayerConnection 2: x + FFN(LayerNorm(x))
        nx = _layer_norm(x, ln2a_ref[l], ln2b_ref[l])
        h = jnp.dot(nx, w1_ref[l], preferred_element_type=jnp.float32) + b1_ref[l]
        h = jnp.maximum(h, 0.0)                               # ReLU
        x = x + jnp.dot(h, w2_ref[l], preferred_element_type=jnp.float32) + b2_ref[l]

    # Final Encoder LayerNorm — only HBM write of the whole forward.
    o_ref[0] = _layer_norm(x, na_ref[...], nb_ref[...])


# --------------------------------- wrapper -----------------------------------

def encoder_forward(params, x, mask):
    """Encoder.forward(x, mask): x (B, L, d_model) float32, mask (B, 1, L)."""
    B, L, D = x.shape
    assert D == D_MODEL

    # Hoisted, layer-invariant mask broadcast (done once per forward).
    mask_b = jnp.broadcast_to(mask, (B, L, L)).astype(jnp.float32)

    def full_spec(arr):
        # whole array as one block, same block every grid step -> stays resident
        return pl.BlockSpec(arr.shape, lambda b: (0,) * arr.ndim)

    weights = (params["wqkv"], params["bqkv"], params["wo"], params["bo"],
               params["w1"], params["b1"], params["w2"], params["b2"],
               params["ln1_a"], params["ln1_b"], params["ln2_a"], params["ln2_b"],
               params["norm_a"], params["norm_b"])

    return pl.pallas_call(
        _encoder_kernel,
        out_shape=jax.ShapeDtypeStruct((B, L, D), jnp.float32),
        grid=(B,),
        in_specs=[pl.BlockSpec((1, L, D), lambda b: (b, 0, 0)),
                  pl.BlockSpec((1, L, L), lambda b: (b, 0, 0))]
                 + [full_spec(w) for w in weights],
        out_specs=pl.BlockSpec((1, L, D), lambda b: (b, 0, 0)),
        compiler_params=pltpu.CompilerParams(
            dimension_semantics=("parallel",)),   # lets v7x use both TensorCores
    )(x, mask_b, *weights)


# ------------------------------- parameters ----------------------------------

def init_params(key):
    ks = iter(jax.random.split(key, 64))

    def nrm(shape, scale=0.1):
        return jax.random.normal(next(ks), shape, jnp.float32) * scale

    NL = N_LAYERS
    return {
        # per-layer weights stacked on a leading N_LAYERS axis
        "wqkv": nrm((NL, D_MODEL, 3 * D_MODEL)),   # fused Wq|Wk|Wv
        "bqkv": nrm((NL, 1, 3 * D_MODEL), 0.01),
        "wo":   nrm((NL, D_MODEL, D_MODEL)),
        "bo":   nrm((NL, 1, D_MODEL), 0.01),
        "w1":   nrm((NL, D_MODEL, D_FF)),
        "b1":   nrm((NL, 1, D_FF), 0.01),
        "w2":   nrm((NL, D_FF, D_MODEL)),
        "b2":   nrm((NL, 1, D_MODEL), 0.01),
        "ln1_a": jnp.ones((NL, 1, D_MODEL), jnp.float32),
        "ln1_b": jnp.zeros((NL, 1, D_MODEL), jnp.float32),
        "ln2_a": jnp.ones((NL, 1, D_MODEL), jnp.float32),
        "ln2_b": jnp.zeros((NL, 1, D_MODEL), jnp.float32),
        # Encoder.norm (final LayerNorm)
        "norm_a": jnp.ones((1, D_MODEL), jnp.float32),
        "norm_b": jnp.zeros((1, D_MODEL), jnp.float32),
    }


# ----------------------------------- main -------------------------------------

if __name__ == "__main__":
    params = init_params(jax.random.PRNGKey(0))

    B, L = 2, 8
    k1, k2 = jax.random.split(jax.random.PRNGKey(0))
    # Encoder.forward(x, mask): x is the already-embedded source (B, L, d_model).
    x = jax.random.normal(k1, (B, L, D_MODEL), jnp.float32)
    src = jax.random.randint(k2, (B, L), 0, VOCAB, dtype=jnp.int32)
    mask = (src != 0).astype(jnp.float32)[:, None, :]     # (B, 1, L) padding mask

    fwd = jax.jit(encoder_forward)
    out = fwd(params, x, mask)
    jax.block_until_ready(out)

    assert out.shape == (B, L, D_MODEL), out.shape
    assert out.dtype == jnp.float32
    assert bool(jnp.all(jnp.isfinite(out)))
    print("KERNEL_OK")
</pallas_src>

<mosaic_0001>
module attributes {stable_mosaic.version = 11 : i64} {
  func.func @_encoder_kernel(%arg0: i32, %arg1: memref<1x8x32xf32, #tpu.memory_space<vmem>>, %arg2: memref<1x8x8xf32, #tpu.memory_space<vmem>>, %arg3: memref<2x32x96xf32, #tpu.memory_space<vmem>>, %arg4: memref<2x1x96xf32, #tpu.memory_space<vmem>>, %arg5: memref<2x32x32xf32, #tpu.memory_space<vmem>>, %arg6: memref<2x1x32xf32, #tpu.memory_space<vmem>>, %arg7: memref<2x32x64xf32, #tpu.memory_space<vmem>>, %arg8: memref<2x1x64xf32, #tpu.memory_space<vmem>>, %arg9: memref<2x64x32xf32, #tpu.memory_space<vmem>>, %arg10: memref<2x1x32xf32, #tpu.memory_space<vmem>>, %arg11: memref<2x1x32xf32, #tpu.memory_space<vmem>>, %arg12: memref<2x1x32xf32, #tpu.memory_space<vmem>>, %arg13: memref<2x1x32xf32, #tpu.memory_space<vmem>>, %arg14: memref<2x1x32xf32, #tpu.memory_space<vmem>>, %arg15: memref<1x32xf32, #tpu.memory_space<vmem>>, %arg16: memref<1x32xf32, #tpu.memory_space<vmem>>, %arg17: memref<1x8x32xf32, #tpu.memory_space<vmem>>) attributes {dimension_semantics = [#tpu.dimension_semantics<parallel>], iteration_bounds = array<i64: 2>, scalar_prefetch = 0 : i64, scratch_operands = 0 : i64, tpu.core_type = #tpu.core_type<tc>, window_params = [{transform_indices = @transform_0, window_bounds = array<i64: 1, 8, 32>}, {transform_indices = @transform_1, window_bounds = array<i64: 1, 8, 8>}, {pipeline_mode = #tpu.pipeline_mode<synchronous>, transform_indices = @transform_2, window_bounds = array<i64: 2, 32, 96>}, {pipeline_mode = #tpu.pipeline_mode<synchronous>, transform_indices = @transform_3, window_bounds = array<i64: 2, 1, 96>}, {pipeline_mode = #tpu.pipeline_mode<synchronous>, transform_indices = @transform_4, window_bounds = array<i64: 2, 32, 32>}, {pipeline_mode = #tpu.pipeline_mode<synchronous>, transform_indices = @transform_5, window_bounds = array<i64: 2, 1, 32>}, {pipeline_mode = #tpu.pipeline_mode<synchronous>, transform_indices = @transform_6, window_bounds = array<i64: 2, 32, 64>}, {pipeline_mode = #tpu.pipeline_mode<synchronous>, transform_indices = @transform_7, window_bounds = array<i64: 2, 1, 64>}, {pipeline_mode = #tpu.pipeline_mode<synchronous>, transform_indices = @transform_8, window_bounds = array<i64: 2, 64, 32>}, {pipeline_mode = #tpu.pipeline_mode<synchronous>, transform_indices = @transform_9, window_bounds = array<i64: 2, 1, 32>}, {pipeline_mode = #tpu.pipeline_mode<synchronous>, transform_indices = @transform_10, window_bounds = array<i64: 2, 1, 32>}, {pipeline_mode = #tpu.pipeline_mode<synchronous>, transform_indices = @transform_11, window_bounds = array<i64: 2, 1, 32>}, {pipeline_mode = #tpu.pipeline_mode<synchronous>, transform_indices = @transform_12, window_bounds = array<i64: 2, 1, 32>}, {pipeline_mode = #tpu.pipeline_mode<synchronous>, transform_indices = @transform_13, window_bounds = array<i64: 2, 1, 32>}, {pipeline_mode = #tpu.pipeline_mode<synchronous>, transform_indices = @transform_14, window_bounds = array<i64: 1, 32>}, {pipeline_mode = #tpu.pipeline_mode<synchronous>, transform_indices = @transform_15, window_bounds = array<i64: 1, 32>}, {transform_indices = @transform_16, window_bounds = array<i64: 1, 8, 32>}]} {
    %c0 = arith.constant 0 : index
    %c0_0 = arith.constant 0 : index
    %c0_1 = arith.constant 0 : index
    %0 = vector.load %arg1[%c0, %c0_0, %c0_1] : memref<1x8x32xf32, #tpu.memory_space<vmem>>, vector<1x8x32xf32>
    %1 = vector.shape_cast %0 : vector<1x8x32xf32> to vector<8x32xf32>
    %c0_2 = arith.constant 0 : index
    %c0_3 = arith.constant 0 : index
    %c0_4 = arith.constant 0 : index
    %2 = vector.load %arg2[%c0_2, %c0_3, %c0_4] : memref<1x8x8xf32, #tpu.memory_space<vmem>>, vector<1x8x8xf32>
    %3 = vector.shape_cast %2 : vector<1x8x8xf32> to vector<8x8xf32>
    %c0_5 = arith.constant 0 : index
    %c0_6 = arith.constant 0 : index
    %c0_7 = arith.constant 0 : index
    %4 = vector.load %arg11[%c0_5, %c0_6, %c0_7] : memref<2x1x32xf32, #tpu.memory_space<vmem>>, vector<1x1x32xf32>
    %5 = vector.shape_cast %4 : vector<1x1x32xf32> to vector<1x32xf32>
    %c0_8 = arith.constant 0 : index
    %c0_9 = arith.constant 0 : index
    %c0_10 = arith.constant 0 : index
    %6 = vector.load %arg12[%c0_8, %c0_9, %c0_10] : memref<2x1x32xf32, #tpu.memory_space<vmem>>, vector<1x1x32xf32>
    %7 = vector.shape_cast %6 : vector<1x1x32xf32> to vector<1x32xf32>
    %cst = arith.constant dense<0.000000e+00> : vector<8xf32>
    %8 = vector.multi_reduction <add>, %1, %cst [1] : vector<8x32xf32> to vector<8xf32>
    %9 = vector.shape_cast %8 : vector<8xf32> to vector<8x1xf32>
    %cst_11 = arith.constant 3.200000e+01 : f32
    %10 = vector.broadcast %cst_11 : f32 to vector<8x1xf32>
    %11 = arith.divf %9, %10 : vector<8x1xf32>
    %12 = vector.broadcast %11 : vector<8x1xf32> to vector<8x32xf32>
    %13 = arith.subf %1, %12 : vector<8x32xf32>
    %14 = arith.mulf %13, %13 : vector<8x32xf32>
    %cst_12 = arith.constant dense<0.000000e+00> : vector<8xf32>
    %15 = vector.multi_reduction <add>, %14, %cst_12 [1] : vector<8x32xf32> to vector<8xf32>
    %16 = vector.shape_cast %15 : vector<8xf32> to vector<8x1xf32>
    %cst_13 = arith.constant 0.0322580636 : f32
    %17 = vector.broadcast %cst_13 : f32 to vector<8x1xf32>
    %18 = arith.mulf %16, %17 : vector<8x1xf32>
    %19 = math.sqrt %18 : vector<8x1xf32>
    %20 = vector.broadcast %11 : vector<8x1xf32> to vector<8x32xf32>
    %21 = arith.subf %1, %20 : vector<8x32xf32>
    %22 = vector.broadcast %5 : vector<1x32xf32> to vector<8x32xf32>
    %23 = arith.mulf %22, %21 : vector<8x32xf32>
    %cst_14 = arith.constant 9.99999997E-7 : f32
    %24 = vector.broadcast %cst_14 : f32 to vector<8x1xf32>
    %25 = arith.addf %19, %24 : vector<8x1xf32>
    %26 = tpu.reciprocal %25 : vector<8x1xf32> -> vector<8x1xf32>
    %27 = vector.broadcast %26 : vector<8x1xf32> to vector<8x32xf32>
    %28 = arith.mulf %23, %27 : vector<8x32xf32>
    %29 = vector.broadcast %7 : vector<1x32xf32> to vector<8x32xf32>
    %30 = arith.addf %28, %29 : vector<8x32xf32>
    %c0_15 = arith.constant 0 : index
    %c0_16 = arith.constant 0 : index
    %c0_17 = arith.constant 0 : index
    %31 = vector.load %arg3[%c0_15, %c0_16, %c0_17] : memref<2x32x96xf32, #tpu.memory_space<vmem>>, vector<1x32x96xf32>
    %32 = vector.shape_cast %31 : vector<1x32x96xf32> to vector<32x96xf32>
    %c0_18 = arith.constant 0 : index
    %c0_19 = arith.constant 0 : index
    %c0_20 = arith.constant 0 : index
    %33 = vector.load %arg4[%c0_18, %c0_19, %c0_20] : memref<2x1x96xf32, #tpu.memory_space<vmem>>, vector<1x1x96xf32>
    %34 = vector.shape_cast %33 : vector<1x1x96xf32> to vector<1x96xf32>
    %c0_21 = arith.constant 0 : index
    %c0_22 = arith.constant 0 : index
    %c0_23 = arith.constant 0 : index
    %35 = vector.load %arg5[%c0_21, %c0_22, %c0_23] : memref<2x32x32xf32, #tpu.memory_space<vmem>>, vector<1x32x32xf32>
    %36 = vector.shape_cast %35 : vector<1x32x32xf32> to vector<32x32xf32>
    %c0_24 = arith.constant 0 : index
    %c0_25 = arith.constant 0 : index
    %c0_26 = arith.constant 0 : index
    %37 = vector.load %arg6[%c0_24, %c0_25, %c0_26] : memref<2x1x32xf32, #tpu.memory_space<vmem>>, vector<1x1x32xf32>
    %38 = vector.shape_cast %37 : vector<1x1x32xf32> to vector<1x32xf32>
    %cst_27 = arith.constant dense<0.000000e+00> : vector<8x96xf32>
    %39 = tpu.matmul %30, %32, %cst_27 {dimension_numbers = #tpu.dot_dimension_numbers<[1], [0], [0], [1], [0, 0, 1, 1], [], []>} : vector<8x32xf32>, vector<32x96xf32>, vector<8x96xf32> -> vector<8x96xf32>
    %40 = vector.broadcast %34 : vector<1x96xf32> to vector<8x96xf32>
    %41 = arith.addf %39, %40 : vector<8x96xf32>
    %42 = vector.extract_strided_slice %41 {offsets = [0, 0], sizes = [8, 8], strides = [1, 1]} : vector<8x96xf32> to vector<8x8xf32>
    %43 = vector.extract_strided_slice %41 {offsets = [0, 32], sizes = [8, 8], strides = [1, 1]} : vector<8x96xf32> to vector<8x8xf32>
    %44 = vector.extract_strided_slice %41 {offsets = [0, 64], sizes = [8, 8], strides = [1, 1]} : vector<8x96xf32> to vector<8x8xf32>
    %cst_28 = arith.constant dense<0.000000e+00> : vector<8x8xf32>
    %45 = tpu.matmul %42, %43, %cst_28 {dimension_numbers = #tpu.dot_dimension_numbers<[1], [1], [0], [0], [0, 0, 1, 0], [], []>} : vector<8x8xf32>, vector<8x8xf32>, vector<8x8xf32> -> vector<8x8xf32>
    %cst_29 = arith.constant 0.353553385 : f32
    %46 = vector.broadcast %cst_29 : f32 to vector<8x8xf32>
    %47 = arith.mulf %45, %46 : vector<8x8xf32>
    %cst_30 = arith.constant 0.000000e+00 : f32
    %48 = vector.broadcast %cst_30 : f32 to vector<8x8xf32>
    %49 = arith.cmpf oeq, %3, %48 : vector<8x8xf32>
    %cst_31 = arith.constant -1.000000e+09 : f32
    %50 = vector.broadcast %cst_31 : f32 to vector<8x8xf32>
    %51 = arith.select %49, %50, %47 : vector<8x8xi1>, vector<8x8xf32>
    %cst_32 = arith.constant dense<0xFF800000> : vector<8xf32>
    %52 = vector.multi_reduction <maximumf>, %51, %cst_32 [1] : vector<8x8xf32> to vector<8xf32>
    %53 = vector.shape_cast %52 : vector<8xf32> to vector<8x1xf32>
    %54 = vector.broadcast %53 : vector<8x1xf32> to vector<8x8xf32>
    %55 = arith.subf %51, %54 : vector<8x8xf32>
    %56 = math.exp %55 : vector<8x8xf32>
    %cst_33 = arith.constant dense<0.000000e+00> : vector<8xf32>
    %57 = vector.multi_reduction <add>, %56, %cst_33 [1] : vector<8x8xf32> to vector<8xf32>
    %58 = vector.shape_cast %57 : vector<8xf32> to vector<8x1xf32>
    %59 = tpu.reciprocal %58 : vector<8x1xf32> -> vector<8x1xf32>
    %60 = vector.broadcast %59 : vector<8x1xf32> to vector<8x8xf32>
    %61 = arith.mulf %56, %60 : vector<8x8xf32>
    %cst_34 = arith.constant dense<0.000000e+00> : vector<8x8xf32>
    %62 = tpu.matmul %61, %44, %cst_34 {dimension_numbers = #tpu.dot_dimension_numbers<[1], [0], [0], [1], [0, 0, 1, 1], [], []>} : vector<8x8xf32>, vector<8x8xf32>, vector<8x8xf32> -> vector<8x8xf32>
    %63 = vector.extract_strided_slice %36 {offsets = [0, 0], sizes = [8, 32], strides = [1, 1]} : vector<32x32xf32> to vector<8x32xf32>
    %cst_35 = arith.constant dense<0.000000e+00> : vector<8x32xf32>
    %64 = tpu.matmul %62, %63, %cst_35 {dimension_numbers = #tpu.dot_dimension_numbers<[1], [0], [0], [1], [0, 0, 1, 1], [], []>} : vector<8x8xf32>, vector<8x32xf32>, vector<8x32xf32> -> vector<8x32xf32>
    %65 = vector.extract_strided_slice %41 {offsets = [0, 8], sizes = [8, 8], strides = [1, 1]} : vector<8x96xf32> to vector<8x8xf32>
    %66 = vector.extract_strided_slice %41 {offsets = [0, 40], sizes = [8, 8], strides = [1, 1]} : vector<8x96xf32> to vector<8x8xf32>
    %67 = vector.extract_strided_slice %41 {offsets = [0, 72], sizes = [8, 8], strides = [1, 1]} : vector<8x96xf32> to vector<8x8xf32>
    %cst_36 = arith.constant dense<0.000000e+00> : vector<8x8xf32>
    %68 = tpu.matmul %65, %66, %cst_36 {dimension_numbers = #tpu.dot_dimension_numbers<[1], [1], [0], [0], [0, 0, 1, 0], [], []>} : vector<8x8xf32>, vector<8x8xf32>, vector<8x8xf32> -> vector<8x8xf32>
    %cst_37 = arith.constant 0.353553385 : f32
    %69 = vector.broadcast %cst_37 : f32 to vector<8x8xf32>
    %70 = arith.mulf %68, %69 : vector<8x8xf32>
    %cst_38 = arith.constant 0.000000e+00 : f32
    %71 = vector.broadcast %cst_38 : f32 to vector<8x8xf32>
    %72 = arith.cmpf oeq, %3, %71 : vector<8x8xf32>
    %cst_39 = arith.constant -1.000000e+09 : f32
    %73 = vector.broadcast %cst_39 : f32 to vector<8x8xf32>
    %74 = arith.select %72, %73, %70 : vector<8x8xi1>, vector<8x8xf32>
    %cst_40 = arith.constant dense<0xFF800000> : vector<8xf32>
    %75 = vector.multi_reduction <maximumf>, %74, %cst_40 [1] : vector<8x8xf32> to vector<8xf32>
    %76 = vector.shape_cast %75 : vector<8xf32> to vector<8x1xf32>
    %77 = vector.broadcast %76 : vector<8x1xf32> to vector<8x8xf32>
    %78 = arith.subf %74, %77 : vector<8x8xf32>
    %79 = math.exp %78 : vector<8x8xf32>
    %cst_41 = arith.constant dense<0.000000e+00> : vector<8xf32>
    %80 = vector.multi_reduction <add>, %79, %cst_41 [1] : vector<8x8xf32> to vector<8xf32>
    %81 = vector.shape_cast %80 : vector<8xf32> to vector<8x1xf32>
    %82 = tpu.reciprocal %81 : vector<8x1xf32> -> vector<8x1xf32>
    %83 = vector.broadcast %82 : vector<8x1xf32> to vector<8x8xf32>
    %84 = arith.mulf %79, %83 : vector<8x8xf32>
    %cst_42 = arith.constant dense<0.000000e+00> : vector<8x8xf32>
    %85 = tpu.matmul %84, %67, %cst_42 {dimension_numbers = #tpu.dot_dimension_numbers<[1], [0], [0], [1], [0, 0, 1, 1], [], []>} : vector<8x8xf32>, vector<8x8xf32>, vector<8x8xf32> -> vector<8x8xf32>
    %86 = vector.extract_strided_slice %36 {offsets = [8, 0], sizes = [8, 32], strides = [1, 1]} : vector<32x32xf32> to vector<8x32xf32>
    %cst_43 = arith.constant dense<0.000000e+00> : vector<8x32xf32>
    %87 = tpu.matmul %85, %86, %cst_43 {dimension_numbers = #tpu.dot_dimension_numbers<[1], [0], [0], [1], [0, 0, 1, 1], [], []>} : vector<8x8xf32>, vector<8x32xf32>, vector<8x32xf32> -> vector<8x32xf32>
    %88 = arith.addf %64, %87 : vector<8x32xf32>
    %89 = vector.extract_strided_slice %41 {offsets = [0, 16], sizes = [8, 8], strides = [1, 1]} : vector<8x96xf32> to vector<8x8xf32>
    %90 = vector.extract_strided_slice %41 {offsets = [0, 48], sizes = [8, 8], strides = [1, 1]} : vector<8x96xf32> to vector<8x8xf32>
    %91 = vector.extract_strided_slice %41 {offsets = [0, 80], sizes = [8, 8], strides = [1, 1]} : vector<8x96xf32> to vector<8x8xf32>
    %cst_44 = arith.constant dense<0.000000e+00> : vector<8x8xf32>
    %92 = tpu.matmul %89, %90, %cst_44 {dimension_numbers = #tpu.dot_dimension_numbers<[1], [1], [0], [0], [0, 0, 1, 0], [], []>} : vector<8x8xf32>, vector<8x8xf32>, vector<8x8xf32> -> vector<8x8xf32>
    %cst_45 = arith.constant 0.353553385 : f32
    %93 = vector.broadcast %cst_45 : f32 to vector<8x8xf32>
    %94 = arith.mulf %92, %93 : vector<8x8xf32>
    %cst_46 = arith.constant 0.000000e+00 : f32
    %95 = vector.broadcast %cst_46 : f32 to vector<8x8xf32>
    %96 = arith.cmpf oeq, %3, %95 : vector<8x8xf32>
    %cst_47 = arith.constant -1.000000e+09 : f32
    %97 = vector.broadcast %cst_47 : f32 to vector<8x8xf32>
    %98 = arith.select %96, %97, %94 : vector<8x8xi1>, vector<8x8xf32>
    %cst_48 = arith.constant dense<0xFF800000> : vector<8xf32>
    %99 = vector.multi_reduction <maximumf>, %98, %cst_48 [1] : vector<8x8xf32> to vector<8xf32>
    %100 = vector.shape_cast %99 : vector<8xf32> to vector<8x1xf32>
    %101 = vector.broadcast %100 : vector<8x1xf32> to vector<8x8xf32>
    %102 = arith.subf %98, %101 : vector<8x8xf32>
    %103 = math.exp %102 : vector<8x8xf32>
    %cst_49 = arith.constant dense<0.000000e+00> : vector<8xf32>
    %104 = vector.multi_reduction <add>, %103, %cst_49 [1] : vector<8x8xf32> to vector<8xf32>
    %105 = vector.shape_cast %104 : vector<8xf32> to vector<8x1xf32>
    %106 = tpu.reciprocal %105 : vector<8x1xf32> -> vector<8x1xf32>
    %107 = vector.broadcast %106 : vector<8x1xf32> to vector<8x8xf32>
    %108 = arith.mulf %103, %107 : vector<8x8xf32>
    %cst_50 = arith.constant dense<0.000000e+00> : vector<8x8xf32>
    %109 = tpu.matmul %108, %91, %cst_50 {dimension_numbers = #tpu.dot_dimension_numbers<[1], [0], [0], [1], [0, 0, 1, 1], [], []>} : vector<8x8xf32>, vector<8x8xf32>, vector<8x8xf32> -> vector<8x8xf32>
    %110 = vector.extract_strided_slice %36 {offsets = [16, 0], sizes = [8, 32], strides = [1, 1]} : vector<32x32xf32> to vector<8x32xf32>
    %cst_51 = arith.constant dense<0.000000e+00> : vector<8x32xf32>
    %111 = tpu.matmul %109, %110, %cst_51 {dimension_numbers = #tpu.dot_dimension_numbers<[1], [0], [0], [1], [0, 0, 1, 1], [], []>} : vector<8x8xf32>, vector<8x32xf32>, vector<8x32xf32> -> vector<8x32xf32>
    %112 = arith.addf %88, %111 : vector<8x32xf32>
    %113 = vector.extract_strided_slice %41 {offsets = [0, 24], sizes = [8, 8], strides = [1, 1]} : vector<8x96xf32> to vector<8x8xf32>
    %114 = vector.extract_strided_slice %41 {offsets = [0, 56], sizes = [8, 8], strides = [1, 1]} : vector<8x96xf32> to vector<8x8xf32>
    %115 = vector.extract_strided_slice %41 {offsets = [0, 88], sizes = [8, 8], strides = [1, 1]} : vector<8x96xf32> to vector<8x8xf32>
    %cst_52 = arith.constant dense<0.000000e+00> : vector<8x8xf32>
    %116 = tpu.matmul %113, %114, %cst_52 {dimension_numbers = #tpu.dot_dimension_numbers<[1], [1], [0], [0], [0, 0, 1, 0], [], []>} : vector<8x8xf32>, vector<8x8xf32>, vector<8x8xf32> -> vector<8x8xf32>
    %cst_53 = arith.constant 0.353553385 : f32
    %117 = vector.broadcast %cst_53 : f32 to vector<8x8xf32>
    %118 = arith.mulf %116, %117 : vector<8x8xf32>
    %cst_54 = arith.constant 0.000000e+00 : f32
    %119 = vector.broadcast %cst_54 : f32 to vector<8x8xf32>
    %120 = arith.cmpf oeq, %3, %119 : vector<8x8xf32>
    %cst_55 = arith.constant -1.000000e+09 : f32
    %121 = vector.broadcast %cst_55 : f32 to vector<8x8xf32>
    %122 = arith.select %120, %121, %118 : vector<8x8xi1>, vector<8x8xf32>
    %cst_56 = arith.constant dense<0xFF800000> : vector<8xf32>
    %123 = vector.multi_reduction <maximumf>, %122, %cst_56 [1] : vector<8x8xf32> to vector<8xf32>
    %124 = vector.shape_cast %123 : vector<8xf32> to vector<8x1xf32>
    %125 = vector.broadcast %124 : vector<8x1xf32> to vector<8x8xf32>
    %126 = arith.subf %122, %125 : vector<8x8xf32>
    %127 = math.exp %126 : vector<8x8xf32>
    %cst_57 = arith.constant dense<0.000000e+00> : vector<8xf32>
    %128 = vector.multi_reduction <add>, %127, %cst_57 [1] : vector<8x8xf32> to vector<8xf32>
    %129 = vector.shape_cast %128 : vector<8xf32> to vector<8x1xf32>
    %130 = tpu.reciprocal %129 : vector<8x1xf32> -> vector<8x1xf32>
    %131 = vector.broadcast %130 : vector<8x1xf32> to vector<8x8xf32>
    %132 = arith.mulf %127, %131 : vector<8x8xf32>
    %cst_58 = arith.constant dense<0.000000e+00> : vector<8x8xf32>
    %133 = tpu.matmul %132, %115, %cst_58 {dimension_numbers = #tpu.dot_dimension_numbers<[1], [0], [0], [1], [0, 0, 1, 1], [], []>} : vector<8x8xf32>, vector<8x8xf32>, vector<8x8xf32> -> vector<8x8xf32>
    %134 = vector.extract_strided_slice %36 {offsets = [24, 0], sizes = [8, 32], strides = [1, 1]} : vector<32x32xf32> to vector<8x32xf32>
    %cst_59 = arith.constant dense<0.000000e+00> : vector<8x32xf32>
    %135 = tpu.matmul %133, %134, %cst_59 {dimension_numbers = #tpu.dot_dimension_numbers<[1], [0], [0], [1], [0, 0, 1, 1], [], []>} : vector<8x8xf32>, vector<8x32xf32>, vector<8x32xf32> -> vector<8x32xf32>
    %136 = arith.addf %112, %135 : vector<8x32xf32>
    %137 = vector.broadcast %38 : vector<1x32xf32> to vector<8x32xf32>
    %138 = arith.addf %136, %137 : vector<8x32xf32>
    %139 = arith.addf %1, %138 : vector<8x32xf32>
    %c0_60 = arith.constant 0 : index
    %c0_61 = arith.constant 0 : index
    %c0_62 = arith.constant 0 : index
    %140 = vector.load %arg13[%c0_60, %c0_61, %c0_62] : memref<2x1x32xf32, #tpu.memory_space<vmem>>, vector<1x1x32xf32>
    %141 = vector.shape_cast %140 : vector<1x1x32xf32> to vector<1x32xf32>
    %c0_63 = arith.constant 0 : index
    %c0_64 = arith.constant 0 : index
    %c0_65 = arith.constant 0 : index
    %142 = vector.load %arg14[%c0_63, %c0_64, %c0_65] : memref<2x1x32xf32, #tpu.memory_space<vmem>>, vector<1x1x32xf32>
    %143 = vector.shape_cast %142 : vector<1x1x32xf32> to vector<1x32xf32>
    %cst_66 = arith.constant dense<0.000000e+00> : vector<8xf32>
    %144 = vector.multi_reduction <add>, %139, %cst_66 [1] : vector<8x32xf32> to vector<8xf32>
    %145 = vector.shape_cast %144 : vector<8xf32> to vector<8x1xf32>
    %cst_67 = arith.constant 3.200000e+01 : f32
    %146 = vector.broadcast %cst_67 : f32 to vector<8x1xf32>
    %147 = arith.divf %145, %146 : vector<8x1xf32>
    %148 = vector.broadcast %147 : vector<8x1xf32> to vector<8x32xf32>
    %149 = arith.subf %139, %148 : vector<8x32xf32>
    %150 = arith.mulf %149, %149 : vector<8x32xf32>
    %cst_68 = arith.constant dense<0.000000e+00> : vector<8xf32>
    %151 = vector.multi_reduction <add>, %150, %cst_68 [1] : vector<8x32xf32> to vector<8xf32>
    %152 = vector.shape_cast %151 : vector<8xf32> to vector<8x1xf32>
    %cst_69 = arith.constant 0.0322580636 : f32
    %153 = vector.broadcast %cst_69 : f32 to vector<8x1xf32>
    %154 = arith.mulf %152, %153 : vector<8x1xf32>
    %155 = math.sqrt %154 : vector<8x1xf32>
    %156 = vector.broadcast %147 : vector<8x1xf32> to vector<8x32xf32>
    %157 = arith.subf %139, %156 : vector<8x32xf32>
    %158 = vector.broadcast %141 : vector<1x32xf32> to vector<8x32xf32>
    %159 = arith.mulf %158, %157 : vector<8x32xf32>
    %cst_70 = arith.constant 9.99999997E-7 : f32
    %160 = vector.broadcast %cst_70 : f32 to vector<8x1xf32>
    %161 = arith.addf %155, %160 : vector<8x1xf32>
    %162 = tpu.reciprocal %161 : vector<8x1xf32> -> vector<8x1xf32>
    %163 = vector.broadcast %162 : vector<8x1xf32> to vector<8x32xf32>
    %164 = arith.mulf %159, %163 : vector<8x32xf32>
    %165 = vector.broadcast %143 : vector<1x32xf32> to vector<8x32xf32>
    %166 = arith.addf %164, %165 : vector<8x32xf32>
    %c0_71 = arith.constant 0 : index
    %c0_72 = arith.constant 0 : index
    %c0_73 = arith.constant 0 : index
    %167 = vector.load %arg7[%c0_71, %c0_72, %c0_73] : memref<2x32x64xf32, #tpu.memory_space<vmem>>, vector<1x32x64xf32>
    %168 = vector.shape_cast %167 : vector<1x32x64xf32> to vector<32x64xf32>
    %cst_74 = arith.constant dense<0.000000e+00> : vector<8x64xf32>
    %169 = tpu.matmul %166, %168, %cst_74 {dimension_numbers = #tpu.dot_dimension_numbers<[1], [0], [0], [1], [0, 0, 1, 1], [], []>} : vector<8x32xf32>, vector<32x64xf32>, vector<8x64xf32> -> vector<8x64xf32>
    %c0_75 = arith.constant 0 : index
    %c0_76 = arith.constant 0 : index
    %c0_77 = arith.constant 0 : index
    %170 = vector.load %arg8[%c0_75, %c0_76, %c0_77] : memref<2x1x64xf32, #tpu.memory_space<vmem>>, vector<1x1x64xf32>
    %171 = vector.shape_cast %170 : vector<1x1x64xf32> to vector<1x64xf32>
    %172 = vector.broadcast %171 : vector<1x64xf32> to vector<8x64xf32>
    %173 = arith.addf %169, %172 : vector<8x64xf32>
    %cst_78 = arith.constant 0.000000e+00 : f32
    %174 = vector.broadcast %cst_78 : f32 to vector<8x64xf32>
    %175 = arith.maximumf %173, %174 : vector<8x64xf32>
    %c0_79 = arith.constant 0 : index
    %c0_80 = arith.constant 0 : index
    %c0_81 = arith.constant 0 : index
    %176 = vector.load %arg9[%c0_79, %c0_80, %c0_81] : memref<2x64x32xf32, #tpu.memory_space<vmem>>, vector<1x64x32xf32>
    %177 = vector.shape_cast %176 : vector<1x64x32xf32> to vector<64x32xf32>
    %cst_82 = arith.constant dense<0.000000e+00> : vector<8x32xf32>
    %178 = tpu.matmul %175, %177, %cst_82 {dimension_numbers = #tpu.dot_dimension_numbers<[1], [0], [0], [1], [0, 0, 1, 1], [], []>} : vector<8x64xf32>, vector<64x32xf32>, vector<8x32xf32> -> vector<8x32xf32>
    %179 = arith.addf %139, %178 : vector<8x32xf32>
    %c0_83 = arith.constant 0 : index
    %c0_84 = arith.constant 0 : index
    %c0_85 = arith.constant 0 : index
    %180 = vector.load %arg10[%c0_83, %c0_84, %c0_85] : memref<2x1x32xf32, #tpu.memory_space<vmem>>, vector<1x1x32xf32>
    %181 = vector.shape_cast %180 : vector<1x1x32xf32> to vector<1x32xf32>
    %182 = vector.broadcast %181 : vector<1x32xf32> to vector<8x32xf32>
    %183 = arith.addf %179, %182 : vector<8x32xf32>
    %c1 = arith.constant 1 : index
    %c0_86 = arith.constant 0 : index
    %c0_87 = arith.constant 0 : index
    %184 = vector.load %arg11[%c1, %c0_86, %c0_87] : memref<2x1x32xf32, #tpu.memory_space<vmem>>, vector<1x1x32xf32>
    %185 = vector.shape_cast %184 : vector<1x1x32xf32> to vector<1x32xf32>
    %c1_88 = arith.constant 1 : index
    %c0_89 = arith.constant 0 : index
    %c0_90 = arith.constant 0 : index
    %186 = vector.load %arg12[%c1_88, %c0_89, %c0_90] : memref<2x1x32xf32, #tpu.memory_space<vmem>>, vector<1x1x32xf32>
    %187 = vector.shape_cast %186 : vector<1x1x32xf32> to vector<1x32xf32>
    %cst_91 = arith.constant dense<0.000000e+00> : vector<8xf32>
    %188 = vector.multi_reduction <add>, %183, %cst_91 [1] : vector<8x32xf32> to vector<8xf32>
    %189 = vector.shape_cast %188 : vector<8xf32> to vector<8x1xf32>
    %cst_92 = arith.constant 3.200000e+01 : f32
    %190 = vector.broadcast %cst_92 : f32 to vector<8x1xf32>
    %191 = arith.divf %189, %190 : vector<8x1xf32>
    %192 = vector.broadcast %191 : vector<8x1xf32> to vector<8x32xf32>
    %193 = arith.subf %183, %192 : vector<8x32xf32>
    %194 = arith.mulf %193, %193 : vector<8x32xf32>
    %cst_93 = arith.constant dense<0.000000e+00> : vector<8xf32>
    %195 = vector.multi_reduction <add>, %194, %cst_93 [1] : vector<8x32xf32> to vector<8xf32>
    %196 = vector.shape_cast %195 : vector<8xf32> to vector<8x1xf32>
    %cst_94 = arith.constant 0.0322580636 : f32
    %197 = vector.broadcast %cst_94 : f32 to vector<8x1xf32>
    %198 = arith.mulf %196, %197 : vector<8x1xf32>
    %199 = math.sqrt %198 : vector<8x1xf32>
    %200 = vector.broadcast %191 : vector<8x1xf32> to vector<8x32xf32>
    %201 = arith.subf %183, %200 : vector<8x32xf32>
    %202 = vector.broadcast %185 : vector<1x32xf32> to vector<8x32xf32>
    %203 = arith.mulf %202, %201 : vector<8x32xf32>
    %cst_95 = arith.constant 9.99999997E-7 : f32
    %204 = vector.broadcast %cst_95 : f32 to vector<8x1xf32>
    %205 = arith.addf %199, %204 : vector<8x1xf32>
    %206 = tpu.reciprocal %205 : vector<8x1xf32> -> vector<8x1xf32>
    %207 = vector.broadcast %206 : vector<8x1xf32> to vector<8x32xf32>
    %208 = arith.mulf %203, %207 : vector<8x32xf32>
    %209 = vector.broadcast %187 : vector<1x32xf32> to vector<8x32xf32>
    %210 = arith.addf %208, %209 : vector<8x32xf32>
    %c1_96 = arith.constant 1 : index
    %c0_97 = arith.constant 0 : index
    %c0_98 = arith.constant 0 : index
    %211 = vector.load %arg3[%c1_96, %c0_97, %c0_98] : memref<2x32x96xf32, #tpu.memory_space<vmem>>, vector<1x32x96xf32>
    %212 = vector.shape_cast %211 : vector<1x32x96xf32> to vector<32x96xf32>
    %c1_99 = arith.constant 1 : index
    %c0_100 = arith.constant 0 : index
    %c0_101 = arith.constant 0 : index
    %213 = vector.load %arg4[%c1_99, %c0_100, %c0_101] : memref<2x1x96xf32, #tpu.memory_space<vmem>>, vector<1x1x96xf32>
    %214 = vector.shape_cast %213 : vector<1x1x96xf32> to vector<1x96xf32>
    %c1_102 = arith.constant 1 : index
    %c0_103 = arith.constant 0 : index
    %c0_104 = arith.constant 0 : index
    %215 = vector.load %arg5[%c1_102, %c0_103, %c0_104] : memref<2x32x32xf32, #tpu.memory_space<vmem>>, vector<1x32x32xf32>
    %216 = vector.shape_cast %215 : vector<1x32x32xf32> to vector<32x32xf32>
    %c1_105 = arith.constant 1 : index
    %c0_106 = arith.constant 0 : index
    %c0_107 = arith.constant 0 : index
    %217 = vector.load %arg6[%c1_105, %c0_106, %c0_107] : memref<2x1x32xf32, #tpu.memory_space<vmem>>, vector<1x1x32xf32>
    %218 = vector.shape_cast %217 : vector<1x1x32xf32> to vector<1x32xf32>
    %cst_108 = arith.constant dense<0.000000e+00> : vector<8x96xf32>
    %219 = tpu.matmul %210, %212, %cst_108 {dimension_numbers = #tpu.dot_dimension_numbers<[1], [0], [0], [1], [0, 0, 1, 1], [], []>} : vector<8x32xf32>, vector<32x96xf32>, vector<8x96xf32> -> vector<8x96xf32>
    %220 = vector.broadcast %214 : vector<1x96xf32> to vector<8x96xf32>
    %221 = arith.addf %219, %220 : vector<8x96xf32>
    %222 = vector.extract_strided_slice %221 {offsets = [0, 0], sizes = [8, 8], strides = [1, 1]} : vector<8x96xf32> to vector<8x8xf32>
    %223 = vector.extract_strided_slice %221 {offsets = [0, 32], sizes = [8, 8], strides = [1, 1]} : vector<8x96xf32> to vector<8x8xf32>
    %224 = vector.extract_strided_slice %221 {offsets = [0, 64], sizes = [8, 8], strides = [1, 1]} : vector<8x96xf32> to vector<8x8xf32>
    %cst_109 = arith.constant dense<0.000000e+00> : vector<8x8xf32>
    %225 = tpu.matmul %222, %223, %cst_109 {dimension_numbers = #tpu.dot_dimension_numbers<[1], [1], [0], [0], [0, 0, 1, 0], [], []>} : vector<8x8xf32>, vector<8x8xf32>, vector<8x8xf32> -> vector<8x8xf32>
    %cst_110 = arith.constant 0.353553385 : f32
    %226 = vector.broadcast %cst_110 : f32 to vector<8x8xf32>
    %227 = arith.mulf %225, %226 : vector<8x8xf32>
    %cst_111 = arith.constant 0.000000e+00 : f32
    %228 = vector.broadcast %cst_111 : f32 to vector<8x8xf32>
    %229 = arith.cmpf oeq, %3, %228 : vector<8x8xf32>
    %cst_112 = arith.constant -1.000000e+09 : f32
    %230 = vector.broadcast %cst_112 : f32 to vector<8x8xf32>
    %231 = arith.select %229, %230, %227 : vector<8x8xi1>, vector<8x8xf32>
    %cst_113 = arith.constant dense<0xFF800000> : vector<8xf32>
    %232 = vector.multi_reduction <maximumf>, %231, %cst_113 [1] : vector<8x8xf32> to vector<8xf32>
    %233 = vector.shape_cast %232 : vector<8xf32> to vector<8x1xf32>
    %234 = vector.broadcast %233 : vector<8x1xf32> to vector<8x8xf32>
    %235 = arith.subf %231, %234 : vector<8x8xf32>
    %236 = math.exp %235 : vector<8x8xf32>
    %cst_114 = arith.constant dense<0.000000e+00> : vector<8xf32>
    %237 = vector.multi_reduction <add>, %236, %cst_114 [1] : vector<8x8xf32> to vector<8xf32>
    %238 = vector.shape_cast %237 : vector<8xf32> to vector<8x1xf32>
    %239 = tpu.reciprocal %238 : vector<8x1xf32> -> vector<8x1xf32>
    %240 = vector.broadcast %239 : vector<8x1xf32> to vector<8x8xf32>
    %241 = arith.mulf %236, %240 : vector<8x8xf32>
    %cst_115 = arith.constant dense<0.000000e+00> : vector<8x8xf32>
    %242 = tpu.matmul %241, %224, %cst_115 {dimension_numbers = #tpu.dot_dimension_numbers<[1], [0], [0], [1], [0, 0, 1, 1], [], []>} : vector<8x8xf32>, vector<8x8xf32>, vector<8x8xf32> -> vector<8x8xf32>
    %243 = vector.extract_strided_slice %216 {offsets = [0, 0], sizes = [8, 32], strides = [1, 1]} : vector<32x32xf32> to vector<8x32xf32>
    %cst_116 = arith.constant dense<0.000000e+00> : vector<8x32xf32>
    %244 = tpu.matmul %242, %243, %cst_116 {dimension_numbers = #tpu.dot_dimension_numbers<[1], [0], [0], [1], [0, 0, 1, 1], [], []>} : vector<8x8xf32>, vector<8x32xf32>, vector<8x32xf32> -> vector<8x32xf32>
    %245 = vector.extract_strided_slice %221 {offsets = [0, 8], sizes = [8, 8], strides = [1, 1]} : vector<8x96xf32> to vector<8x8xf32>
    %246 = vector.extract_strided_slice %221 {offsets = [0, 40], sizes = [8, 8], strides = [1, 1]} : vector<8x96xf32> to vector<8x8xf32>
    %247 = vector.extract_strided_slice %221 {offsets = [0, 72], sizes = [8, 8], strides = [1, 1]} : vector<8x96xf32> to vector<8x8xf32>
    %cst_117 = arith.constant dense<0.000000e+00> : vector<8x8xf32>
    %248 = tpu.matmul %245, %246, %cst_117 {dimension_numbers = #tpu.dot_dimension_numbers<[1], [1], [0], [0], [0, 0, 1, 0], [], []>} : vector<8x8xf32>, vector<8x8xf32>, vector<8x8xf32> -> vector<8x8xf32>
    %cst_118 = arith.constant 0.353553385 : f32
    %249 = vector.broadcast %cst_118 : f32 to vector<8x8xf32>
    %250 = arith.mulf %248, %249 : vector<8x8xf32>
    %cst_119 = arith.constant 0.000000e+00 : f32
    %251 = vector.broadcast %cst_119 : f32 to vector<8x8xf32>
    %252 = arith.cmpf oeq, %3, %251 : vector<8x8xf32>
    %cst_120 = arith.constant -1.000000e+09 : f32
    %253 = vector.broadcast %cst_120 : f32 to vector<8x8xf32>
    %254 = arith.select %252, %253, %250 : vector<8x8xi1>, vector<8x8xf32>
    %cst_121 = arith.constant dense<0xFF800000> : vector<8xf32>
    %255 = vector.multi_reduction <maximumf>, %254, %cst_121 [1] : vector<8x8xf32> to vector<8xf32>
    %256 = vector.shape_cast %255 : vector<8xf32> to vector<8x1xf32>
    %257 = vector.broadcast %256 : vector<8x1xf32> to vector<8x8xf32>
    %258 = arith.subf %254, %257 : vector<8x8xf32>
    %259 = math.exp %258 : vector<8x8xf32>
    %cst_122 = arith.constant dense<0.000000e+00> : vector<8xf32>
    %260 = vector.multi_reduction <add>, %259, %cst_122 [1] : vector<8x8xf32> to vector<8xf32>
    %261 = vector.shape_cast %260 : vector<8xf32> to vector<8x1xf32>
    %262 = tpu.reciprocal %261 : vector<8x1xf32> -> vector<8x1xf32>
    %263 = vector.broadcast %262 : vector<8x1xf32> to vector<8x8xf32>
    %264 = arith.mulf %259, %263 : vector<8x8xf32>
    %cst_123 = arith.constant dense<0.000000e+00> : vector<8x8xf32>
    %265 = tpu.matmul %264, %247, %cst_123 {dimension_numbers = #tpu.dot_dimension_numbers<[1], [0], [0], [1], [0, 0, 1, 1], [], []>} : vector<8x8xf32>, vector<8x8xf32>, vector<8x8xf32> -> vector<8x8xf32>
    %266 = vector.extract_strided_slice %216 {offsets = [8, 0], sizes = [8, 32], strides = [1, 1]} : vector<32x32xf32> to vector<8x32xf32>
    %cst_124 = arith.constant dense<0.000000e+00> : vector<8x32xf32>
    %267 = tpu.matmul %265, %266, %cst_124 {dimension_numbers = #tpu.dot_dimension_numbers<[1], [0], [0], [1], [0, 0, 1, 1], [], []>} : vector<8x8xf32>, vector<8x32xf32>, vector<8x32xf32> -> vector<8x32xf32>
    %268 = arith.addf %244, %267 : vector<8x32xf32>
    %269 = vector.extract_strided_slice %221 {offsets = [0, 16], sizes = [8, 8], strides = [1, 1]} : vector<8x96xf32> to vector<8x8xf32>
    %270 = vector.extract_strided_slice %221 {offsets = [0, 48], sizes = [8, 8], strides = [1, 1]} : vector<8x96xf32> to vector<8x8xf32>
    %271 = vector.extract_strided_slice %221 {offsets = [0, 80], sizes = [8, 8], strides = [1, 1]} : vector<8x96xf32> to vector<8x8xf32>
    %cst_125 = arith.constant dense<0.000000e+00> : vector<8x8xf32>
    %272 = tpu.matmul %269, %270, %cst_125 {dimension_numbers = #tpu.dot_dimension_numbers<[1], [1], [0], [0], [0, 0, 1, 0], [], []>} : vector<8x8xf32>, vector<8x8xf32>, vector<8x8xf32> -> vector<8x8xf32>
    %cst_126 = arith.constant 0.353553385 : f32
    %273 = vector.broadcast %cst_126 : f32 to vector<8x8xf32>
    %274 = arith.mulf %272, %273 : vector<8x8xf32>
    %cst_127 = arith.constant 0.000000e+00 : f32
    %275 = vector.broadcast %cst_127 : f32 to vector<8x8xf32>
    %276 = arith.cmpf oeq, %3, %275 : vector<8x8xf32>
    %cst_128 = arith.constant -1.000000e+09 : f32
    %277 = vector.broadcast %cst_128 : f32 to vector<8x8xf32>
    %278 = arith.select %276, %277, %274 : vector<8x8xi1>, vector<8x8xf32>
    %cst_129 = arith.constant dense<0xFF800000> : vector<8xf32>
    %279 = vector.multi_reduction <maximumf>, %278, %cst_129 [1] : vector<8x8xf32> to vector<8xf32>
    %280 = vector.shape_cast %279 : vector<8xf32> to vector<8x1xf32>
    %281 = vector.broadcast %280 : vector<8x1xf32> to vector<8x8xf32>
    %282 = arith.subf %278, %281 : vector<8x8xf32>
    %283 = math.exp %282 : vector<8x8xf32>
    %cst_130 = arith.constant dense<0.000000e+00> : vector<8xf32>
    %284 = vector.multi_reduction <add>, %283, %cst_130 [1] : vector<8x8xf32> to vector<8xf32>
    %285 = vector.shape_cast %284 : vector<8xf32> to vector<8x1xf32>
    %286 = tpu.reciprocal %285 : vector<8x1xf32> -> vector<8x1xf32>
    %287 = vector.broadcast %286 : vector<8x1xf32> to vector<8x8xf32>
    %288 = arith.mulf %283, %287 : vector<8x8xf32>
    %cst_131 = arith.constant dense<0.000000e+00> : vector<8x8xf32>
    %289 = tpu.matmul %288, %271, %cst_131 {dimension_numbers = #tpu.dot_dimension_numbers<[1], [0], [0], [1], [0, 0, 1, 1], [], []>} : vector<8x8xf32>, vector<8x8xf32>, vector<8x8xf32> -> vector<8x8xf32>
    %290 = vector.extract_strided_slice %216 {offsets = [16, 0], sizes = [8, 32], strides = [1, 1]} : vector<32x32xf32> to vector<8x32xf32>
    %cst_132 = arith.constant dense<0.000000e+00> : vector<8x32xf32>
    %291 = tpu.matmul %289, %290, %cst_132 {dimension_numbers = #tpu.dot_dimension_numbers<[1], [0], [0], [1], [0, 0, 1, 1], [], []>} : vector<8x8xf32>, vector<8x32xf32>, vector<8x32xf32> -> vector<8x32xf32>
    %292 = arith.addf %268, %291 : vector<8x32xf32>
    %293 = vector.extract_strided_slice %221 {offsets = [0, 24], sizes = [8, 8], strides = [1, 1]} : vector<8x96xf32> to vector<8x8xf32>
    %294 = vector.extract_strided_slice %221 {offsets = [0, 56], sizes = [8, 8], strides = [1, 1]} : vector<8x96xf32> to vector<8x8xf32>
    %295 = vector.extract_strided_slice %221 {offsets = [0, 88], sizes = [8, 8], strides = [1, 1]} : vector<8x96xf32> to vector<8x8xf32>
    %cst_133 = arith.constant dense<0.000000e+00> : vector<8x8xf32>
    %296 = tpu.matmul %293, %294, %cst_133 {dimension_numbers = #tpu.dot_dimension_numbers<[1], [1], [0], [0], [0, 0, 1, 0], [], []>} : vector<8x8xf32>, vector<8x8xf32>, vector<8x8xf32> -> vector<8x8xf32>
    %cst_134 = arith.constant 0.353553385 : f32
    %297 = vector.broadcast %cst_134 : f32 to vector<8x8xf32>
    %298 = arith.mulf %296, %297 : vector<8x8xf32>
    %cst_135 = arith.constant 0.000000e+00 : f32
    %299 = vector.broadcast %cst_135 : f32 to vector<8x8xf32>
    %300 = arith.cmpf oeq, %3, %299 : vector<8x8xf32>
    %cst_136 = arith.constant -1.000000e+09 : f32
    %301 = vector.broadcast %cst_136 : f32 to vector<8x8xf32>
    %302 = arith.select %300, %301, %298 : vector<8x8xi1>, vector<8x8xf32>
    %cst_137 = arith.constant dense<0xFF800000> : vector<8xf32>
    %303 = vector.multi_reduction <maximumf>, %302, %cst_137 [1] : vector<8x8xf32> to vector<8xf32>
    %304 = vector.shape_cast %303 : vector<8xf32> to vector<8x1xf32>
    %305 = vector.broadcast %304 : vector<8x1xf32> to vector<8x8xf32>
    %306 = arith.subf %302, %305 : vector<8x8xf32>
    %307 = math.exp %306 : vector<8x8xf32>
    %cst_138 = arith.constant dense<0.000000e+00> : vector<8xf32>
    %308 = vector.multi_reduction <add>, %307, %cst_138 [1] : vector<8x8xf32> to vector<8xf32>
    %309 = vector.shape_cast %308 : vector<8xf32> to vector<8x1xf32>
    %310 = tpu.reciprocal %309 : vector<8x1xf32> -> vector<8x1xf32>
    %311 = vector.broadcast %310 : vector<8x1xf32> to vector<8x8xf32>
    %312 = arith.mulf %307, %311 : vector<8x8xf32>
    %cst_139 = arith.constant dense<0.000000e+00> : vector<8x8xf32>
    %313 = tpu.matmul %312, %295, %cst_139 {dimension_numbers = #tpu.dot_dimension_numbers<[1], [0], [0], [1], [0, 0, 1, 1], [], []>} : vector<8x8xf32>, vector<8x8xf32>, vector<8x8xf32> -> vector<8x8xf32>
    %314 = vector.extract_strided_slice %216 {offsets = [24, 0], sizes = [8, 32], strides = [1, 1]} : vector<32x32xf32> to vector<8x32xf32>
    %cst_140 = arith.constant dense<0.000000e+00> : vector<8x32xf32>
    %315 = tpu.matmul %313, %314, %cst_140 {dimension_numbers = #tpu.dot_dimension_numbers<[1], [0], [0], [1], [0, 0, 1, 1], [], []>} : vector<8x8xf32>, vector<8x32xf32>, vector<8x32xf32> -> vector<8x32xf32>
    %316 = arith.addf %292, %315 : vector<8x32xf32>
    %317 = vector.broadcast %218 : vector<1x32xf32> to vector<8x32xf32>
    %318 = arith.addf %316, %317 : vector<8x32xf32>
    %319 = arith.addf %183, %318 : vector<8x32xf32>
    %c1_141 = arith.constant 1 : index
    %c0_142 = arith.constant 0 : index
    %c0_143 = arith.constant 0 : index
    %320 = vector.load %arg13[%c1_141, %c0_142, %c0_143] : memref<2x1x32xf32, #tpu.memory_space<vmem>>, vector<1x1x32xf32>
    %321 = vector.shape_cast %320 : vector<1x1x32xf32> to vector<1x32xf32>
    %c1_144 = arith.constant 1 : index
    %c0_145 = arith.constant 0 : index
    %c0_146 = arith.constant 0 : index
    %322 = vector.load %arg14[%c1_144, %c0_145, %c0_146] : memref<2x1x32xf32, #tpu.memory_space<vmem>>, vector<1x1x32xf32>
    %323 = vector.shape_cast %322 : vector<1x1x32xf32> to vector<1x32xf32>
    %cst_147 = arith.constant dense<0.000000e+00> : vector<8xf32>
    %324 = vector.multi_reduction <add>, %319, %cst_147 [1] : vector<8x32xf32> to vector<8xf32>
    %325 = vector.shape_cast %324 : vector<8xf32> to vector<8x1xf32>
    %cst_148 = arith.constant 3.200000e+01 : f32
    %326 = vector.broadcast %cst_148 : f32 to vector<8x1xf32>
    %327 = arith.divf %325, %326 : vector<8x1xf32>
    %328 = vector.broadcast %327 : vector<8x1xf32> to vector<8x32xf32>
    %329 = arith.subf %319, %328 : vector<8x32xf32>
    %330 = arith.mulf %329, %329 : vector<8x32xf32>
    %cst_149 = arith.constant dense<0.000000e+00> : vector<8xf32>
    %331 = vector.multi_reduction <add>, %330, %cst_149 [1] : vector<8x32xf32> to vector<8xf32>
    %332 = vector.shape_cast %331 : vector<8xf32> to vector<8x1xf32>
    %cst_150 = arith.constant 0.0322580636 : f32
    %333 = vector.broadcast %cst_150 : f32 to vector<8x1xf32>
    %334 = arith.mulf %332, %333 : vector<8x1xf32>
    %335 = math.sqrt %334 : vector<8x1xf32>
    %336 = vector.broadcast %327 : vector<8x1xf32> to vector<8x32xf32>
    %337 = arith.subf %319, %336 : vector<8x32xf32>
    %338 = vector.broadcast %321 : vector<1x32xf32> to vector<8x32xf32>
    %339 = arith.mulf %338, %337 : vector<8x32xf32>
    %cst_151 = arith.constant 9.99999997E-7 : f32
    %340 = vector.broadcast %cst_151 : f32 to vector<8x1xf32>
    %341 = arith.addf %335, %340 : vector<8x1xf32>
    %342 = tpu.reciprocal %341 : vector<8x1xf32> -> vector<8x1xf32>
    %343 = vector.broadcast %342 : vector<8x1xf32> to vector<8x32xf32>
    %344 = arith.mulf %339, %343 : vector<8x32xf32>
    %345 = vector.broadcast %323 : vector<1x32xf32> to vector<8x32xf32>
    %346 = arith.addf %344, %345 : vector<8x32xf32>
    %c1_152 = arith.constant 1 : index
    %c0_153 = arith.constant 0 : index
    %c0_154 = arith.constant 0 : index
    %347 = vector.load %arg7[%c1_152, %c0_153, %c0_154] : memref<2x32x64xf32, #tpu.memory_space<vmem>>, vector<1x32x64xf32>
    %348 = vector.shape_cast %347 : vector<1x32x64xf32> to vector<32x64xf32>
    %cst_155 = arith.constant dense<0.000000e+00> : vector<8x64xf32>
    %349 = tpu.matmul %346, %348, %cst_155 {dimension_numbers = #tpu.dot_dimension_numbers<[1], [0], [0], [1], [0, 0, 1, 1], [], []>} : vector<8x32xf32>, vector<32x64xf32>, vector<8x64xf32> -> vector<8x64xf32>
    %c1_156 = arith.constant 1 : index
    %c0_157 = arith.constant 0 : index
    %c0_158 = arith.constant 0 : index
    %350 = vector.load %arg8[%c1_156, %c0_157, %c0_158] : memref<2x1x64xf32, #tpu.memory_space<vmem>>, vector<1x1x64xf32>
    %351 = vector.shape_cast %350 : vector<1x1x64xf32> to vector<1x64xf32>
    %352 = vector.broadcast %351 : vector<1x64xf32> to vector<8x64xf32>
    %353 = arith.addf %349, %352 : vector<8x64xf32>
    %cst_159 = arith.constant 0.000000e+00 : f32
    %354 = vector.broadcast %cst_159 : f32 to vector<8x64xf32>
    %355 = arith.maximumf %353, %354 : vector<8x64xf32>
    %c1_160 = arith.constant 1 : index
    %c0_161 = arith.constant 0 : index
    %c0_162 = arith.constant 0 : index
    %356 = vector.load %arg9[%c1_160, %c0_161, %c0_162] : memref<2x64x32xf32, #tpu.memory_space<vmem>>, vector<1x64x32xf32>
    %357 = vector.shape_cast %356 : vector<1x64x32xf32> to vector<64x32xf32>
    %cst_163 = arith.constant dense<0.000000e+00> : vector<8x32xf32>
    %358 = tpu.matmul %355, %357, %cst_163 {dimension_numbers = #tpu.dot_dimension_numbers<[1], [0], [0], [1], [0, 0, 1, 1], [], []>} : vector<8x64xf32>, vector<64x32xf32>, vector<8x32xf32> -> vector<8x32xf32>
    %359 = arith.addf %319, %358 : vector<8x32xf32>
    %c1_164 = arith.constant 1 : index
    %c0_165 = arith.constant 0 : index
    %c0_166 = arith.constant 0 : index
    %360 = vector.load %arg10[%c1_164, %c0_165, %c0_166] : memref<2x1x32xf32, #tpu.memory_space<vmem>>, vector<1x1x32xf32>
    %361 = vector.shape_cast %360 : vector<1x1x32xf32> to vector<1x32xf32>
    %362 = vector.broadcast %361 : vector<1x32xf32> to vector<8x32xf32>
    %363 = arith.addf %359, %362 : vector<8x32xf32>
    %c0_167 = arith.constant 0 : index
    %c0_168 = arith.constant 0 : index
    %364 = vector.load %arg15[%c0_167, %c0_168] : memref<1x32xf32, #tpu.memory_space<vmem>>, vector<1x32xf32>
    %c0_169 = arith.constant 0 : index
    %c0_170 = arith.constant 0 : index
    %365 = vector.load %arg16[%c0_169, %c0_170] : memref<1x32xf32, #tpu.memory_space<vmem>>, vector<1x32xf32>
    %cst_171 = arith.constant dense<0.000000e+00> : vector<8xf32>
    %366 = vector.multi_reduction <add>, %363, %cst_171 [1] : vector<8x32xf32> to vector<8xf32>
    %367 = vector.shape_cast %366 : vector<8xf32> to vector<8x1xf32>
    %cst_172 = arith.constant 3.200000e+01 : f32
    %368 = vector.broadcast %cst_172 : f32 to vector<8x1xf32>
    %369 = arith.divf %367, %368 : vector<8x1xf32>
    %370 = vector.broadcast %369 : vector<8x1xf32> to vector<8x32xf32>
    %371 = arith.subf %363, %370 : vector<8x32xf32>
    %372 = arith.mulf %371, %371 : vector<8x32xf32>
    %cst_173 = arith.constant dense<0.000000e+00> : vector<8xf32>
    %373 = vector.multi_reduction <add>, %372, %cst_173 [1] : vector<8x32xf32> to vector<8xf32>
    %374 = vector.shape_cast %373 : vector<8xf32> to vector<8x1xf32>
    %cst_174 = arith.constant 0.0322580636 : f32
    %375 = vector.broadcast %cst_174 : f32 to vector<8x1xf32>
    %376 = arith.mulf %374, %375 : vector<8x1xf32>
    %377 = math.sqrt %376 : vector<8x1xf32>
    %378 = vector.broadcast %369 : vector<8x1xf32> to vector<8x32xf32>
    %379 = arith.subf %363, %378 : vector<8x32xf32>
    %380 = vector.broadcast %364 : vector<1x32xf32> to vector<8x32xf32>
    %381 = arith.mulf %380, %379 : vector<8x32xf32>
    %cst_175 = arith.constant 9.99999997E-7 : f32
    %382 = vector.broadcast %cst_175 : f32 to vector<8x1xf32>
    %383 = arith.addf %377, %382 : vector<8x1xf32>
    %384 = tpu.reciprocal %383 : vector<8x1xf32> -> vector<8x1xf32>
    %385 = vector.broadcast %384 : vector<8x1xf32> to vector<8x32xf32>
    %386 = arith.mulf %381, %385 : vector<8x32xf32>
    %387 = vector.broadcast %365 : vector<1x32xf32> to vector<8x32xf32>
    %388 = arith.addf %386, %387 : vector<8x32xf32>
    %c0_176 = arith.constant 0 : index
    %c0_177 = arith.constant 0 : index
    %c0_178 = arith.constant 0 : index
    %389 = vector.load %arg17[%c0_176, %c0_177, %c0_178] : memref<1x8x32xf32, #tpu.memory_space<vmem>>, vector<1x8x32xf32>
    %390 = vector.shape_cast %389 : vector<1x8x32xf32> to vector<8x32xf32>
    %391 = vector.shape_cast %388 : vector<8x32xf32> to vector<1x8x32xf32>
    tpu.vector_store %arg17[%c0_176, %c0_177, %c0_178], %391 {strides = array<i32>} : memref<1x8x32xf32, #tpu.memory_space<vmem>>, vector<1x8x32xf32>,
    return
  }
  func.func @transform_0(%arg0: i32) -> (i32, i32, i32) {
    %c0_i32 = arith.constant 0 : i32
    %c0_i32_0 = arith.constant 0 : i32
    %c0_i32_1 = arith.constant 0 : i32
    return %arg0, %c0_i32, %c0_i32_0 : i32, i32, i32
  }
  func.func @transform_1(%arg0: i32) -> (i32, i32, i32) {
    %c0_i32 = arith.constant 0 : i32
    %c0_i32_0 = arith.constant 0 : i32
    %c0_i32_1 = arith.constant 0 : i32
    return %arg0, %c0_i32, %c0_i32_0 : i32, i32, i32
  }
  func.func @transform_2(%arg0: i32) -> (i32, i32, i32) {
    %c0_i32 = arith.constant 0 : i32
    %c0_i32_0 = arith.constant 0 : i32
    %c0_i32_1 = arith.constant 0 : i32
    %c0_i32_2 = arith.constant 0 : i32
    return %c0_i32, %c0_i32_0, %c0_i32_1 : i32, i32, i32
  }
  func.func @transform_3(%arg0: i32) -> (i32, i32, i32) {
    %c0_i32 = arith.constant 0 : i32
    %c0_i32_0 = arith.constant 0 : i32
    %c0_i32_1 = arith.constant 0 : i32
    %c0_i32_2 = arith.constant 0 : i32
    return %c0_i32, %c0_i32_0, %c0_i32_1 : i32, i32, i32
  }
  func.func @transform_4(%arg0: i32) -> (i32, i32, i32) {
    %c0_i32 = arith.constant 0 : i32
    %c0_i32_0 = arith.constant 0 : i32
    %c0_i32_1 = arith.constant 0 : i32
    %c0_i32_2 = arith.constant 0 : i32
    return %c0_i32, %c0_i32_0, %c0_i32_1 : i32, i32, i32
  }
  func.func @transform_5(%arg0: i32) -> (i32, i32, i32) {
    %c0_i32 = arith.constant 0 : i32
    %c0_i32_0 = arith.constant 0 : i32
    %c0_i32_1 = arith.constant 0 : i32
    %c0_i32_2 = arith.constant 0 : i32
    return %c0_i32, %c0_i32_0, %c0_i32_1 : i32, i32, i32
  }
  func.func @transform_6(%arg0: i32) -> (i32, i32, i32) {
    %c0_i32 = arith.constant 0 : i32
    %c0_i32_0 = arith.constant 0 : i32
    %c0_i32_1 = arith.constant 0 : i32
    %c0_i32_2 = arith.constant 0 : i32
    return %c0_i32, %c0_i32_0, %c0_i32_1 : i32, i32, i32
  }
  func.func @transform_7(%arg0: i32) -> (i32, i32, i32) {
    %c0_i32 = arith.constant 0 : i32
    %c0_i32_0 = arith.constant 0 : i32
    %c0_i32_1 = arith.constant 0 : i32
    %c0_i32_2 = arith.constant 0 : i32
    return %c0_i32, %c0_i32_0, %c0_i32_1 : i32, i32, i32
  }
  func.func @transform_8(%arg0: i32) -> (i32, i32, i32) {
    %c0_i32 = arith.constant 0 : i32
    %c0_i32_0 = arith.constant 0 : i32
    %c0_i32_1 = arith.constant 0 : i32
    %c0_i32_2 = arith.constant 0 : i32
    return %c0_i32, %c0_i32_0, %c0_i32_1 : i32, i32, i32
  }
  func.func @transform_9(%arg0: i32) -> (i32, i32, i32) {
    %c0_i32 = arith.constant 0 : i32
    %c0_i32_0 = arith.constant 0 : i32
    %c0_i32_1 = arith.constant 0 : i32
    %c0_i32_2 = arith.constant 0 : i32
    return %c0_i32, %c0_i32_0, %c0_i32_1 : i32, i32, i32
  }
  func.func @transform_10(%arg0: i32) -> (i32, i32, i32) {
    %c0_i32 = arith.constant 0 : i32
    %c0_i32_0 = arith.constant 0 : i32
    %c0_i32_1 = arith.constant 0 : i32
    %c0_i32_2 = arith.constant 0 : i32
    return %c0_i32, %c0_i32_0, %c0_i32_1 : i32, i32, i32
  }
  func.func @transform_11(%arg0: i32) -> (i32, i32, i32) {
    %c0_i32 = arith.constant 0 : i32
    %c0_i32_0 = arith.constant 0 : i32
    %c0_i32_1 = arith.constant 0 : i32
    %c0_i32_2 = arith.constant 0 : i32
    return %c0_i32, %c0_i32_0, %c0_i32_1 : i32, i32, i32
  }
  func.func @transform_12(%arg0: i32) -> (i32, i32, i32) {
    %c0_i32 = arith.constant 0 : i32
    %c0_i32_0 = arith.constant 0 : i32
    %c0_i32_1 = arith.constant 0 : i32
    %c0_i32_2 = arith.constant 0 : i32
    return %c0_i32, %c0_i32_0, %c0_i32_1 : i32, i32, i32
  }
  func.func @transform_13(%arg0: i32) -> (i32, i32, i32) {
    %c0_i32 = arith.constant 0 : i32
    %c0_i32_0 = arith.constant 0 : i32
    %c0_i32_1 = arith.constant 0 : i32
    %c0_i32_2 = arith.constant 0 : i32
    return %c0_i32, %c0_i32_0, %c0_i32_1 : i32, i32, i32
  }
  func.func @transform_14(%arg0: i32) -> (i32, i32) {
    %c0_i32 = arith.constant 0 : i32
    %c0_i32_0 = arith.constant 0 : i32
    %c0_i32_1 = arith.constant 0 : i32
    return %c0_i32, %c0_i32_0 : i32, i32
  }
  func.func @transform_15(%arg0: i32) -> (i32, i32) {
    %c0_i32 = arith.constant 0 : i32
    %c0_i32_0 = arith.constant 0 : i32
    %c0_i32_1 = arith.constant 0 : i32
    return %c0_i32, %c0_i32_0 : i32, i32
  }
  func.func @transform_16(%arg0: i32) -> (i32, i32, i32) {
    %c0_i32 = arith.constant 0 : i32
    %c0_i32_0 = arith.constant 0 : i32
    %c0_i32_1 = arith.constant 0 : i32
    return %arg0, %c0_i32, %c0_i32_0 : i32, i32, i32
  }
}

</mosaic_0001>

<llo_original>
// kernel: encoder_forward.1
$region0: #{encoder_forward.1}
  #allocation0 [shape = 'u32[]', space=smem, size = 0x4, offset = 0x4, fixed_abs, tag = 'smem constant byte address 0x4 - core index']
  #allocation1 [shape = 'u32[144,128]{1,0:T(1,128)}', space=vmem, size = 0x12000, scoped, tag = 'internal scratch']
  %s0 = inlined_call_operand.vmem [shape: f32[2,8,32], index: 0, kind: input, shape index: {}]
  %s1 = inlined_call_operand.vmem [shape: f32[2,8,8], index: 1, kind: input, shape index: {}]
  %s2 = inlined_call_operand.vmem [shape: f32[2,32,96], index: 2, kind: input, shape index: {}]
  %s3 = inlined_call_operand.vmem [shape: f32[2,1,96], index: 3, kind: input, shape index: {}]
  %s4 = inlined_call_operand.vmem [shape: f32[2,32,32], index: 4, kind: input, shape index: {}]
  %s5 = inlined_call_operand.vmem [shape: f32[2,1,32], index: 5, kind: input, shape index: {}]
  %s6 = inlined_call_operand.vmem [shape: f32[2,32,64], index: 6, kind: input, shape index: {}]
  %s7 = inlined_call_operand.hbm [shape: f32[2,1,64], index: 7, kind: input, shape index: {}]
  %s8 = inlined_call_operand.vmem [shape: f32[2,64,32], index: 8, kind: input, shape index: {}]
  %s9 = inlined_call_operand.hbm [shape: f32[2,1,32], index: 9, kind: input, shape index: {}]
  %s10 = inlined_call_operand.vmem [shape: f32[2,1,32], index: 10, kind: input, shape index: {}]
  %s11 = inlined_call_operand.vmem [shape: f32[2,1,32], index: 11, kind: input, shape index: {}]
  %s12 = inlined_call_operand.vmem [shape: f32[2,1,32], index: 12, kind: input, shape index: {}]
  %s13 = inlined_call_operand.vmem [shape: f32[2,1,32], index: 13, kind: input, shape index: {}]
  %s14 = inlined_call_operand.vmem [shape: f32[1,32], index: 14, kind: input, shape index: {}]
  %s15 = inlined_call_operand.vmem [shape: f32[1,32], index: 15, kind: input, shape index: {}]
  %s16 = inlined_call_operand.hbm [shape: f32[2,8,32], index: 16, kind: output, shape index: {}]
  %s17 = sld [smem:[#allocation0]]
  $region105: #{encoder_forward.1} parent=0
    _
  %s19 = ssub.s32 1, %s17
  %s20 = scalar_select 0, %s19, %s17
  $region1: #{encoder_forward.1} parent=0
    #allocation2 [shape = 'u8[1024]{0}', space=vmem, size = 0x400, scoped, tag = 'input window, operand 7, single buffered']
    #allocation3 [shape = 's32[2]{0}', space=sflag, size = 0x8, scoped, tag = 'scoped memory for encoder_forward.1']
    #allocation4 [shape = 's32[2]{0}', space=sflag, size = 0x8, scoped, tag = 'scoped memory for encoder_forward.1']
    #allocation5 [shape = 'u8[1024]{0}', space=vmem, size = 0x400, scoped, tag = 'input window, operand 9, single buffered']
    #allocation6 [shape = 's32[1]{0}', space=sflag, size = 0x4, scoped, tag = 'scoped memory for encoder_forward.1']
    #allocation7 [shape = 'u8[8192]{0}', space=vmem, size = 0x2000, scoped, tag = 'output window, operand 0']
    %21 = vsyncpa [#allocation3], 0
    %22 = vsyncpa [#allocation6], 0
    %23 = vsyncpa [#allocation4], 0
    %s24 = scalar_lea.sflag [#allocation4], 1
    %25 = vsyncpa %s24, 0
    loop: start=0, step=1, limit=4
    $region2: #{encoder_forward.1} parent=1 // loop_pre_header
      _
    $region3: #{encoder_forward.1} parent=1 // loop_header
      %s27 = sphi 0, %s31
      %p28 = scmp.ge.s32.totalorder %s27, 4
      %s37 = sphi 0, %s39
      %s40 = sphi 0, %s37
      %s41 = sphi 0, %s40
      %s57 = sphi 0, %s41
      %s63 = sphi 0, %s65
      %s66 = sphi 0, %s63
      %s67 = sphi 0, %s66
      %s83 = sphi 0, %s67
      %s87 = sphi 0, %s87
      %s89 = sphi 0, %s87
      %s90 = sphi 0, %s89
      %s104 = sphi 0, %s90
      %s108 = sphi 0, %s108
      %s110 = sphi 0, %s108
      %s111 = sphi 0, %s110
      %s125 = sphi 0, %s111
      %s129 = sphi 0, %s129
      %s131 = sphi 0, %s129
      %s132 = sphi 0, %s131
      %s146 = sphi 0, %s132
      %s150 = sphi 0, %s150
      %s152 = sphi 0, %s150
      %s153 = sphi 0, %s152
      %s167 = sphi 0, %s153
      %s171 = sphi 0, %s171
      %s173 = sphi 0, %s171
      %s174 = sphi 0, %s173
      %s188 = sphi 0, %s174
      %s192 = sphi 0, %s192
      %s194 = sphi 0, %s192
      %s195 = sphi 0, %s194
      %s209 = sphi 0, %s195
      %s213 = sphi 0, %s213
      %s215 = sphi 0, %s213
      %s216 = sphi 0, %s215
      %s230 = sphi 0, %s216
      %s234 = sphi 0, %s234
      %s236 = sphi 0, %s234
      %s237 = sphi 0, %s236
      %s251 = sphi 0, %s237
      %s255 = sphi 0, %s255
      %s257 = sphi 0, %s255
      %s258 = sphi 0, %s257
      %s272 = sphi 0, %s258
      %s276 = sphi 0, %s276
      %s278 = sphi 0, %s276
      %s279 = sphi 0, %s278
      %s293 = sphi 0, %s279
      %s297 = sphi 0, %s297
      %s299 = sphi 0, %s297
      %s300 = sphi 0, %s299
      %s314 = sphi 0, %s300
      %s318 = sphi 0, %s318
      %s320 = sphi 0, %s318
      %s321 = sphi 0, %s320
      %s335 = sphi 0, %s321
      %s339 = sphi 0, %s339
      %s341 = sphi 0, %s339
      %s342 = sphi 0, %s341
      %s356 = sphi 0, %s342
      %s360 = sphi 0, %s360
      %s362 = sphi 0, %s360
      %s363 = sphi 0, %s362
      %s377 = sphi 0, %s363
      %s383 = sphi 0, %s385
      %s386 = sphi 0, %s383
      %s387 = sphi 0, %s386
      %s403 = sphi 0, %s387
    $region4: #{encoder_forward.1} parent=1 // loop_header_branch
      %30 = sbr.rel (%p28) target = $region8
    $region5: #{encoder_forward.1} parent=1 // loop_body
      %s32 = ssub.s32 %s27, 1
      %s33 = ssub.s32 %s27, 2
      %s34 = sadd.s32 %s27, 1
      %s35 = ssub.s32 %s27, %s34
      %p36 = scmp.eq.s32.totalorder %s35, 0
      %s38 = sadd.s32 %s37, 1
      %s39 = scalar_select %p36, %s37, %s38
      %p42 = pneg %p36
      %p43 = scmp.eq.s32.totalorder %s27, 1
      %p44 = por %p42, %p43
      %p45 = scmp.ne.s32.totalorder %s37, %s40
      %p46 = scmp.eq.s32.totalorder %s27, 0
      %p47 = por %p45, %p46
      %p48 = scmp.ne.s32.totalorder %s37, %s40
      %p49 = scmp.eq.s32.totalorder %s32, 1
      %p50 = por %p48, %p49
      %p51 = scmp.ne.s32.totalorder %s40, %s41
      %p52 = scmp.eq.s32.totalorder %s32, 0
      %p53 = por %p51, %p52
      %p54 = scmp.ne.s32.totalorder %s40, %s41
      %p55 = scmp.eq.s32.totalorder %s33, 1
      %p56 = por %p54, %p55
      %p58 = scmp.ne.s32.totalorder %s41, %s57
      %p59 = scmp.eq.s32.totalorder %s33, 0
      %p60 = por %p58, %p59
      %s61 = ssub.s32 %s27, %s34
      %p62 = scmp.eq.s32.totalorder %s61, 0
      %s64 = sadd.s32 %s63, 1
      %s65 = scalar_select %p62, %s63, %s64
      %p68 = pneg %p62
      %p69 = scmp.eq.s32.totalorder %s27, 1
      %p70 = por %p68, %p69
      %p71 = scmp.ne.s32.totalorder %s63, %s66
      %p72 = scmp.eq.s32.totalorder %s27, 0
      %p73 = por %p71, %p72
      %p74 = scmp.ne.s32.totalorder %s63, %s66
      %p75 = scmp.eq.s32.totalorder %s32, 1
      %p76 = por %p74, %p75
      %p77 = scmp.ne.s32.totalorder %s66, %s67
      %p78 = scmp.eq.s32.totalorder %s32, 0
      %p79 = por %p77, %p78
      %p80 = scmp.ne.s32.totalorder %s66, %s67
      %p81 = scmp.eq.s32.totalorder %s33, 1
      %p82 = por %p80, %p81
      %p84 = scmp.ne.s32.totalorder %s67, %s83
      %p85 = scmp.eq.s32.totalorder %s33, 0
      %p86 = por %p84, %p85
      %s88 = sadd.s32 %s87, 1
      %p91 = scmp.eq.s32.totalorder %s27, 1
      %p92 = scmp.ne.s32.totalorder %s87, %s89
      %p93 = scmp.eq.s32.totalorder %s27, 0
      %p94 = por %p92, %p93
      %p95 = scmp.ne.s32.totalorder %s87, %s89
      %p96 = scmp.eq.s32.totalorder %s32, 1
      %p97 = por %p95, %p96
      %p98 = scmp.ne.s32.totalorder %s89, %s90
      %p99 = scmp.eq.s32.totalorder %s32, 0
      %p100 = por %p98, %p99
      %p101 = scmp.ne.s32.totalorder %s89, %s90
      %p102 = scmp.eq.s32.totalorder %s33, 1
      %p103 = por %p101, %p102
      %p105 = scmp.ne.s32.totalorder %s90, %s104
      %p106 = scmp.eq.s32.totalorder %s33, 0
      %p107 = por %p105, %p106
      %s109 = sadd.s32 %s108, 1
      %p112 = scmp.eq.s32.totalorder %s27, 1
      %p113 = scmp.ne.s32.totalorder %s108, %s110
      %p114 = scmp.eq.s32.totalorder %s27, 0
      %p115 = por %p113, %p114
      %p116 = scmp.ne.s32.totalorder %s108, %s110
      %p117 = scmp.eq.s32.totalorder %s32, 1
      %p118 = por %p116, %p117
      %p119 = scmp.ne.s32.totalorder %s110, %s111
      %p120 = scmp.eq.s32.totalorder %s32, 0
      %p121 = por %p119, %p120
      %p122 = scmp.ne.s32.totalorder %s110, %s111
      %p123 = scmp.eq.s32.totalorder %s33, 1
      %p124 = por %p122, %p123
      %p126 = scmp.ne.s32.totalorder %s111, %s125
      %p127 = scmp.eq.s32.totalorder %s33, 0
      %p128 = por %p126, %p127
      %s130 = sadd.s32 %s129, 1
      %p133 = scmp.eq.s32.totalorder %s27, 1
      %p134 = scmp.ne.s32.totalorder %s129, %s131
      %p135 = scmp.eq.s32.totalorder %s27, 0
      %p136 = por %p134, %p135
      %p137 = scmp.ne.s32.totalorder %s129, %s131
      %p138 = scmp.eq.s32.totalorder %s32, 1
      %p139 = por %p137, %p138
      %p140 = scmp.ne.s32.totalorder %s131, %s132
      %p141 = scmp.eq.s32.totalorder %s32, 0
      %p142 = por %p140, %p141
      %p143 = scmp.ne.s32.totalorder %s131, %s132
      %p144 = scmp.eq.s32.totalorder %s33, 1
      %p145 = por %p143, %p144
      %p147 = scmp.ne.s32.totalorder %s132, %s146
      %p148 = scmp.eq.s32.totalorder %s33, 0
      %p149 = por %p147, %p148
      %s151 = sadd.s32 %s150, 1
      %p154 = scmp.eq.s32.totalorder %s27, 1
      %p155 = scmp.ne.s32.totalorder %s150, %s152
      %p156 = scmp.eq.s32.totalorder %s27, 0
      %p157 = por %p155, %p156
      %p158 = scmp.ne.s32.totalorder %s150, %s152
      %p159 = scmp.eq.s32.totalorder %s32, 1
      %p160 = por %p158, %p159
      %p161 = scmp.ne.s32.totalorder %s152, %s153
      %p162 = scmp.eq.s32.totalorder %s32, 0
      %p163 = por %p161, %p162
      %p164 = scmp.ne.s32.totalorder %s152, %s153
      %p165 = scmp.eq.s32.totalorder %s33, 1
      %p166 = por %p164, %p165
      %p168 = scmp.ne.s32.totalorder %s153, %s167
      %p169 = scmp.eq.s32.totalorder %s33, 0
      %p170 = por %p168, %p169
      %s172 = sadd.s32 %s171, 1
      %p175 = scmp.eq.s32.totalorder %s27, 1
      %p176 = scmp.ne.s32.totalorder %s171, %s173
      %p177 = scmp.eq.s32.totalorder %s27, 0
      %p178 = por %p176, %p177
      %p179 = scmp.ne.s32.totalorder %s171, %s173
      %p180 = scmp.eq.s32.totalorder %s32, 1
      %p181 = por %p179, %p180
      %p182 = scmp.ne.s32.totalorder %s173, %s174
      %p183 = scmp.eq.s32.totalorder %s32, 0
      %p184 = por %p182, %p183
      %p185 = scmp.ne.s32.totalorder %s173, %s174
      %p186 = scmp.eq.s32.totalorder %s33, 1
      %p187 = por %p185, %p186
      %p189 = scmp.ne.s32.totalorder %s174, %s188
      %p190 = scmp.eq.s32.totalorder %s33, 0
      %p191 = por %p189, %p190
      %s193 = sadd.s32 %s192, 1
      %p196 = scmp.eq.s32.totalorder %s27, 1
      %p197 = scmp.ne.s32.totalorder %s192, %s194
      %p198 = scmp.eq.s32.totalorder %s27, 0
      %p199 = por %p197, %p198
      %p200 = scmp.ne.s32.totalorder %s192, %s194
      %p201 = scmp.eq.s32.totalorder %s32, 1
      %p202 = por %p200, %p201
      %p203 = scmp.ne.s32.totalorder %s194, %s195
      %p204 = scmp.eq.s32.totalorder %s32, 0
      %p205 = por %p203, %p204
      %p206 = scmp.ne.s32.totalorder %s194, %s195
      %p207 = scmp.eq.s32.totalorder %s33, 1
      %p208 = por %p206, %p207
      %p210 = scmp.ne.s32.totalorder %s195, %s209
      %p211 = scmp.eq.s32.totalorder %s33, 0
      %p212 = por %p210, %p211
      %s214 = sadd.s32 %s213, 1
      %p217 = scmp.eq.s32.totalorder %s27, 1
      %p218 = scmp.ne.s32.totalorder %s213, %s215
      %p219 = scmp.eq.s32.totalorder %s27, 0
      %p220 = por %p218, %p219
      %p221 = scmp.ne.s32.totalorder %s213, %s215
      %p222 = scmp.eq.s32.totalorder %s32, 1
      %p223 = por %p221, %p222
      %p224 = scmp.ne.s32.totalorder %s215, %s216
      %p225 = scmp.eq.s32.totalorder %s32, 0
      %p226 = por %p224, %p225
      %p227 = scmp.ne.s32.totalorder %s215, %s216
      %p228 = scmp.eq.s32.totalorder %s33, 1
      %p229 = por %p227, %p228
      %p231 = scmp.ne.s32.totalorder %s216, %s230
      %p232 = scmp.eq.s32.totalorder %s33, 0
      %p233 = por %p231, %p232
      %s235 = sadd.s32 %s234, 1
      %p238 = scmp.eq.s32.totalorder %s27, 1
      %p239 = scmp.ne.s32.totalorder %s234, %s236
      %p240 = scmp.eq.s32.totalorder %s27, 0
      %p241 = por %p239, %p240
      %p242 = scmp.ne.s32.totalorder %s234, %s236
      %p243 = scmp.eq.s32.totalorder %s32, 1
      %p244 = por %p242, %p243
      %p245 = scmp.ne.s32.totalorder %s236, %s237
      %p246 = scmp.eq.s32.totalorder %s32, 0
      %p247 = por %p245, %p246
      %p248 = scmp.ne.s32.totalorder %s236, %s237
      %p249 = scmp.eq.s32.totalorder %s33, 1
      %p250 = por %p248, %p249
      %p252 = scmp.ne.s32.totalorder %s237, %s251
      %p253 = scmp.eq.s32.totalorder %s33, 0
      %p254 = por %p252, %p253
      %s256 = sadd.s32 %s255, 1
      %p259 = scmp.eq.s32.totalorder %s27, 1
      %p260 = scmp.ne.s32.totalorder %s255, %s257
      %p261 = scmp.eq.s32.totalorder %s27, 0
      %p262 = por %p260, %p261
      %p263 = scmp.ne.s32.totalorder %s255, %s257
      %p264 = scmp.eq.s32.totalorder %s32, 1
      %p265 = por %p263, %p264
      %p266 = scmp.ne.s32.totalorder %s257, %s258
      %p267 = scmp.eq.s32.totalorder %s32, 0
      %p268 = por %p266, %p267
      %p269 = scmp.ne.s32.totalorder %s257, %s258
      %p270 = scmp.eq.s32.totalorder %s33, 1
      %p271 = por %p269, %p270
      %p273 = scmp.ne.s32.totalorder %s258, %s272
      %p274 = scmp.eq.s32.totalorder %s33, 0
      %p275 = por %p273, %p274
      %s277 = sadd.s32 %s276, 1
      %p280 = scmp.eq.s32.totalorder %s27, 1
      %p281 = scmp.ne.s32.totalorder %s276, %s278
      %p282 = scmp.eq.s32.totalorder %s27, 0
      %p283 = por %p281, %p282
      %p284 = scmp.ne.s32.totalorder %s276, %s278
      %p285 = scmp.eq.s32.totalorder %s32, 1
      %p286 = por %p284, %p285
      %p287 = scmp.ne.s32.totalorder %s278, %s279
      %p288 = scmp.eq.s32.totalorder %s32, 0
      %p289 = por %p287, %p288
      %p290 = scmp.ne.s32.totalorder %s278, %s279
      %p291 = scmp.eq.s32.totalorder %s33, 1
      %p292 = por %p290, %p291
      %p294 = scmp.ne.s32.totalorder %s279, %s293
      %p295 = scmp.eq.s32.totalorder %s33, 0
      %p296 = por %p294, %p295
      %s298 = sadd.s32 %s297, 1
      %p301 = scmp.eq.s32.totalorder %s27, 1
      %p302 = scmp.ne.s32.totalorder %s297, %s299
      %p303 = scmp.eq.s32.totalorder %s27, 0
      %p304 = por %p302, %p303
      %p305 = scmp.ne.s32.totalorder %s297, %s299
      %p306 = scmp.eq.s32.totalorder %s32, 1
      %p307 = por %p305, %p306
      %p308 = scmp.ne.s32.totalorder %s299, %s300
      %p309 = scmp.eq.s32.totalorder %s32, 0
      %p310 = por %p308, %p309
      %p311 = scmp.ne.s32.totalorder %s299, %s300
      %p312 = scmp.eq.s32.totalorder %s33, 1
      %p313 = por %p311, %p312
      %p315 = scmp.ne.s32.totalorder %s300, %s314
      %p316 = scmp.eq.s32.totalorder %s33, 0
      %p317 = por %p315, %p316
      %s319 = sadd.s32 %s318, 1
      %p322 = scmp.eq.s32.totalorder %s27, 1
      %p323 = scmp.ne.s32.totalorder %s318, %s320
      %p324 = scmp.eq.s32.totalorder %s27, 0
      %p325 = por %p323, %p324
      %p326 = scmp.ne.s32.totalorder %s318, %s320
      %p327 = scmp.eq.s32.totalorder %s32, 1
      %p328 = por %p326, %p327
      %p329 = scmp.ne.s32.totalorder %s320, %s321
      %p330 = scmp.eq.s32.totalorder %s32, 0
      %p331 = por %p329, %p330
      %p332 = scmp.ne.s32.totalorder %s320, %s321
      %p333 = scmp.eq.s32.totalorder %s33, 1
      %p334 = por %p332, %p333
      %p336 = scmp.ne.s32.totalorder %s321, %s335
      %p337 = scmp.eq.s32.totalorder %s33, 0
      %p338 = por %p336, %p337
      %s340 = sadd.s32 %s339, 1
      %p343 = scmp.eq.s32.totalorder %s27, 1
      %p344 = scmp.ne.s32.totalorder %s339, %s341
      %p345 = scmp.eq.s32.totalorder %s27, 0
      %p346 = por %p344, %p345
      %p347 = scmp.ne.s32.totalorder %s339, %s341
      %p348 = scmp.eq.s32.totalorder %s32, 1
      %p349 = por %p347, %p348
      %p350 = scmp.ne.s32.totalorder %s341, %s342
      %p351 = scmp.eq.s32.totalorder %s32, 0
      %p352 = por %p350, %p351
      %p353 = scmp.ne.s32.totalorder %s341, %s342
      %p354 = scmp.eq.s32.totalorder %s33, 1
      %p355 = por %p353, %p354
      %p357 = scmp.ne.s32.totalorder %s342, %s356
      %p358 = scmp.eq.s32.totalorder %s33, 0
      %p359 = por %p357, %p358
      %s361 = sadd.s32 %s360, 1
      %p364 = scmp.eq.s32.totalorder %s27, 1
      %p365 = scmp.ne.s32.totalorder %s360, %s362
      %p366 = scmp.eq.s32.totalorder %s27, 0
      %p367 = por %p365, %p366
      %p368 = scmp.ne.s32.totalorder %s360, %s362
      %p369 = scmp.eq.s32.totalorder %s32, 1
      %p370 = por %p368, %p369
      %p371 = scmp.ne.s32.totalorder %s362, %s363
      %p372 = scmp.eq.s32.totalorder %s32, 0
      %p373 = por %p371, %p372
      %p374 = scmp.ne.s32.totalorder %s362, %s363
      %p375 = scmp.eq.s32.totalorder %s33, 1
      %p376 = por %p374, %p375
      %p378 = scmp.ne.s32.totalorder %s363, %s377
      %p379 = scmp.eq.s32.totalorder %s33, 0
      %p380 = por %p378, %p379
      %s381 = ssub.s32 %s27, %s34
      %p382 = scmp.eq.s32.totalorder %s381, 0
      %s384 = sadd.s32 %s383, 1
      %s385 = scalar_select %p382, %s383, %s384
      %p388 = pneg %p382
      %p389 = scmp.eq.s32.totalorder %s27, 1
      %p390 = por %p388, %p389
      %p391 = scmp.ne.s32.totalorder %s383, %s386
      %p392 = scmp.eq.s32.totalorder %s27, 0
      %p393 = por %p391, %p392
      %p394 = scmp.ne.s32.totalorder %s383, %s386
      %p395 = scmp.eq.s32.totalorder %s32, 1
      %p396 = por %p394, %p395
      %p397 = scmp.ne.s32.totalorder %s386, %s387
      %p398 = scmp.eq.s32.totalorder %s32, 0
      %p399 = por %p397, %p398
      %p400 = scmp.ne.s32.totalorder %s386, %s387
      %p401 = scmp.eq.s32.totalorder %s33, 1
      %p402 = por %p400, %p401
      %p404 = scmp.ne.s32.totalorder %s387, %s403
      %p405 = scmp.eq.s32.totalorder %s33, 0
      %p406 = por %p404, %p405
      %p407 = scmp.le.s32.totalorder 1, %s27
      %p408 = scmp.lt.s32.totalorder %s27, 3
      %p409 = pnand %p407, %p408
      %p410 = pneg %p409
      // Predicated region
      $region9: #{encoder_forward.1} parent=5 // pred_check
        _
      $region10: #{encoder_forward.1} parent=5 // pred_check_branch
        %412 = sbr.rel (%p409) target = $region12
      $region11: #{encoder_forward.1} parent=5 // pred_region
        %s413 = ssub.s32 %s27, 1
        // Predicated region
        $region13: #{encoder_forward.1} parent=11 // pred_check
          %p414 = pneg %p100
        $region14: #{encoder_forward.1} parent=11 // pred_check_branch
          %416 = sbr.rel (%p414) target = $region16
        $region15: #{encoder_forward.1} parent=11 // pred_region
          _
        $region16: #{encoder_forward.1} parent=11 // pred_fallthru
          _
        // Predicated region
        $region17: #{encoder_forward.1} parent=11 // pred_check
          %p417 = pneg %p121
        $region18: #{encoder_forward.1} parent=11 // pred_check_branch
          %419 = sbr.rel (%p417) target = $region20
        $region19: #{encoder_forward.1} parent=11 // pred_region
          _
        $region20: #{encoder_forward.1} parent=11 // pred_fallthru
          _
        // Predicated region
        $region21: #{encoder_forward.1} parent=11 // pred_check
          %p420 = pneg %p142
        $region22: #{encoder_forward.1} parent=11 // pred_check_branch
          %422 = sbr.rel (%p420) target = $region24
        $region23: #{encoder_forward.1} parent=11 // pred_region
          _
        $region24: #{encoder_forward.1} parent=11 // pred_fallthru
          _
        // Predicated region
        $region25: #{encoder_forward.1} parent=11 // pred_check
          %p423 = pneg %p163
        $region26: #{encoder_forward.1} parent=11 // pred_check_branch
          %425 = sbr.rel (%p423) target = $region28
        $region27: #{encoder_forward.1} parent=11 // pred_region
          _
        $region28: #{encoder_forward.1} parent=11 // pred_fallthru
          _
        // Predicated region
        $region29: #{encoder_forward.1} parent=11 // pred_check
          %p426 = pneg %p184
        $region30: #{encoder_forward.1} parent=11 // pred_check_branch
          %428 = sbr.rel (%p426) target = $region32
        $region31: #{encoder_forward.1} parent=11 // pred_region
          _
        $region32: #{encoder_forward.1} parent=11 // pred_fallthru
          _
        // Predicated region
        $region33: #{encoder_forward.1} parent=11 // pred_check
          %p429 = pneg %p205
        $region34: #{encoder_forward.1} parent=11 // pred_check_branch
          %431 = sbr.rel (%p429) target = $region36
        $region35: #{encoder_forward.1} parent=11 // pred_region
          %s433 = ssub.s32 32, 32
          %434 = vsyncadd [#allocation3], %s433
          %s435 = sshll.u32 [#allocation2], 4
          %s436 = int_to_ptr.vmem [resolvable:$true] %s435
          %441 = dma.hbm_to_vmem [thread:$0]  %s7, 32, %s436, [#allocation3], 16, 16, 1
        $region36: #{encoder_forward.1} parent=11 // pred_fallthru
          _
        // Predicated region
        $region37: #{encoder_forward.1} parent=11 // pred_check
          %p442 = pneg %p226
        $region38: #{encoder_forward.1} parent=11 // pred_check_branch
          %444 = sbr.rel (%p442) target = $region40
        $region39: #{encoder_forward.1} parent=11 // pred_region
          _
        $region40: #{encoder_forward.1} parent=11 // pred_fallthru
          _
        // Predicated region
        $region41: #{encoder_forward.1} parent=11 // pred_check
          %p445 = pneg %p247
        $region42: #{encoder_forward.1} parent=11 // pred_check_branch
          %447 = sbr.rel (%p445) target = $region44
        $region43: #{encoder_forward.1} parent=11 // pred_region
          %s449 = ssub.s32 32, 32
          %450 = vsyncadd [#allocation6], %s449
          %s451 = sshll.u32 [#allocation5], 4
          %s452 = int_to_ptr.vmem [resolvable:$true] %s451
          %457 = dma.hbm_to_vmem [thread:$0]  %s9, 32, %s452, [#allocation6], 16, 16, 1
        $region44: #{encoder_forward.1} parent=11 // pred_fallthru
          _
        // Predicated region
        $region45: #{encoder_forward.1} parent=11 // pred_check
          %p458 = pneg %p268
        $region46: #{encoder_forward.1} parent=11 // pred_check_branch
          %460 = sbr.rel (%p458) target = $region48
        $region47: #{encoder_forward.1} parent=11 // pred_region
          _
        $region48: #{encoder_forward.1} parent=11 // pred_fallthru
          _
        // Predicated region
        $region49: #{encoder_forward.1} parent=11 // pred_check
          %p461 = pneg %p289
        $region50: #{encoder_forward.1} parent=11 // pred_check_branch
          %463 = sbr.rel (%p461) target = $region52
        $region51: #{encoder_forward.1} parent=11 // pred_region
          _
        $region52: #{encoder_forward.1} parent=11 // pred_fallthru
          _
        // Predicated region
        $region53: #{encoder_forward.1} parent=11 // pred_check
          %p464 = pneg %p310
        $region54: #{encoder_forward.1} parent=11 // pred_check_branch
          %466 = sbr.rel (%p464) target = $region56
        $region55: #{encoder_forward.1} parent=11 // pred_region
          _
        $region56: #{encoder_forward.1} parent=11 // pred_fallthru
          _
        // Predicated region
        $region57: #{encoder_forward.1} parent=11 // pred_check
          %p467 = pneg %p331
        $region58: #{encoder_forward.1} parent=11 // pred_check_branch
          %469 = sbr.rel (%p467) target = $region60
        $region59: #{encoder_forward.1} parent=11 // pred_region
          _
        $region60: #{encoder_forward.1} parent=11 // pred_fallthru
          _
        // Predicated region
        $region61: #{encoder_forward.1} parent=11 // pred_check
          %p470 = pneg %p352
        $region62: #{encoder_forward.1} parent=11 // pred_check_branch
          %472 = sbr.rel (%p470) target = $region64
        $region63: #{encoder_forward.1} parent=11 // pred_region
          _
        $region64: #{encoder_forward.1} parent=11 // pred_fallthru
          _
        // Predicated region
        $region65: #{encoder_forward.1} parent=11 // pred_check
          %p473 = pneg %p373
        $region66: #{encoder_forward.1} parent=11 // pred_check_branch
          %475 = sbr.rel (%p473) target = $region68
        $region67: #{encoder_forward.1} parent=11 // pred_region
          _
        $region68: #{encoder_forward.1} parent=11 // pred_fallthru
          _
      $region12: #{encoder_forward.1} parent=5 // pred_fallthru
        _
      %p476 = scmp.lt.s32.totalorder %s27, 2
      // Predicated region
      $region69: #{encoder_forward.1} parent=5 // pred_check
        %p477 = pneg %p476
      $region70: #{encoder_forward.1} parent=5 // pred_check_branch
        %479 = sbr.rel (%p477) target = $region72
      $region71: #{encoder_forward.1} parent=5 // pred_region
        // Predicated region
        $region73: #{encoder_forward.1} parent=71 // pred_check
          %p480 = pneg %p47
        $region74: #{encoder_forward.1} parent=71 // pred_check_branch
          %482 = sbr.rel (%p480) target = $region76
        $region75: #{encoder_forward.1} parent=71 // pred_region
          %p483 = scmp.lt.s32.totalorder %s27, 1
          %s484 = scalar_select %p483, %s27, 1
          %s485 = smul.addr %s484, 8
          %s486 = scalar_lea.vmem %s0, %s485
        $region76: #{encoder_forward.1} parent=71 // pred_fallthru
          _
        // Predicated region
        $region77: #{encoder_forward.1} parent=71 // pred_check
          %p487 = pneg %p73
        $region78: #{encoder_forward.1} parent=71 // pred_check_branch
          %489 = sbr.rel (%p487) target = $region80
        $region79: #{encoder_forward.1} parent=71 // pred_region
          %p490 = scmp.lt.s32.totalorder %s27, 1
          %s491 = scalar_select %p490, %s27, 1
          %s492 = smul.addr %s491, 8
          %s493 = scalar_lea.vmem %s1, %s492
        $region80: #{encoder_forward.1} parent=71 // pred_fallthru
          _
      $region72: #{encoder_forward.1} parent=5 // pred_fallthru
        _
      %p494 = scmp.le.s32.totalorder 1, %s27
      %p495 = scmp.lt.s32.totalorder %s27, 3
      %p496 = pnand %p494, %p495
      %p497 = pneg %p496
      // Predicated region
      $region81: #{encoder_forward.1} parent=5 // pred_check
        _
      $region82: #{encoder_forward.1} parent=5 // pred_check_branch
        %499 = sbr.rel (%p496) target = $region84
      $region83: #{encoder_forward.1} parent=5 // pred_region
        %s500 = ssub.s32 %s27, 1
        // Predicated region
        $region85: #{encoder_forward.1} parent=83 // pred_check
          %p501 = pneg %p205
        $region86: #{encoder_forward.1} parent=83 // pred_check_branch
          %503 = sbr.rel (%p501) target = $region88
        $region87: #{encoder_forward.1} parent=83 // pred_region
          %504 = dma.done [#allocation3], 32
        $region88: #{encoder_forward.1} parent=83 // pred_fallthru
          _
        // Predicated region
        $region89: #{encoder_forward.1} parent=83 // pred_check
          %p505 = pneg %p247
        $region90: #{encoder_forward.1} parent=83 // pred_check_branch
          %507 = sbr.rel (%p505) target = $region92
        $region91: #{encoder_forward.1} parent=83 // pred_region
          %508 = dma.done [#allocation6], 32
        $region92: #{encoder_forward.1} parent=83 // pred_fallthru
          _
        %p509 = scmp.lt.s32.totalorder %s32, 1
        %s510 = scalar_select %p509, %s32, 1
        %s511 = smul.addr %s510, 8
        %s512 = scalar_lea.vmem %s0, %s511
        %p513 = pneg %p53
        %p514 = pneg %p50
        %p515 = scmp.lt.s32.totalorder %s32, 1
        %s516 = scalar_select %p515, %s32, 1
        %s517 = smul.addr %s516, 8
        %s518 = scalar_lea.vmem %s1, %s517
        %p519 = pneg %p79
        %p520 = pneg %p76
        %p521 = pneg %p100
        %p522 = pneg %p97
        %p523 = pneg %p121
        %p524 = pneg %p118
        %p525 = pneg %p142
        %p526 = pneg %p139
        %p527 = pneg %p163
        %p528 = pneg %p160
        %p529 = pneg %p184
        %p530 = pneg %p181
        %p531 = pneg %p205
        %p532 = pneg %p202
        %p533 = pneg %p226
        %p534 = pneg %p223
        %p535 = pneg %p247
        %p536 = pneg %p244
        %p537 = pneg %p268
        %p538 = pneg %p265
        %p539 = pneg %p289
        %p540 = pneg %p286
        %p541 = pneg %p310
        %p542 = pneg %p307
        %p543 = pneg %p331
        %p544 = pneg %p328
        %p545 = pneg %p352
        %p546 = pneg %p349
        %p547 = pneg %p373
        %p548 = pneg %p370
        %p549 = pneg %p399
        %p550 = pneg %p396
        %s551 = sand.u32 %s386, 1
        %s552 = scalar_lea.sflag [#allocation4], %s551
        %s553 = sand.u32 %s386, 1
        %s554 = smul.addr %s553, 8
        %s555 = scalar_lea.vmem [#allocation7], %s554
        %p556 = scmp.lt.s32.totalorder %s32, 1
        %s557 = scalar_select %p556, %s32, 1
        %s558 = smul.addr %s557, 8
        %s559 = scalar_lea.vmem %s0, %s558
        %p560 = scmp.lt.s32.totalorder %s32, 1
        %s561 = scalar_select %p560, %s32, 1
        %s562 = smul.addr %s561, 8
        %s563 = scalar_lea.vmem %s1, %s562
        %v564 = vld [vmem:[%s559] sm:$0xff]
        %v565 = vld [vmem:[%s563] sm:$0xff]
        %v566 = vld [vmem:[%s10] sm:$0x1]
        %v567 = vld [vmem:[%s11] sm:$0x1]
        %vm568 = vcmask 261120
        %v569 = vsel %vm568, %v564, 0.0
        %570 = vadd.xlane.f32.xlu0 %v569
        %v571 = vpop.xlane.xlu0 %570
        %v572 = vrcp.pop 32.0
        %v573 = vmul.f32 %v571, %v572
        %v574 = vsub.f32 %v564, %v573
        %v575 = vmul.f32 %v574, %v574
        %v576 = vsel %vm568, %v575, 0.0
        %577 = vadd.xlane.f32.xlu0 %v576
        %v578 = vpop.xlane.xlu0 %577
        %v579 = vmul.f32 %v578, 0.032258064
        %v580 = vrsqrt.pop %v579
        %v581 = vmul.f32 %v579, %v580
        %vm582 = vcmp.eq.f32.partialorder %v579, inf
        %v583 = vsel %vm582, %v579, %v581
        %vm584 = vcmp.eq.f32.partialorder %v579, 0.0
        %v585 = vand.u32 %v579, 2147483648
        %v586 = vsel %vm584, %v585, %v583
        %v588 = vlaneseq
        %v589 = vshrl.u32 %v588, 7
        %v590 = vsub.s32 0, %v589
        %v591 = vrot.slane %v566, %v590
        %v593 = vmul.f32 %v591, %v574
        %v594 = vadd.f32 %v586, 1e-06
        %v595 = vrcp.pop %v594
        %v596 = vmul.f32 %v593, %v595
        %v598 = vlaneseq
        %v599 = vshrl.u32 %v598, 7
        %v600 = vsub.s32 0, %v599
        %v601 = vrot.slane %v567, %v600
        %v603 = vadd.f32 %v596, %v601
        %v604 = vld [vmem:[%s2] sm:$0xff]
        %v605 = vld [vmem:[%s2 + $0x8] sm:$0xff]
        %v606 = vld [vmem:[%s2 + $0x10] sm:$0xff]
        %v607 = vld [vmem:[%s2 + $0x18] sm:$0xff]
        %v608 = vld [vmem:[%s3] sm:$0x1]
        %v609 = vld [vmem:[%s4] sm:$0xff]
        %v610 = vld [vmem:[%s4 + $0x8] sm:$0xff]
        %v611 = vld [vmem:[%s4 + $0x10] sm:$0xff]
        %v612 = vld [vmem:[%s4 + $0x18] sm:$0xff]
        %v613 = vld [vmem:[%s5] sm:$0x1]
        %v615 = vlaneseq
        %v616 = vshrl.u32 %v615, 7
        %v617 = vsub.s32 0, %v616
        %v618 = vrot.slane %v608, %v617
        %v621 = vsel %vm568, %v603, 0
        %623 = vmatprep.subr.mxu0 0.0
        %624 = vmatpush1.msra.mxu0 0.0
        %625 = vmatprep.subr.mxu0 0.0
        %626 = vmatpush1.msra.mxu0 0.0
        %627 = vmatprep.subr.mxu0 0.0
        %628 = vmatpush1.msra.mxu0 0.0
        %629 = vmatprep.subr.mxu0 0.0
        %630 = vmatpush1.msra.mxu0 0.0
        %631 = vmatprep.subr.mxu0 0.0
        %632 = vmatpush1.msra.mxu0 0.0
        %633 = vmatprep.subr.mxu0 0.0
        %634 = vmatpush1.msra.mxu0 0.0
        %635 = vmatprep.subr.mxu0 0.0
        %636 = vmatpush1.msra.mxu0 0.0
        %637 = vmatprep.subr.mxu0 0.0
        %638 = vmatpush1.msra.mxu0 0.0
        %639 = vmatprep.subr.mxu0 0.0
        %640 = vmatpush1.msra.mxu0 0.0
        %641 = vmatprep.subr.mxu0 0.0
        %642 = vmatpush1.msra.mxu0 0.0
        %643 = vmatprep.subr.mxu0 0.0
        %644 = vmatpush1.msra.mxu0 0.0
        %645 = vmatprep.subr.mxu0 0.0
        %646 = vmatpush1.msra.mxu0 0.0
        %647 = vmatprep.subr.mxu0 0.0
        %648 = vmatpush1.msra.mxu0 %v607
        %649 = vmatprep.subr.mxu0 0.0
        %650 = vmatpush1.msra.mxu0 %v606
        %651 = vmatprep.subr.mxu0 0.0
        %652 = vmatpush1.msra.mxu0 %v605
        %653 = vmatprep.subr.mxu0 0.0
        %654 = vmatpush1.msra.mxu0 %v604
        %655 = vmatprep.subr.mxu0 0.0
        %656 = vmatpush2.msra.mxu0 0.0
        %657 = vmatprep.subr.mxu0 0.0
        %658 = vmatpush2.msra.mxu0 0.0
        %659 = vmatprep.subr.mxu0 0.0
        %660 = vmatpush2.msra.mxu0 0.0
        %661 = vmatprep.subr.mxu0 0.0
        %662 = vmatpush2.msra.mxu0 0.0
        %663 = vmatprep.subr.mxu0 0.0
        %664 = vmatpush2.msra.mxu0 0.0
        %665 = vmatprep.subr.mxu0 0.0
        %666 = vmatpush2.msra.mxu0 0.0
        %667 = vmatprep.subr.mxu0 0.0
        %668 = vmatpush2.msra.mxu0 0.0
        %669 = vmatprep.subr.mxu0 0.0
        %670 = vmatpush2.msra.mxu0 0.0
        %671 = vmatprep.subr.mxu0 0.0
        %672 = vmatpush2.msra.mxu0 0.0
        %673 = vmatprep.subr.mxu0 0.0
        %674 = vmatpush2.msra.mxu0 0.0
        %675 = vmatprep.subr.mxu0 0.0
        %676 = vmatpush2.msra.mxu0 0.0
        %677 = vmatprep.subr.mxu0 0.0
        %678 = vmatpush2.msra.mxu0 0.0
        %679 = vmatprep.subr.mxu0 0.0
        %680 = vmatpush2.msra.mxu0 0.0
        %681 = vmatprep.subr.mxu0 0.0
        %682 = vmatpush2.msra.mxu0 0.0
        %683 = vmatprep.subr.mxu0 0.0
        %684 = vmatpush2.msra.mxu0 0.0
        %685 = vmatprep.subr.mxu0 0.0
        %686 = vmatpush2.msra.mxu0 0.0
        %687 = vmatprep.mubr.f32.mxu0 0.0
        %688 = vmatmul.mubr.f32.gmra.mxu0 %v621
        %v689 = vpop.f32.mrf.mxu0
        %v690 = vadd.f32 %v618, %v689
        %v691 = vpop.f32.mrf.mxu0
        %692 = vdwg.mxu0
        %694 = vrot.lane.b32.xlu0 %v690, 96
        %v695 = vpop.permute.xlu0 %694
        %vm696 = vcmask 64512
        %v697 = vsel %vm696, %v690, 0
        %v699 = vsel %vm696, %v695, 0
        %701 = vmatprep.subr.mxu0 0.0
        %702 = vmatpush1.xpose.msra.mxu0 0.0
        %703 = vmatprep.subr.mxu0 0.0
        %704 = vmatpush1.xpose.msra.mxu0 0.0
        %705 = vmatprep.subr.mxu0 0.0
        %706 = vmatpush1.xpose.msra.mxu0 0.0
        %707 = vmatprep.subr.mxu0 0.0
        %708 = vmatpush1.xpose.msra.mxu0 0.0
        %709 = vmatprep.subr.mxu0 0.0
        %710 = vmatpush1.xpose.msra.mxu0 0.0
        %711 = vmatprep.subr.mxu0 0.0
        %712 = vmatpush1.xpose.msra.mxu0 0.0
        %713 = vmatprep.subr.mxu0 0.0
        %714 = vmatpush1.xpose.msra.mxu0 0.0
        %715 = vmatprep.subr.mxu0 0.0
        %716 = vmatpush1.xpose.msra.mxu0 0.0
        %717 = vmatprep.subr.mxu0 0.0
        %718 = vmatpush1.xpose.msra.mxu0 0.0
        %719 = vmatprep.subr.mxu0 0.0
        %720 = vmatpush1.xpose.msra.mxu0 0.0
        %721 = vmatprep.subr.mxu0 0.0
        %722 = vmatpush1.xpose.msra.mxu0 0.0
        %723 = vmatprep.subr.mxu0 0.0
        %724 = vmatpush1.xpose.msra.mxu0 0.0
        %725 = vmatprep.subr.mxu0 0.0
        %726 = vmatpush1.xpose.msra.mxu0 0.0
        %727 = vmatprep.subr.mxu0 0.0
        %728 = vmatpush1.xpose.msra.mxu0 0.0
        %729 = vmatprep.subr.mxu0 0.0
        %730 = vmatpush1.xpose.msra.mxu0 0.0
        %731 = vmatprep.subr.mxu0 0.0
        %732 = vmatpush1.xpose.msra.mxu0 %v699
        %733 = vmatprep.subr.mxu0 0.0
        %734 = vmatpush2.xpose.msra.mxu0 0.0
        %735 = vmatprep.subr.mxu0 0.0
        %736 = vmatpush2.xpose.msra.mxu0 0.0
        %737 = vmatprep.subr.mxu0 0.0
        %738 = vmatpush2.xpose.msra.mxu0 0.0
        %739 = vmatprep.subr.mxu0 0.0
        %740 = vmatpush2.xpose.msra.mxu0 0.0
        %741 = vmatprep.subr.mxu0 0.0
        %742 = vmatpush2.xpose.msra.mxu0 0.0
        %743 = vmatprep.subr.mxu0 0.0
        %744 = vmatpush2.xpose.msra.mxu0 0.0
        %745 = vmatprep.subr.mxu0 0.0
        %746 = vmatpush2.xpose.msra.mxu0 0.0
        %747 = vmatprep.subr.mxu0 0.0
        %748 = vmatpush2.xpose.msra.mxu0 0.0
        %749 = vmatprep.subr.mxu0 0.0
        %750 = vmatpush2.xpose.msra.mxu0 0.0
        %751 = vmatprep.subr.mxu0 0.0
        %752 = vmatpush2.xpose.msra.mxu0 0.0
        %753 = vmatprep.subr.mxu0 0.0
        %754 = vmatpush2.xpose.msra.mxu0 0.0
        %755 = vmatprep.subr.mxu0 0.0
        %756 = vmatpush2.xpose.msra.mxu0 0.0
        %757 = vmatprep.subr.mxu0 0.0
        %758 = vmatpush2.xpose.msra.mxu0 0.0
        %759 = vmatprep.subr.mxu0 0.0
        %760 = vmatpush2.xpose.msra.mxu0 0.0
        %761 = vmatprep.subr.mxu0 0.0
        %762 = vmatpush2.xpose.msra.mxu0 0.0
        %763 = vmatprep.subr.mxu0 0.0
        %764 = vmatpush2.xpose.msra.mxu0 0.0
        %765 = vmatprep.mubr.f32.mxu0 0.0
        %766 = vmatmul.mubr.f32.gmra.mxu0 %v697
        %v767 = vpop.f32.mrf.mxu0
        %v768 = vadd.f32 0.0, %v767
        %v769 = vpop.f32.mrf.mxu0
        %770 = vdwg.mxu0
        %v771 = vmul.f32 %v768, 0.35355338
        %vm772 = vcmp.eq.f32.partialorder %v565, 0.0
        %v773 = vsel %vm772, -1e+09, %v771
        %v774 = vsel %vm696, %v773, -inf
        %775 = vmax.xlane.f32.xlu0 %v774
        %v776 = vpop.xlane.xlu0 %775
        %v777 = vsub.f32 %v773, %v776
        %v778 = vmul.f32 %v777, 1.442695
        %v779 = vpow.pop %v778
        %v780 = vsel %vm696, %v779, 0.0
        %781 = vadd.xlane.f32.xlu0 %v780
        %v782 = vpop.xlane.xlu0 %781
        %v783 = vrcp.pop %v782
        %v784 = vmul.f32 %v779, %v783
        %785 = vrot.lane.b32.xlu0 %v690, 64
        %v786 = vpop.permute.xlu0 %785
        %v789 = vsel %vm696, %v784, 0
        %791 = vmatprep.subr.mxu0 0.0
        %792 = vmatpush1.msra.mxu0 0.0
        %793 = vmatprep.subr.mxu0 0.0
        %794 = vmatpush1.msra.mxu0 0.0
        %795 = vmatprep.subr.mxu0 0.0
        %796 = vmatpush1.msra.mxu0 0.0
        %797 = vmatprep.subr.mxu0 0.0
        %798 = vmatpush1.msra.mxu0 0.0
        %799 = vmatprep.subr.mxu0 0.0
        %800 = vmatpush1.msra.mxu0 0.0
        %801 = vmatprep.subr.mxu0 0.0
        %802 = vmatpush1.msra.mxu0 0.0
        %803 = vmatprep.subr.mxu0 0.0
        %804 = vmatpush1.msra.mxu0 0.0
        %805 = vmatprep.subr.mxu0 0.0
        %806 = vmatpush1.msra.mxu0 0.0
        %807 = vmatprep.subr.mxu0 0.0
        %808 = vmatpush1.msra.mxu0 0.0
        %809 = vmatprep.subr.mxu0 0.0
        %810 = vmatpush1.msra.mxu0 0.0
        %811 = vmatprep.subr.mxu0 0.0
        %812 = vmatpush1.msra.mxu0 0.0
        %813 = vmatprep.subr.mxu0 0.0
        %814 = vmatpush1.msra.mxu0 0.0
        %815 = vmatprep.subr.mxu0 0.0
        %816 = vmatpush1.msra.mxu0 0.0
        %817 = vmatprep.subr.mxu0 0.0
        %818 = vmatpush1.msra.mxu0 0.0
        %819 = vmatprep.subr.mxu0 0.0
        %820 = vmatpush1.msra.mxu0 0.0
        %821 = vmatprep.subr.mxu0 0.0
        %822 = vmatpush1.msra.mxu0 %v786
        %823 = vmatprep.subr.mxu0 0.0
        %824 = vmatpush2.msra.mxu0 0.0
        %825 = vmatprep.subr.mxu0 0.0
        %826 = vmatpush2.msra.mxu0 0.0
        %827 = vmatprep.subr.mxu0 0.0
        %828 = vmatpush2.msra.mxu0 0.0
        %829 = vmatprep.subr.mxu0 0.0
        %830 = vmatpush2.msra.mxu0 0.0
        %831 = vmatprep.subr.mxu0 0.0
        %832 = vmatpush2.msra.mxu0 0.0
        %833 = vmatprep.subr.mxu0 0.0
        %834 = vmatpush2.msra.mxu0 0.0
        %835 = vmatprep.subr.mxu0 0.0
        %836 = vmatpush2.msra.mxu0 0.0
        %837 = vmatprep.subr.mxu0 0.0
        %838 = vmatpush2.msra.mxu0 0.0
        %839 = vmatprep.subr.mxu0 0.0
        %840 = vmatpush2.msra.mxu0 0.0
        %841 = vmatprep.subr.mxu0 0.0
        %842 = vmatpush2.msra.mxu0 0.0
        %843 = vmatprep.subr.mxu0 0.0
        %844 = vmatpush2.msra.mxu0 0.0
        %845 = vmatprep.subr.mxu0 0.0
        %846 = vmatpush2.msra.mxu0 0.0
        %847 = vmatprep.subr.mxu0 0.0
        %848 = vmatpush2.msra.mxu0 0.0
        %849 = vmatprep.subr.mxu0 0.0
        %850 = vmatpush2.msra.mxu0 0.0
        %851 = vmatprep.subr.mxu0 0.0
        %852 = vmatpush2.msra.mxu0 0.0
        %853 = vmatprep.subr.mxu0 0.0
        %854 = vmatpush2.msra.mxu0 0.0
        %855 = vmatprep.mubr.f32.mxu0 0.0
        %856 = vmatmul.mubr.f32.gmra.mxu0 %v789
        %v857 = vpop.f32.mrf.mxu0
        %v858 = vadd.f32 0.0, %v857
        %v859 = vpop.f32.mrf.mxu0
        %860 = vdwg.mxu0
        %861 = vrot.lane.b32.xlu0 %v690, 120
        %v862 = vpop.permute.xlu0 %861
        %863 = vrot.lane.b32.xlu0 %v690, 88
        %v864 = vpop.permute.xlu0 %863
        %v865 = vsel %vm696, %v862, 0
        %v867 = vsel %vm696, %v864, 0
        %869 = vmatprep.subr.mxu0 0.0
        %870 = vmatpush1.xpose.msra.mxu0 0.0
        %871 = vmatprep.subr.mxu0 0.0
        %872 = vmatpush1.xpose.msra.mxu0 0.0
        %873 = vmatprep.subr.mxu0 0.0
        %874 = vmatpush1.xpose.msra.mxu0 0.0
        %875 = vmatprep.subr.mxu0 0.0
        %876 = vmatpush1.xpose.msra.mxu0 0.0
        %877 = vmatprep.subr.mxu0 0.0
        %878 = vmatpush1.xpose.msra.mxu0 0.0
        %879 = vmatprep.subr.mxu0 0.0
        %880 = vmatpush1.xpose.msra.mxu0 0.0
        %881 = vmatprep.subr.mxu0 0.0
        %882 = vmatpush1.xpose.msra.mxu0 0.0
        %883 = vmatprep.subr.mxu0 0.0
        %884 = vmatpush1.xpose.msra.mxu0 0.0
        %885 = vmatprep.subr.mxu0 0.0
        %886 = vmatpush1.xpose.msra.mxu0 0.0
        %887 = vmatprep.subr.mxu0 0.0
        %888 = vmatpush1.xpose.msra.mxu0 0.0
        %889 = vmatprep.subr.mxu0 0.0
        %890 = vmatpush1.xpose.msra.mxu0 0.0
        %891 = vmatprep.subr.mxu0 0.0
        %892 = vmatpush1.xpose.msra.mxu0 0.0
        %893 = vmatprep.subr.mxu0 0.0
        %894 = vmatpush1.xpose.msra.mxu0 0.0
        %895 = vmatprep.subr.mxu0 0.0
        %896 = vmatpush1.xpose.msra.mxu0 0.0
        %897 = vmatprep.subr.mxu0 0.0
        %898 = vmatpush1.xpose.msra.mxu0 0.0
        %899 = vmatprep.subr.mxu0 0.0
        %900 = vmatpush1.xpose.msra.mxu0 %v867
        %901 = vmatprep.subr.mxu0 0.0
        %902 = vmatpush2.xpose.msra.mxu0 0.0
        %903 = vmatprep.subr.mxu0 0.0
        %904 = vmatpush2.xpose.msra.mxu0 0.0
        %905 = vmatprep.subr.mxu0 0.0
        %906 = vmatpush2.xpose.msra.mxu0 0.0
        %907 = vmatprep.subr.mxu0 0.0
        %908 = vmatpush2.xpose.msra.mxu0 0.0
        %909 = vmatprep.subr.mxu0 0.0
        %910 = vmatpush2.xpose.msra.mxu0 0.0
        %911 = vmatprep.subr.mxu0 0.0
        %912 = vmatpush2.xpose.msra.mxu0 0.0
        %913 = vmatprep.subr.mxu0 0.0
        %914 = vmatpush2.xpose.msra.mxu0 0.0
        %915 = vmatprep.subr.mxu0 0.0
        %916 = vmatpush2.xpose.msra.mxu0 0.0
        %917 = vmatprep.subr.mxu0 0.0
        %918 = vmatpush2.xpose.msra.mxu0 0.0
        %919 = vmatprep.subr.mxu0 0.0
        %920 = vmatpush2.xpose.msra.mxu0 0.0
        %921 = vmatprep.subr.mxu0 0.0
        %922 = vmatpush2.xpose.msra.mxu0 0.0
        %923 = vmatprep.subr.mxu0 0.0
        %924 = vmatpush2.xpose.msra.mxu0 0.0
        %925 = vmatprep.subr.mxu0 0.0
        %926 = vmatpush2.xpose.msra.mxu0 0.0
        %927 = vmatprep.subr.mxu0 0.0
        %928 = vmatpush2.xpose.msra.mxu0 0.0
        %929 = vmatprep.subr.mxu0 0.0
        %930 = vmatpush2.xpose.msra.mxu0 0.0
        %931 = vmatprep.subr.mxu0 0.0
        %932 = vmatpush2.xpose.msra.mxu0 0.0
        %933 = vmatprep.mubr.f32.mxu0 0.0
        %934 = vmatmul.mubr.f32.gmra.mxu0 %v865
        %v935 = vpop.f32.mrf.mxu0
        %v936 = vadd.f32 0.0, %v935
        %v937 = vpop.f32.mrf.mxu0
        %938 = vdwg.mxu0
        %v939 = vmul.f32 %v936, 0.35355338
        %v940 = vsel %vm772, -1e+09, %v939
        %v941 = vsel %vm696, %v940, -inf
        %942 = vmax.xlane.f32.xlu0 %v941
        %v943 = vpop.xlane.xlu0 %942
        %v944 = vsub.f32 %v940, %v943
        %v945 = vmul.f32 %v944, 1.442695
        %v946 = vpow.pop %v945
        %v947 = vsel %vm696, %v946, 0.0
        %948 = vadd.xlane.f32.xlu0 %v947
        %v949 = vpop.xlane.xlu0 %948
        %v950 = vrcp.pop %v949
        %v951 = vmul.f32 %v946, %v950
        %952 = vrot.lane.b32.xlu0 %v690, 56
        %v953 = vpop.permute.xlu0 %952
        %v956 = vsel %vm696, %v951, 0
        %958 = vmatprep.subr.mxu0 0.0
        %959 = vmatpush1.msra.mxu0 0.0
        %960 = vmatprep.subr.mxu0 0.0
        %961 = vmatpush1.msra.mxu0 0.0
        %962 = vmatprep.subr.mxu0 0.0
        %963 = vmatpush1.msra.mxu0 0.0
        %964 = vmatprep.subr.mxu0 0.0
        %965 = vmatpush1.msra.mxu0 0.0
        %966 = vmatprep.subr.mxu0 0.0
        %967 = vmatpush1.msra.mxu0 0.0
        %968 = vmatprep.subr.mxu0 0.0
        %969 = vmatpush1.msra.mxu0 0.0
        %970 = vmatprep.subr.mxu0 0.0
        %971 = vmatpush1.msra.mxu0 0.0
        %972 = vmatprep.subr.mxu0 0.0
        %973 = vmatpush1.msra.mxu0 0.0
        %974 = vmatprep.subr.mxu0 0.0
        %975 = vmatpush1.msra.mxu0 0.0
        %976 = vmatprep.subr.mxu0 0.0
        %977 = vmatpush1.msra.mxu0 0.0
        %978 = vmatprep.subr.mxu0 0.0
        %979 = vmatpush1.msra.mxu0 0.0
        %980 = vmatprep.subr.mxu0 0.0
        %981 = vmatpush1.msra.mxu0 0.0
        %982 = vmatprep.subr.mxu0 0.0
        %983 = vmatpush1.msra.mxu0 0.0
        %984 = vmatprep.subr.mxu0 0.0
        %985 = vmatpush1.msra.mxu0 0.0
        %986 = vmatprep.subr.mxu0 0.0
        %987 = vmatpush1.msra.mxu0 0.0
        %988 = vmatprep.subr.mxu0 0.0
        %989 = vmatpush1.msra.mxu0 %v953
        %990 = vmatprep.subr.mxu0 0.0
        %991 = vmatpush2.msra.mxu0 0.0
        %992 = vmatprep.subr.mxu0 0.0
        %993 = vmatpush2.msra.mxu0 0.0
        %994 = vmatprep.subr.mxu0 0.0
        %995 = vmatpush2.msra.mxu0 0.0
        %996 = vmatprep.subr.mxu0 0.0
        %997 = vmatpush2.msra.mxu0 0.0
        %998 = vmatprep.subr.mxu0 0.0
        %999 = vmatpush2.msra.mxu0 0.0
        %1000 = vmatprep.subr.mxu0 0.0
        %1001 = vmatpush2.msra.mxu0 0.0
        %1002 = vmatprep.subr.mxu0 0.0
        %1003 = vmatpush2.msra.mxu0 0.0
        %1004 = vmatprep.subr.mxu0 0.0
        %1005 = vmatpush2.msra.mxu0 0.0
        %1006 = vmatprep.subr.mxu0 0.0
        %1007 = vmatpush2.msra.mxu0 0.0
        %1008 = vmatprep.subr.mxu0 0.0
        %1009 = vmatpush2.msra.mxu0 0.0
        %1010 = vmatprep.subr.mxu0 0.0
        %1011 = vmatpush2.msra.mxu0 0.0
        %1012 = vmatprep.subr.mxu0 0.0
        %1013 = vmatpush2.msra.mxu0 0.0
        %1014 = vmatprep.subr.mxu0 0.0
        %1015 = vmatpush2.msra.mxu0 0.0
        %1016 = vmatprep.subr.mxu0 0.0
        %1017 = vmatpush2.msra.mxu0 0.0
        %1018 = vmatprep.subr.mxu0 0.0
        %1019 = vmatpush2.msra.mxu0 0.0
        %1020 = vmatprep.subr.mxu0 0.0
        %1021 = vmatpush2.msra.mxu0 0.0
        %1022 = vmatprep.mubr.f32.mxu0 0.0
        %1023 = vmatmul.mubr.f32.gmra.mxu0 %v956
        %v1024 = vpop.f32.mrf.mxu0
        %v1025 = vadd.f32 0.0, %v1024
        %v1026 = vpop.f32.mrf.mxu0
        %1027 = vdwg.mxu0
        %v1029 = vsel %vm696, %v1025, 0
        %1031 = vmatprep.subr.mxu0 0.0
        %1032 = vmatpush1.msra.mxu0 0.0
        %1033 = vmatprep.subr.mxu0 0.0
        %1034 = vmatpush1.msra.mxu0 0.0
        %1035 = vmatprep.subr.mxu0 0.0
        %1036 = vmatpush1.msra.mxu0 0.0
        %1037 = vmatprep.subr.mxu0 0.0
        %1038 = vmatpush1.msra.mxu0 0.0
        %1039 = vmatprep.subr.mxu0 0.0
        %1040 = vmatpush1.msra.mxu0 0.0
        %1041 = vmatprep.subr.mxu0 0.0
        %1042 = vmatpush1.msra.mxu0 0.0
        %1043 = vmatprep.subr.mxu0 0.0
        %1044 = vmatpush1.msra.mxu0 0.0
        %1045 = vmatprep.subr.mxu0 0.0
        %1046 = vmatpush1.msra.mxu0 0.0
        %1047 = vmatprep.subr.mxu0 0.0
        %1048 = vmatpush1.msra.mxu0 0.0
        %1049 = vmatprep.subr.mxu0 0.0
        %1050 = vmatpush1.msra.mxu0 0.0
        %1051 = vmatprep.subr.mxu0 0.0
        %1052 = vmatpush1.msra.mxu0 0.0
        %1053 = vmatprep.subr.mxu0 0.0
        %1054 = vmatpush1.msra.mxu0 0.0
        %1055 = vmatprep.subr.mxu0 0.0
        %1056 = vmatpush1.msra.mxu0 0.0
        %1057 = vmatprep.subr.mxu0 0.0
        %1058 = vmatpush1.msra.mxu0 0.0
        %1059 = vmatprep.subr.mxu0 0.0
        %1060 = vmatpush1.msra.mxu0 0.0
        %1061 = vmatprep.subr.mxu0 0.0
        %1062 = vmatpush1.msra.mxu0 %v610
        %1063 = vmatprep.subr.mxu0 0.0
        %1064 = vmatpush2.msra.mxu0 0.0
        %1065 = vmatprep.subr.mxu0 0.0
        %1066 = vmatpush2.msra.mxu0 0.0
        %1067 = vmatprep.subr.mxu0 0.0
        %1068 = vmatpush2.msra.mxu0 0.0
        %1069 = vmatprep.subr.mxu0 0.0
        %1070 = vmatpush2.msra.mxu0 0.0
        %1071 = vmatprep.subr.mxu0 0.0
        %1072 = vmatpush2.msra.mxu0 0.0
        %1073 = vmatprep.subr.mxu0 0.0
        %1074 = vmatpush2.msra.mxu0 0.0
        %1075 = vmatprep.subr.mxu0 0.0
        %1076 = vmatpush2.msra.mxu0 0.0
        %1077 = vmatprep.subr.mxu0 0.0
        %1078 = vmatpush2.msra.mxu0 0.0
        %1079 = vmatprep.subr.mxu0 0.0
        %1080 = vmatpush2.msra.mxu0 0.0
        %1081 = vmatprep.subr.mxu0 0.0
        %1082 = vmatpush2.msra.mxu0 0.0
        %1083 = vmatprep.subr.mxu0 0.0
        %1084 = vmatpush2.msra.mxu0 0.0
        %1085 = vmatprep.subr.mxu0 0.0
        %1086 = vmatpush2.msra.mxu0 0.0
        %1087 = vmatprep.subr.mxu0 0.0
        %1088 = vmatpush2.msra.mxu0 0.0
        %1089 = vmatprep.subr.mxu0 0.0
        %1090 = vmatpush2.msra.mxu0 0.0
        %1091 = vmatprep.subr.mxu0 0.0
        %1092 = vmatpush2.msra.mxu0 0.0
        %1093 = vmatprep.subr.mxu0 0.0
        %1094 = vmatpush2.msra.mxu0 0.0
        %1095 = vmatprep.mubr.f32.mxu0 0.0
        %1096 = vmatmul.mubr.f32.gmra.mxu0 %v1029
        %v1097 = vpop.f32.mrf.mxu0
        %v1098 = vadd.f32 0.0, %v1097
        %v1099 = vpop.f32.mrf.mxu0
        %1100 = vdwg.mxu0
        %v1102 = vsel %vm696, %v858, 0
        %1104 = vmatprep.subr.mxu0 0.0
        %1105 = vmatpush1.msra.mxu0 0.0
        %1106 = vmatprep.subr.mxu0 0.0
        %1107 = vmatpush1.msra.mxu0 0.0
        %1108 = vmatprep.subr.mxu0 0.0
        %1109 = vmatpush1.msra.mxu0 0.0
        %1110 = vmatprep.subr.mxu0 0.0
        %1111 = vmatpush1.msra.mxu0 0.0
        %1112 = vmatprep.subr.mxu0 0.0
        %1113 = vmatpush1.msra.mxu0 0.0
        %1114 = vmatprep.subr.mxu0 0.0
        %1115 = vmatpush1.msra.mxu0 0.0
        %1116 = vmatprep.subr.mxu0 0.0
        %1117 = vmatpush1.msra.mxu0 0.0
        %1118 = vmatprep.subr.mxu0 0.0
        %1119 = vmatpush1.msra.mxu0 0.0
        %1120 = vmatprep.subr.mxu0 0.0
        %1121 = vmatpush1.msra.mxu0 0.0
        %1122 = vmatprep.subr.mxu0 0.0
        %1123 = vmatpush1.msra.mxu0 0.0
        %1124 = vmatprep.subr.mxu0 0.0
        %1125 = vmatpush1.msra.mxu0 0.0
        %1126 = vmatprep.subr.mxu0 0.0
        %1127 = vmatpush1.msra.mxu0 0.0
        %1128 = vmatprep.subr.mxu0 0.0
        %1129 = vmatpush1.msra.mxu0 0.0
        %1130 = vmatprep.subr.mxu0 0.0
        %1131 = vmatpush1.msra.mxu0 0.0
        %1132 = vmatprep.subr.mxu0 0.0
        %1133 = vmatpush1.msra.mxu0 0.0
        %1134 = vmatprep.subr.mxu0 0.0
        %1135 = vmatpush1.msra.mxu0 %v609
        %1136 = vmatprep.subr.mxu0 0.0
        %1137 = vmatpush2.msra.mxu0 0.0
        %1138 = vmatprep.subr.mxu0 0.0
        %1139 = vmatpush2.msra.mxu0 0.0
        %1140 = vmatprep.subr.mxu0 0.0
        %1141 = vmatpush2.msra.mxu0 0.0
        %1142 = vmatprep.subr.mxu0 0.0
        %1143 = vmatpush2.msra.mxu0 0.0
        %1144 = vmatprep.subr.mxu0 0.0
        %1145 = vmatpush2.msra.mxu0 0.0
        %1146 = vmatprep.subr.mxu0 0.0
        %1147 = vmatpush2.msra.mxu0 0.0
        %1148 = vmatprep.subr.mxu0 0.0
        %1149 = vmatpush2.msra.mxu0 0.0
        %1150 = vmatprep.subr.mxu0 0.0
        %1151 = vmatpush2.msra.mxu0 0.0
        %1152 = vmatprep.subr.mxu0 0.0
        %1153 = vmatpush2.msra.mxu0 0.0
        %1154 = vmatprep.subr.mxu0 0.0
        %1155 = vmatpush2.msra.mxu0 0.0
        %1156 = vmatprep.subr.mxu0 0.0
        %1157 = vmatpush2.msra.mxu0 0.0
        %1158 = vmatprep.subr.mxu0 0.0
        %1159 = vmatpush2.msra.mxu0 0.0
        %1160 = vmatprep.subr.mxu0 0.0
        %1161 = vmatpush2.msra.mxu0 0.0
        %1162 = vmatprep.subr.mxu0 0.0
        %1163 = vmatpush2.msra.mxu0 0.0
        %1164 = vmatprep.subr.mxu0 0.0
        %1165 = vmatpush2.msra.mxu0 0.0
        %1166 = vmatprep.subr.mxu0 0.0
        %1167 = vmatpush2.msra.mxu0 0.0
        %1168 = vmatprep.mubr.f32.mxu0 0.0
        %1169 = vmatmul.mubr.f32.gmra.mxu0 %v1102
        %v1170 = vpop.f32.mrf.mxu0
        %v1171 = vadd.f32 %v1098, %v1170
        %v1172 = vpop.f32.mrf.mxu0
        %1173 = vdwg.mxu0
        %1174 = vrot.lane.b32.xlu0 %v690, 112
        %v1175 = vpop.permute.xlu0 %1174
        %1176 = vrot.lane.b32.xlu0 %v690, 80
        %v1177 = vpop.permute.xlu0 %1176
        %v1178 = vsel %vm696, %v1175, 0
        %v1180 = vsel %vm696, %v1177, 0
        %1182 = vmatprep.subr.mxu0 0.0
        %1183 = vmatpush1.xpose.msra.mxu0 0.0
        %1184 = vmatprep.subr.mxu0 0.0
        %1185 = vmatpush1.xpose.msra.mxu0 0.0
        %1186 = vmatprep.subr.mxu0 0.0
        %1187 = vmatpush1.xpose.msra.mxu0 0.0
        %1188 = vmatprep.subr.mxu0 0.0
        %1189 = vmatpush1.xpose.msra.mxu0 0.0
        %1190 = vmatprep.subr.mxu0 0.0
        %1191 = vmatpush1.xpose.msra.mxu0 0.0
        %1192 = vmatprep.subr.mxu0 0.0
        %1193 = vmatpush1.xpose.msra.mxu0 0.0
        %1194 = vmatprep.subr.mxu0 0.0
        %1195 = vmatpush1.xpose.msra.mxu0 0.0
        %1196 = vmatprep.subr.mxu0 0.0
        %1197 = vmatpush1.xpose.msra.mxu0 0.0
        %1198 = vmatprep.subr.mxu0 0.0
        %1199 = vmatpush1.xpose.msra.mxu0 0.0
        %1200 = vmatprep.subr.mxu0 0.0
        %1201 = vmatpush1.xpose.msra.mxu0 0.0
        %1202 = vmatprep.subr.mxu0 0.0
        %1203 = vmatpush1.xpose.msra.mxu0 0.0
        %1204 = vmatprep.subr.mxu0 0.0
        %1205 = vmatpush1.xpose.msra.mxu0 0.0
        %1206 = vmatprep.subr.mxu0 0.0
        %1207 = vmatpush1.xpose.msra.mxu0 0.0
        %1208 = vmatprep.subr.mxu0 0.0
        %1209 = vmatpush1.xpose.msra.mxu0 0.0
        %1210 = vmatprep.subr.mxu0 0.0
        %1211 = vmatpush1.xpose.msra.mxu0 0.0
        %1212 = vmatprep.subr.mxu0 0.0
        %1213 = vmatpush1.xpose.msra.mxu0 %v1180
        %1214 = vmatprep.subr.mxu0 0.0
        %1215 = vmatpush2.xpose.msra.mxu0 0.0
        %1216 = vmatprep.subr.mxu0 0.0
        %1217 = vmatpush2.xpose.msra.mxu0 0.0
        %1218 = vmatprep.subr.mxu0 0.0
        %1219 = vmatpush2.xpose.msra.mxu0 0.0
        %1220 = vmatprep.subr.mxu0 0.0
        %1221 = vmatpush2.xpose.msra.mxu0 0.0
        %1222 = vmatprep.subr.mxu0 0.0
        %1223 = vmatpush2.xpose.msra.mxu0 0.0
        %1224 = vmatprep.subr.mxu0 0.0
        %1225 = vmatpush2.xpose.msra.mxu0 0.0
        %1226 = vmatprep.subr.mxu0 0.0
        %1227 = vmatpush2.xpose.msra.mxu0 0.0
        %1228 = vmatprep.subr.mxu0 0.0
        %1229 = vmatpush2.xpose.msra.mxu0 0.0
        %1230 = vmatprep.subr.mxu0 0.0
        %1231 = vmatpush2.xpose.msra.mxu0 0.0
        %1232 = vmatprep.subr.mxu0 0.0
        %1233 = vmatpush2.xpose.msra.mxu0 0.0
        %1234 = vmatprep.subr.mxu0 0.0
        %1235 = vmatpush2.xpose.msra.mxu0 0.0
        %1236 = vmatprep.subr.mxu0 0.0
        %1237 = vmatpush2.xpose.msra.mxu0 0.0
        %1238 = vmatprep.subr.mxu0 0.0
        %1239 = vmatpush2.xpose.msra.mxu0 0.0
        %1240 = vmatprep.subr.mxu0 0.0
        %1241 = vmatpush2.xpose.msra.mxu0 0.0
        %1242 = vmatprep.subr.mxu0 0.0
        %1243 = vmatpush2.xpose.msra.mxu0 0.0
        %1244 = vmatprep.subr.mxu0 0.0
        %1245 = vmatpush2.xpose.msra.mxu0 0.0
        %1246 = vmatprep.mubr.f32.mxu0 0.0
        %1247 = vmatmul.mubr.f32.gmra.mxu0 %v1178
        %v1248 = vpop.f32.mrf.mxu0
        %v1249 = vadd.f32 0.0, %v1248
        %v1250 = vpop.f32.mrf.mxu0
        %1251 = vdwg.mxu0
        %v1252 = vmul.f32 %v1249, 0.35355338
        %v1253 = vsel %vm772, -1e+09, %v1252
        %v1254 = vsel %vm696, %v1253, -inf
        %1255 = vmax.xlane.f32.xlu0 %v1254
        %v1256 = vpop.xlane.xlu0 %1255
        %v1257 = vsub.f32 %v1253, %v1256
        %v1258 = vmul.f32 %v1257, 1.442695
        %v1259 = vpow.pop %v1258
        %v1260 = vsel %vm696, %v1259, 0.0
        %1261 = vadd.xlane.f32.xlu0 %v1260
        %v1262 = vpop.xlane.xlu0 %1261
        %v1263 = vrcp.pop %v1262
        %v1264 = vmul.f32 %v1259, %v1263
        %1265 = vrot.lane.b32.xlu0 %v690, 48
        %v1266 = vpop.permute.xlu0 %1265
        %v1269 = vsel %vm696, %v1264, 0
        %1271 = vmatprep.subr.mxu0 0.0
        %1272 = vmatpush1.msra.mxu0 0.0
        %1273 = vmatprep.subr.mxu0 0.0
        %1274 = vmatpush1.msra.mxu0 0.0
        %1275 = vmatprep.subr.mxu0 0.0
        %1276 = vmatpush1.msra.mxu0 0.0
        %1277 = vmatprep.subr.mxu0 0.0
        %1278 = vmatpush1.msra.mxu0 0.0
        %1279 = vmatprep.subr.mxu0 0.0
        %1280 = vmatpush1.msra.mxu0 0.0
        %1281 = vmatprep.subr.mxu0 0.0
        %1282 = vmatpush1.msra.mxu0 0.0
        %1283 = vmatprep.subr.mxu0 0.0
        %1284 = vmatpush1.msra.mxu0 0.0
        %1285 = vmatprep.subr.mxu0 0.0
        %1286 = vmatpush1.msra.mxu0 0.0
        %1287 = vmatprep.subr.mxu0 0.0
        %1288 = vmatpush1.msra.mxu0 0.0
        %1289 = vmatprep.subr.mxu0 0.0
        %1290 = vmatpush1.msra.mxu0 0.0
        %1291 = vmatprep.subr.mxu0 0.0
        %1292 = vmatpush1.msra.mxu0 0.0
        %1293 = vmatprep.subr.mxu0 0.0
        %1294 = vmatpush1.msra.mxu0 0.0
        %1295 = vmatprep.subr.mxu0 0.0
        %1296 = vmatpush1.msra.mxu0 0.0
        %1297 = vmatprep.subr.mxu0 0.0
        %1298 = vmatpush1.msra.mxu0 0.0
        %1299 = vmatprep.subr.mxu0 0.0
        %1300 = vmatpush1.msra.mxu0 0.0
        %1301 = vmatprep.subr.mxu0 0.0
        %1302 = vmatpush1.msra.mxu0 %v1266
        %1303 = vmatprep.subr.mxu0 0.0
        %1304 = vmatpush2.msra.mxu0 0.0
        %1305 = vmatprep.subr.mxu0 0.0
        %1306 = vmatpush2.msra.mxu0 0.0
        %1307 = vmatprep.subr.mxu0 0.0
        %1308 = vmatpush2.msra.mxu0 0.0
        %1309 = vmatprep.subr.mxu0 0.0
        %1310 = vmatpush2.msra.mxu0 0.0
        %1311 = vmatprep.subr.mxu0 0.0
        %1312 = vmatpush2.msra.mxu0 0.0
        %1313 = vmatprep.subr.mxu0 0.0
        %1314 = vmatpush2.msra.mxu0 0.0
        %1315 = vmatprep.subr.mxu0 0.0
        %1316 = vmatpush2.msra.mxu0 0.0
        %1317 = vmatprep.subr.mxu0 0.0
        %1318 = vmatpush2.msra.mxu0 0.0
        %1319 = vmatprep.subr.mxu0 0.0
        %1320 = vmatpush2.msra.mxu0 0.0
        %1321 = vmatprep.subr.mxu0 0.0
        %1322 = vmatpush2.msra.mxu0 0.0
        %1323 = vmatprep.subr.mxu0 0.0
        %1324 = vmatpush2.msra.mxu0 0.0
        %1325 = vmatprep.subr.mxu0 0.0
        %1326 = vmatpush2.msra.mxu0 0.0
        %1327 = vmatprep.subr.mxu0 0.0
        %1328 = vmatpush2.msra.mxu0 0.0
        %1329 = vmatprep.subr.mxu0 0.0
        %1330 = vmatpush2.msra.mxu0 0.0
        %1331 = vmatprep.subr.mxu0 0.0
        %1332 = vmatpush2.msra.mxu0 0.0
        %1333 = vmatprep.subr.mxu0 0.0
        %1334 = vmatpush2.msra.mxu0 0.0
        %1335 = vmatprep.mubr.f32.mxu0 0.0
        %1336 = vmatmul.mubr.f32.gmra.mxu0 %v1269
        %v1337 = vpop.f32.mrf.mxu0
        %v1338 = vadd.f32 0.0, %v1337
        %v1339 = vpop.f32.mrf.mxu0
        %1340 = vdwg.mxu0
        %v1342 = vsel %vm696, %v1338, 0
        %1344 = vmatprep.subr.mxu0 0.0
        %1345 = vmatpush1.msra.mxu0 0.0
        %1346 = vmatprep.subr.mxu0 0.0
        %1347 = vmatpush1.msra.mxu0 0.0
        %1348 = vmatprep.subr.mxu0 0.0
        %1349 = vmatpush1.msra.mxu0 0.0
        %1350 = vmatprep.subr.mxu0 0.0
        %1351 = vmatpush1.msra.mxu0 0.0
        %1352 = vmatprep.subr.mxu0 0.0
        %1353 = vmatpush1.msra.mxu0 0.0
        %1354 = vmatprep.subr.mxu0 0.0
        %1355 = vmatpush1.msra.mxu0 0.0
        %1356 = vmatprep.subr.mxu0 0.0
        %1357 = vmatpush1.msra.mxu0 0.0
        %1358 = vmatprep.subr.mxu0 0.0
        %1359 = vmatpush1.msra.mxu0 0.0
        %1360 = vmatprep.subr.mxu0 0.0
        %1361 = vmatpush1.msra.mxu0 0.0
        %1362 = vmatprep.subr.mxu0 0.0
        %1363 = vmatpush1.msra.mxu0 0.0
        %1364 = vmatprep.subr.mxu0 0.0
        %1365 = vmatpush1.msra.mxu0 0.0
        %1366 = vmatprep.subr.mxu0 0.0
        %1367 = vmatpush1.msra.mxu0 0.0
        %1368 = vmatprep.subr.mxu0 0.0
        %1369 = vmatpush1.msra.mxu0 0.0
        %1370 = vmatprep.subr.mxu0 0.0
        %1371 = vmatpush1.msra.mxu0 0.0
        %1372 = vmatprep.subr.mxu0 0.0
        %1373 = vmatpush1.msra.mxu0 0.0
        %1374 = vmatprep.subr.mxu0 0.0
        %1375 = vmatpush1.msra.mxu0 %v611
        %1376 = vmatprep.subr.mxu0 0.0
        %1377 = vmatpush2.msra.mxu0 0.0
        %1378 = vmatprep.subr.mxu0 0.0
        %1379 = vmatpush2.msra.mxu0 0.0
        %1380 = vmatprep.subr.mxu0 0.0
        %1381 = vmatpush2.msra.mxu0 0.0
        %1382 = vmatprep.subr.mxu0 0.0
        %1383 = vmatpush2.msra.mxu0 0.0
        %1384 = vmatprep.subr.mxu0 0.0
        %1385 = vmatpush2.msra.mxu0 0.0
        %1386 = vmatprep.subr.mxu0 0.0
        %1387 = vmatpush2.msra.mxu0 0.0
        %1388 = vmatprep.subr.mxu0 0.0
        %1389 = vmatpush2.msra.mxu0 0.0
        %1390 = vmatprep.subr.mxu0 0.0
        %1391 = vmatpush2.msra.mxu0 0.0
        %1392 = vmatprep.subr.mxu0 0.0
        %1393 = vmatpush2.msra.mxu0 0.0
        %1394 = vmatprep.subr.mxu0 0.0
        %1395 = vmatpush2.msra.mxu0 0.0
        %1396 = vmatprep.subr.mxu0 0.0
        %1397 = vmatpush2.msra.mxu0 0.0
        %1398 = vmatprep.subr.mxu0 0.0
        %1399 = vmatpush2.msra.mxu0 0.0
        %1400 = vmatprep.subr.mxu0 0.0
        %1401 = vmatpush2.msra.mxu0 0.0
        %1402 = vmatprep.subr.mxu0 0.0
        %1403 = vmatpush2.msra.mxu0 0.0
        %1404 = vmatprep.subr.mxu0 0.0
        %1405 = vmatpush2.msra.mxu0 0.0
        %1406 = vmatprep.subr.mxu0 0.0
        %1407 = vmatpush2.msra.mxu0 0.0
        %1408 = vmatprep.mubr.f32.mxu0 0.0
        %1409 = vmatmul.mubr.f32.gmra.mxu0 %v1342
        %v1410 = vpop.f32.mrf.mxu0
        %v1411 = vadd.f32 0.0, %v1410
        %v1412 = vpop.f32.mrf.mxu0
        %1413 = vdwg.mxu0
        %v1414 = vadd.f32 %v1171, %v1411
        %1415 = vrot.lane.b32.xlu0 %v690, 104
        %v1416 = vpop.permute.xlu0 %1415
        %1417 = vrot.lane.b32.xlu0 %v690, 72
        %v1418 = vpop.permute.xlu0 %1417
        %v1419 = vsel %vm696, %v1416, 0
        %v1421 = vsel %vm696, %v1418, 0
        %1423 = vmatprep.subr.mxu0 0.0
        %1424 = vmatpush1.xpose.msra.mxu0 0.0
        %1425 = vmatprep.subr.mxu0 0.0
        %1426 = vmatpush1.xpose.msra.mxu0 0.0
        %1427 = vmatprep.subr.mxu0 0.0
        %1428 = vmatpush1.xpose.msra.mxu0 0.0
        %1429 = vmatprep.subr.mxu0 0.0
        %1430 = vmatpush1.xpose.msra.mxu0 0.0
        %1431 = vmatprep.subr.mxu0 0.0
        %1432 = vmatpush1.xpose.msra.mxu0 0.0
        %1433 = vmatprep.subr.mxu0 0.0
        %1434 = vmatpush1.xpose.msra.mxu0 0.0
        %1435 = vmatprep.subr.mxu0 0.0
        %1436 = vmatpush1.xpose.msra.mxu0 0.0
        %1437 = vmatprep.subr.mxu0 0.0
        %1438 = vmatpush1.xpose.msra.mxu0 0.0
        %1439 = vmatprep.subr.mxu0 0.0
        %1440 = vmatpush1.xpose.msra.mxu0 0.0
        %1441 = vmatprep.subr.mxu0 0.0
        %1442 = vmatpush1.xpose.msra.mxu0 0.0
        %1443 = vmatprep.subr.mxu0 0.0
        %1444 = vmatpush1.xpose.msra.mxu0 0.0
        %1445 = vmatprep.subr.mxu0 0.0
        %1446 = vmatpush1.xpose.msra.mxu0 0.0
        %1447 = vmatprep.subr.mxu0 0.0
        %1448 = vmatpush1.xpose.msra.mxu0 0.0
        %1449 = vmatprep.subr.mxu0 0.0
        %1450 = vmatpush1.xpose.msra.mxu0 0.0
        %1451 = vmatprep.subr.mxu0 0.0
        %1452 = vmatpush1.xpose.msra.mxu0 0.0
        %1453 = vmatprep.subr.mxu0 0.0
        %1454 = vmatpush1.xpose.msra.mxu0 %v1421
        %1455 = vmatprep.subr.mxu0 0.0
        %1456 = vmatpush2.xpose.msra.mxu0 0.0
        %1457 = vmatprep.subr.mxu0 0.0
        %1458 = vmatpush2.xpose.msra.mxu0 0.0
        %1459 = vmatprep.subr.mxu0 0.0
        %1460 = vmatpush2.xpose.msra.mxu0 0.0
        %1461 = vmatprep.subr.mxu0 0.0
        %1462 = vmatpush2.xpose.msra.mxu0 0.0
        %1463 = vmatprep.subr.mxu0 0.0
        %1464 = vmatpush2.xpose.msra.mxu0 0.0
        %1465 = vmatprep.subr.mxu0 0.0
        %1466 = vmatpush2.xpose.msra.mxu0 0.0
        %1467 = vmatprep.subr.mxu0 0.0
        %1468 = vmatpush2.xpose.msra.mxu0 0.0
        %1469 = vmatprep.subr.mxu0 0.0
        %1470 = vmatpush2.xpose.msra.mxu0 0.0
        %1471 = vmatprep.subr.mxu0 0.0
        %1472 = vmatpush2.xpose.msra.mxu0 0.0
        %1473 = vmatprep.subr.mxu0 0.0
        %1474 = vmatpush2.xpose.msra.mxu0 0.0
        %1475 = vmatprep.subr.mxu0 0.0
        %1476 = vmatpush2.xpose.msra.mxu0 0.0
        %1477 = vmatprep.subr.mxu0 0.0
        %1478 = vmatpush2.xpose.msra.mxu0 0.0
        %1479 = vmatprep.subr.mxu0 0.0
        %1480 = vmatpush2.xpose.msra.mxu0 0.0
        %1481 = vmatprep.subr.mxu0 0.0
        %1482 = vmatpush2.xpose.msra.mxu0 0.0
        %1483 = vmatprep.subr.mxu0 0.0
        %1484 = vmatpush2.xpose.msra.mxu0 0.0
        %1485 = vmatprep.subr.mxu0 0.0
        %1486 = vmatpush2.xpose.msra.mxu0 0.0
        %1487 = vmatprep.mubr.f32.mxu0 0.0
        %1488 = vmatmul.mubr.f32.gmra.mxu0 %v1419
        %v1489 = vpop.f32.mrf.mxu0
        %v1490 = vadd.f32 0.0, %v1489
        %v1491 = vpop.f32.mrf.mxu0
        %1492 = vdwg.mxu0
        %v1493 = vmul.f32 %v1490, 0.35355338
        %v1494 = vsel %vm772, -1e+09, %v1493
        %v1495 = vsel %vm696, %v1494, -inf
        %1496 = vmax.xlane.f32.xlu0 %v1495
        %v1497 = vpop.xlane.xlu0 %1496
        %v1498 = vsub.f32 %v1494, %v1497
        %v1499 = vmul.f32 %v1498, 1.442695
        %v1500 = vpow.pop %v1499
        %v1501 = vsel %vm696, %v1500, 0.0
        %1502 = vadd.xlane.f32.xlu0 %v1501
        %v1503 = vpop.xlane.xlu0 %1502
        %v1504 = vrcp.pop %v1503
        %v1505 = vmul.f32 %v1500, %v1504
        %1506 = vrot.lane.b32.xlu0 %v690, 40
        %v1507 = vpop.permute.xlu0 %1506
        %v1510 = vsel %vm696, %v1505, 0
        %1512 = vmatprep.subr.mxu0 0.0
        %1513 = vmatpush1.msra.mxu0 0.0
        %1514 = vmatprep.subr.mxu0 0.0
        %1515 = vmatpush1.msra.mxu0 0.0
        %1516 = vmatprep.subr.mxu0 0.0
        %1517 = vmatpush1.msra.mxu0 0.0
        %1518 = vmatprep.subr.mxu0 0.0
        %1519 = vmatpush1.msra.mxu0 0.0
        %1520 = vmatprep.subr.mxu0 0.0
        %1521 = vmatpush1.msra.mxu0 0.0
        %1522 = vmatprep.subr.mxu0 0.0
        %1523 = vmatpush1.msra.mxu0 0.0
        %1524 = vmatprep.subr.mxu0 0.0
        %1525 = vmatpush1.msra.mxu0 0.0
        %1526 = vmatprep.subr.mxu0 0.0
        %1527 = vmatpush1.msra.mxu0 0.0
        %1528 = vmatprep.subr.mxu0 0.0
        %1529 = vmatpush1.msra.mxu0 0.0
        %1530 = vmatprep.subr.mxu0 0.0
        %1531 = vmatpush1.msra.mxu0 0.0
        %1532 = vmatprep.subr.mxu0 0.0
        %1533 = vmatpush1.msra.mxu0 0.0
        %1534 = vmatprep.subr.mxu0 0.0
        %1535 = vmatpush1.msra.mxu0 0.0
        %1536 = vmatprep.subr.mxu0 0.0
        %1537 = vmatpush1.msra.mxu0 0.0
        %1538 = vmatprep.subr.mxu0 0.0
        %1539 = vmatpush1.msra.mxu0 0.0
        %1540 = vmatprep.subr.mxu0 0.0
        %1541 = vmatpush1.msra.mxu0 0.0
        %1542 = vmatprep.subr.mxu0 0.0
        %1543 = vmatpush1.msra.mxu0 %v1507
        %1544 = vmatprep.subr.mxu0 0.0
        %1545 = vmatpush2.msra.mxu0 0.0
        %1546 = vmatprep.subr.mxu0 0.0
        %1547 = vmatpush2.msra.mxu0 0.0
        %1548 = vmatprep.subr.mxu0 0.0
        %1549 = vmatpush2.msra.mxu0 0.0
        %1550 = vmatprep.subr.mxu0 0.0
        %1551 = vmatpush2.msra.mxu0 0.0
        %1552 = vmatprep.subr.mxu0 0.0
        %1553 = vmatpush2.msra.mxu0 0.0
        %1554 = vmatprep.subr.mxu0 0.0
        %1555 = vmatpush2.msra.mxu0 0.0
        %1556 = vmatprep.subr.mxu0 0.0
        %1557 = vmatpush2.msra.mxu0 0.0
        %1558 = vmatprep.subr.mxu0 0.0
        %1559 = vmatpush2.msra.mxu0 0.0
        %1560 = vmatprep.subr.mxu0 0.0
        %1561 = vmatpush2.msra.mxu0 0.0
        %1562 = vmatprep.subr.mxu0 0.0
        %1563 = vmatpush2.msra.mxu0 0.0
        %1564 = vmatprep.subr.mxu0 0.0
        %1565 = vmatpush2.msra.mxu0 0.0
        %1566 = vmatprep.subr.mxu0 0.0
        %1567 = vmatpush2.msra.mxu0 0.0
        %1568 = vmatprep.subr.mxu0 0.0
        %1569 = vmatpush2.msra.mxu0 0.0
        %1570 = vmatprep.subr.mxu0 0.0
        %1571 = vmatpush2.msra.mxu0 0.0
        %1572 = vmatprep.subr.mxu0 0.0
        %1573 = vmatpush2.msra.mxu0 0.0
        %1574 = vmatprep.subr.mxu0 0.0
        %1575 = vmatpush2.msra.mxu0 0.0
        %1576 = vmatprep.mubr.f32.mxu0 0.0
        %1577 = vmatmul.mubr.f32.gmra.mxu0 %v1510
        %v1578 = vpop.f32.mrf.mxu0
        %v1579 = vadd.f32 0.0, %v1578
        %v1580 = vpop.f32.mrf.mxu0
        %1581 = vdwg.mxu0
        %v1583 = vsel %vm696, %v1579, 0
        %1585 = vmatprep.subr.mxu0 0.0
        %1586 = vmatpush1.msra.mxu0 0.0
        %1587 = vmatprep.subr.mxu0 0.0
        %1588 = vmatpush1.msra.mxu0 0.0
        %1589 = vmatprep.subr.mxu0 0.0
        %1590 = vmatpush1.msra.mxu0 0.0
        %1591 = vmatprep.subr.mxu0 0.0
        %1592 = vmatpush1.msra.mxu0 0.0
        %1593 = vmatprep.subr.mxu0 0.0
        %1594 = vmatpush1.msra.mxu0 0.0
        %1595 = vmatprep.subr.mxu0 0.0
        %1596 = vmatpush1.msra.mxu0 0.0
        %1597 = vmatprep.subr.mxu0 0.0
        %1598 = vmatpush1.msra.mxu0 0.0
        %1599 = vmatprep.subr.mxu0 0.0
        %1600 = vmatpush1.msra.mxu0 0.0
        %1601 = vmatprep.subr.mxu0 0.0
        %1602 = vmatpush1.msra.mxu0 0.0
        %1603 = vmatprep.subr.mxu0 0.0
        %1604 = vmatpush1.msra.mxu0 0.0
        %1605 = vmatprep.subr.mxu0 0.0
        %1606 = vmatpush1.msra.mxu0 0.0
        %1607 = vmatprep.subr.mxu0 0.0
        %1608 = vmatpush1.msra.mxu0 0.0
        %1609 = vmatprep.subr.mxu0 0.0
        %1610 = vmatpush1.msra.mxu0 0.0
        %1611 = vmatprep.subr.mxu0 0.0
        %1612 = vmatpush1.msra.mxu0 0.0
        %1613 = vmatprep.subr.mxu0 0.0
        %1614 = vmatpush1.msra.mxu0 0.0
        %1615 = vmatprep.subr.mxu0 0.0
        %1616 = vmatpush1.msra.mxu0 %v612
        %1617 = vmatprep.subr.mxu0 0.0
        %1618 = vmatpush2.msra.mxu0 0.0
        %1619 = vmatprep.subr.mxu0 0.0
        %1620 = vmatpush2.msra.mxu0 0.0
        %1621 = vmatprep.subr.mxu0 0.0
        %1622 = vmatpush2.msra.mxu0 0.0
        %1623 = vmatprep.subr.mxu0 0.0
        %1624 = vmatpush2.msra.mxu0 0.0
        %1625 = vmatprep.subr.mxu0 0.0
        %1626 = vmatpush2.msra.mxu0 0.0
        %1627 = vmatprep.subr.mxu0 0.0
        %1628 = vmatpush2.msra.mxu0 0.0
        %1629 = vmatprep.subr.mxu0 0.0
        %1630 = vmatpush2.msra.mxu0 0.0
        %1631 = vmatprep.subr.mxu0 0.0
        %1632 = vmatpush2.msra.mxu0 0.0
        %1633 = vmatprep.subr.mxu0 0.0
        %1634 = vmatpush2.msra.mxu0 0.0
        %1635 = vmatprep.subr.mxu0 0.0
        %1636 = vmatpush2.msra.mxu0 0.0
        %1637 = vmatprep.subr.mxu0 0.0
        %1638 = vmatpush2.msra.mxu0 0.0
        %1639 = vmatprep.subr.mxu0 0.0
        %1640 = vmatpush2.msra.mxu0 0.0
        %1641 = vmatprep.subr.mxu0 0.0
        %1642 = vmatpush2.msra.mxu0 0.0
        %1643 = vmatprep.subr.mxu0 0.0
        %1644 = vmatpush2.msra.mxu0 0.0
        %1645 = vmatprep.subr.mxu0 0.0
        %1646 = vmatpush2.msra.mxu0 0.0
        %1647 = vmatprep.subr.mxu0 0.0
        %1648 = vmatpush2.msra.mxu0 0.0
        %1649 = vmatprep.mubr.f32.mxu0 0.0
        %1650 = vmatmul.mubr.f32.gmra.mxu0 %v1583
        %v1651 = vpop.f32.mrf.mxu0
        %v1652 = vadd.f32 0.0, %v1651
        %v1653 = vpop.f32.mrf.mxu0
        %1654 = vdwg.mxu0
        %v1655 = vadd.f32 %v1414, %v1652
        %v1657 = vlaneseq
        %v1658 = vshrl.u32 %v1657, 7
        %v1659 = vsub.s32 0, %v1658
        %v1660 = vrot.slane %v613, %v1659
        %v1662 = vadd.f32 %v1655, %v1660
        %v1663 = vadd.f32 %v564, %v1662
        %v1664 = vld [vmem:[%s12] sm:$0x1]
        %v1665 = vld [vmem:[%s13] sm:$0x1]
        %v1666 = vsel %vm568, %v1663, 0.0
        %1667 = vadd.xlane.f32.xlu0 %v1666
        %v1668 = vpop.xlane.xlu0 %1667
        %v1669 = vmul.f32 %v1668, %v572
        %v1670 = vsub.f32 %v1663, %v1669
        %v1671 = vmul.f32 %v1670, %v1670
        %v1672 = vsel %vm568, %v1671, 0.0
        %1673 = vadd.xlane.f32.xlu0 %v1672
        %v1674 = vpop.xlane.xlu0 %1673
        %v1675 = vmul.f32 %v1674, 0.032258064
        %v1676 = vrsqrt.pop %v1675
        %v1677 = vmul.f32 %v1675, %v1676
        %vm1678 = vcmp.eq.f32.partialorder %v1675, inf
        %v1679 = vsel %vm1678, %v1675, %v1677
        %vm1680 = vcmp.eq.f32.partialorder %v1675, 0.0
        %v1681 = vand.u32 %v1675, 2147483648
        %v1682 = vsel %vm1680, %v1681, %v1679
        %v1684 = vlaneseq
        %v1685 = vshrl.u32 %v1684, 7
        %v1686 = vsub.s32 0, %v1685
        %v1687 = vrot.slane %v1664, %v1686
        %v1689 = vmul.f32 %v1687, %v1670
        %v1690 = vadd.f32 %v1682, 1e-06
        %v1691 = vrcp.pop %v1690
        %v1692 = vmul.f32 %v1689, %v1691
        %v1694 = vlaneseq
        %v1695 = vshrl.u32 %v1694, 7
        %v1696 = vsub.s32 0, %v1695
        %v1697 = vrot.slane %v1665, %v1696
        %v1699 = vadd.f32 %v1692, %v1697
        %v1700 = vld [vmem:[%s6] sm:$0xff]
        %v1701 = vld [vmem:[%s6 + $0x8] sm:$0xff]
        %v1702 = vld [vmem:[%s6 + $0x10] sm:$0xff]
        %v1703 = vld [vmem:[%s6 + $0x18] sm:$0xff]
        %v1704 = vld [vmem:[#allocation2] sm:$0x1]
        %v1706 = vlaneseq
        %v1707 = vshrl.u32 %v1706, 7
        %v1708 = vsub.s32 0, %v1707
        %v1709 = vrot.slane %v1704, %v1708
        %v1712 = vsel %vm568, %v1699, 0
        %1714 = vmatprep.subr.mxu0 0.0
        %1715 = vmatpush1.msra.mxu0 0.0
        %1716 = vmatprep.subr.mxu0 0.0
        %1717 = vmatpush1.msra.mxu0 0.0
        %1718 = vmatprep.subr.mxu0 0.0
        %1719 = vmatpush1.msra.mxu0 0.0
        %1720 = vmatprep.subr.mxu0 0.0
        %1721 = vmatpush1.msra.mxu0 0.0
        %1722 = vmatprep.subr.mxu0 0.0
        %1723 = vmatpush1.msra.mxu0 0.0
        %1724 = vmatprep.subr.mxu0 0.0
        %1725 = vmatpush1.msra.mxu0 0.0
        %1726 = vmatprep.subr.mxu0 0.0
        %1727 = vmatpush1.msra.mxu0 0.0
        %1728 = vmatprep.subr.mxu0 0.0
        %1729 = vmatpush1.msra.mxu0 0.0
        %1730 = vmatprep.subr.mxu0 0.0
        %1731 = vmatpush1.msra.mxu0 0.0
        %1732 = vmatprep.subr.mxu0 0.0
        %1733 = vmatpush1.msra.mxu0 0.0
        %1734 = vmatprep.subr.mxu0 0.0
        %1735 = vmatpush1.msra.mxu0 0.0
        %1736 = vmatprep.subr.mxu0 0.0
        %1737 = vmatpush1.msra.mxu0 0.0
        %1738 = vmatprep.subr.mxu0 0.0
        %1739 = vmatpush1.msra.mxu0 %v1703
        %1740 = vmatprep.subr.mxu0 0.0
        %1741 = vmatpush1.msra.mxu0 %v1702
        %1742 = vmatprep.subr.mxu0 0.0
        %1743 = vmatpush1.msra.mxu0 %v1701
        %1744 = vmatprep.subr.mxu0 0.0
        %1745 = vmatpush1.msra.mxu0 %v1700
        %1746 = vmatprep.subr.mxu0 0.0
        %1747 = vmatpush2.msra.mxu0 0.0
        %1748 = vmatprep.subr.mxu0 0.0
        %1749 = vmatpush2.msra.mxu0 0.0
        %1750 = vmatprep.subr.mxu0 0.0
        %1751 = vmatpush2.msra.mxu0 0.0
        %1752 = vmatprep.subr.mxu0 0.0
        %1753 = vmatpush2.msra.mxu0 0.0
        %1754 = vmatprep.subr.mxu0 0.0
        %1755 = vmatpush2.msra.mxu0 0.0
        %1756 = vmatprep.subr.mxu0 0.0
        %1757 = vmatpush2.msra.mxu0 0.0
        %1758 = vmatprep.subr.mxu0 0.0
        %1759 = vmatpush2.msra.mxu0 0.0
        %1760 = vmatprep.subr.mxu0 0.0
        %1761 = vmatpush2.msra.mxu0 0.0
        %1762 = vmatprep.subr.mxu0 0.0
        %1763 = vmatpush2.msra.mxu0 0.0
        %1764 = vmatprep.subr.mxu0 0.0
        %1765 = vmatpush2.msra.mxu0 0.0
        %1766 = vmatprep.subr.mxu0 0.0
        %1767 = vmatpush2.msra.mxu0 0.0
        %1768 = vmatprep.subr.mxu0 0.0
        %1769 = vmatpush2.msra.mxu0 0.0
        %1770 = vmatprep.subr.mxu0 0.0
        %1771 = vmatpush2.msra.mxu0 0.0
        %1772 = vmatprep.subr.mxu0 0.0
        %1773 = vmatpush2.msra.mxu0 0.0
        %1774 = vmatprep.subr.mxu0 0.0
        %1775 = vmatpush2.msra.mxu0 0.0
        %1776 = vmatprep.subr.mxu0 0.0
        %1777 = vmatpush2.msra.mxu0 0.0
        %1778 = vmatprep.mubr.f32.mxu0 0.0
        %1779 = vmatmul.mubr.f32.gmra.mxu0 %v1712
        %v1780 = vpop.f32.mrf.mxu0
        %v1781 = vadd.f32 %v1709, %v1780
        %v1782 = vpop.f32.mrf.mxu0
        %1783 = vdwg.mxu0
        %v1784 = vmax.f32 %v1781, 0.0
        %v1785 = vld [vmem:[%s8] sm:$0xff]
        %v1786 = vld [vmem:[%s8 + $0x8] sm:$0xff]
        %v1787 = vld [vmem:[%s8 + $0x10] sm:$0xff]
        %v1788 = vld [vmem:[%s8 + $0x18] sm:$0xff]
        %v1789 = vld [vmem:[%s8 + $0x20] sm:$0xff]
        %v1790 = vld [vmem:[%s8 + $0x28] sm:$0xff]
        %v1791 = vld [vmem:[%s8 + $0x30] sm:$0xff]
        %v1792 = vld [vmem:[%s8 + $0x38] sm:$0xff]
        %vm1793 = vcmask 523264
        %v1795 = vsel %vm1793, %v1784, 0
        %1797 = vmatprep.subr.mxu0 0.0
        %1798 = vmatpush1.msra.mxu0 0.0
        %1799 = vmatprep.subr.mxu0 0.0
        %1800 = vmatpush1.msra.mxu0 0.0
        %1801 = vmatprep.subr.mxu0 0.0
        %1802 = vmatpush1.msra.mxu0 0.0
        %1803 = vmatprep.subr.mxu0 0.0
        %1804 = vmatpush1.msra.mxu0 0.0
        %1805 = vmatprep.subr.mxu0 0.0
        %1806 = vmatpush1.msra.mxu0 0.0
        %1807 = vmatprep.subr.mxu0 0.0
        %1808 = vmatpush1.msra.mxu0 0.0
        %1809 = vmatprep.subr.mxu0 0.0
        %1810 = vmatpush1.msra.mxu0 0.0
        %1811 = vmatprep.subr.mxu0 0.0
        %1812 = vmatpush1.msra.mxu0 0.0
        %1813 = vmatprep.subr.mxu0 0.0
        %1814 = vmatpush1.msra.mxu0 %v1792
        %1815 = vmatprep.subr.mxu0 0.0
        %1816 = vmatpush1.msra.mxu0 %v1791
        %1817 = vmatprep.subr.mxu0 0.0
        %1818 = vmatpush1.msra.mxu0 %v1790
        %1819 = vmatprep.subr.mxu0 0.0
        %1820 = vmatpush1.msra.mxu0 %v1789
        %1821 = vmatprep.subr.mxu0 0.0
        %1822 = vmatpush1.msra.mxu0 %v1788
        %1823 = vmatprep.subr.mxu0 0.0
        %1824 = vmatpush1.msra.mxu0 %v1787
        %1825 = vmatprep.subr.mxu0 0.0
        %1826 = vmatpush1.msra.mxu0 %v1786
        %1827 = vmatprep.subr.mxu0 0.0
        %1828 = vmatpush1.msra.mxu0 %v1785
        %1829 = vmatprep.subr.mxu0 0.0
        %1830 = vmatpush2.msra.mxu0 0.0
        %1831 = vmatprep.subr.mxu0 0.0
        %1832 = vmatpush2.msra.mxu0 0.0
        %1833 = vmatprep.subr.mxu0 0.0
        %1834 = vmatpush2.msra.mxu0 0.0
        %1835 = vmatprep.subr.mxu0 0.0
        %1836 = vmatpush2.msra.mxu0 0.0
        %1837 = vmatprep.subr.mxu0 0.0
        %1838 = vmatpush2.msra.mxu0 0.0
        %1839 = vmatprep.subr.mxu0 0.0
        %1840 = vmatpush2.msra.mxu0 0.0
        %1841 = vmatprep.subr.mxu0 0.0
        %1842 = vmatpush2.msra.mxu0 0.0
        %1843 = vmatprep.subr.mxu0 0.0
        %1844 = vmatpush2.msra.mxu0 0.0
        %1845 = vmatprep.subr.mxu0 0.0
        %1846 = vmatpush2.msra.mxu0 0.0
        %1847 = vmatprep.subr.mxu0 0.0
        %1848 = vmatpush2.msra.mxu0 0.0
        %1849 = vmatprep.subr.mxu0 0.0
        %1850 = vmatpush2.msra.mxu0 0.0
        %1851 = vmatprep.subr.mxu0 0.0
        %1852 = vmatpush2.msra.mxu0 0.0
        %1853 = vmatprep.subr.mxu0 0.0
        %1854 = vmatpush2.msra.mxu0 0.0
        %1855 = vmatprep.subr.mxu0 0.0
        %1856 = vmatpush2.msra.mxu0 0.0
        %1857 = vmatprep.subr.mxu0 0.0
        %1858 = vmatpush2.msra.mxu0 0.0
        %1859 = vmatprep.subr.mxu0 0.0
        %1860 = vmatpush2.msra.mxu0 0.0
        %1861 = vmatprep.mubr.f32.mxu0 0.0
        %1862 = vmatmul.mubr.f32.gmra.mxu0 %v1795
        %v1863 = vpop.f32.mrf.mxu0
        %v1864 = vadd.f32 0.0, %v1863
        %v1865 = vpop.f32.mrf.mxu0
        %1866 = vdwg.mxu0
        %v1867 = vadd.f32 %v1663, %v1864
        %v1868 = vld [vmem:[#allocation5] sm:$0x1]
        %v1870 = vlaneseq
        %v1871 = vshrl.u32 %v1870, 7
        %v1872 = vsub.s32 0, %v1871
        %v1873 = vrot.slane %v1868, %v1872
        %v1875 = vadd.f32 %v1867, %v1873
        %s1876 = scalar_lea.vmem %s10, 1
        %v1877 = vld [vmem:[%s1876] sm:$0x1]
        %s1878 = scalar_lea.vmem %s11, 1
        %v1879 = vld [vmem:[%s1878] sm:$0x1]
        %v1880 = vsel %vm568, %v1875, 0.0
        %1881 = vadd.xlane.f32.xlu0 %v1880
        %v1882 = vpop.xlane.xlu0 %1881
        %v1883 = vmul.f32 %v1882, %v572
        %v1884 = vsub.f32 %v1875, %v1883
        %v1885 = vmul.f32 %v1884, %v1884
        %v1886 = vsel %vm568, %v1885, 0.0
        %1887 = vadd.xlane.f32.xlu0 %v1886
        %v1888 = vpop.xlane.xlu0 %1887
        %v1889 = vmul.f32 %v1888, 0.032258064
        %v1890 = vrsqrt.pop %v1889
        %v1891 = vmul.f32 %v1889, %v1890
        %vm1892 = vcmp.eq.f32.partialorder %v1889, inf
        %v1893 = vsel %vm1892, %v1889, %v1891
        %vm1894 = vcmp.eq.f32.partialorder %v1889, 0.0
        %v1895 = vand.u32 %v1889, 2147483648
        %v1896 = vsel %vm1894, %v1895, %v1893
        %v1898 = vlaneseq
        %v1899 = vshrl.u32 %v1898, 7
        %v1900 = vsub.s32 0, %v1899
        %v1901 = vrot.slane %v1877, %v1900
        %v1903 = vmul.f32 %v1901, %v1884
        %v1904 = vadd.f32 %v1896, 1e-06
        %v1905 = vrcp.pop %v1904
        %v1906 = vmul.f32 %v1903, %v1905
        %v1908 = vlaneseq
        %v1909 = vshrl.u32 %v1908, 7
        %v1910 = vsub.s32 0, %v1909
        %v1911 = vrot.slane %v1879, %v1910
        %v1913 = vadd.f32 %v1906, %v1911
        %s1914 = scalar_lea.vmem %s2, 32
        %v1915 = vld [vmem:[%s1914] sm:$0xff]
        %v1916 = vld [vmem:[%s1914 + $0x8] sm:$0xff]
        %v1917 = vld [vmem:[%s1914 + $0x10] sm:$0xff]
        %v1918 = vld [vmem:[%s1914 + $0x18] sm:$0xff]
        %s1919 = scalar_lea.vmem %s3, 1
        %v1920 = vld [vmem:[%s1919] sm:$0x1]
        %s1921 = scalar_lea.vmem %s4, 32
        %v1922 = vld [vmem:[%s1921] sm:$0xff]
        %v1923 = vld [vmem:[%s1921 + $0x8] sm:$0xff]
        %v1924 = vld [vmem:[%s1921 + $0x10] sm:$0xff]
        %v1925 = vld [vmem:[%s1921 + $0x18] sm:$0xff]
        %s1926 = scalar_lea.vmem %s5, 1
        %v1927 = vld [vmem:[%s1926] sm:$0x1]
        %v1929 = vlaneseq
        %v1930 = vshrl.u32 %v1929, 7
        %v1931 = vsub.s32 0, %v1930
        %v1932 = vrot.slane %v1920, %v1931
        %v1935 = vsel %vm568, %v1913, 0
        %1937 = vmatprep.subr.mxu0 0.0
        %1938 = vmatpush1.msra.mxu0 0.0
        %1939 = vmatprep.subr.mxu0 0.0
        %1940 = vmatpush1.msra.mxu0 0.0
        %1941 = vmatprep.subr.mxu0 0.0
        %1942 = vmatpush1.msra.mxu0 0.0
        %1943 = vmatprep.subr.mxu0 0.0
        %1944 = vmatpush1.msra.mxu0 0.0
        %1945 = vmatprep.subr.mxu0 0.0
        %1946 = vmatpush1.msra.mxu0 0.0
        %1947 = vmatprep.subr.mxu0 0.0
        %1948 = vmatpush1.msra.mxu0 0.0
        %1949 = vmatprep.subr.mxu0 0.0
        %1950 = vmatpush1.msra.mxu0 0.0
        %1951 = vmatprep.subr.mxu0 0.0
        %1952 = vmatpush1.msra.mxu0 0.0
        %1953 = vmatprep.subr.mxu0 0.0
        %1954 = vmatpush1.msra.mxu0 0.0
        %1955 = vmatprep.subr.mxu0 0.0
        %1956 = vmatpush1.msra.mxu0 0.0
        %1957 = vmatprep.subr.mxu0 0.0
        %1958 = vmatpush1.msra.mxu0 0.0
        %1959 = vmatprep.subr.mxu0 0.0
        %1960 = vmatpush1.msra.mxu0 0.0
        %1961 = vmatprep.subr.mxu0 0.0
        %1962 = vmatpush1.msra.mxu0 %v1918
        %1963 = vmatprep.subr.mxu0 0.0
        %1964 = vmatpush1.msra.mxu0 %v1917
        %1965 = vmatprep.subr.mxu0 0.0
        %1966 = vmatpush1.msra.mxu0 %v1916
        %1967 = vmatprep.subr.mxu0 0.0
        %1968 = vmatpush1.msra.mxu0 %v1915
        %1969 = vmatprep.subr.mxu0 0.0
        %1970 = vmatpush2.msra.mxu0 0.0
        %1971 = vmatprep.subr.mxu0 0.0
        %1972 = vmatpush2.msra.mxu0 0.0
        %1973 = vmatprep.subr.mxu0 0.0
        %1974 = vmatpush2.msra.mxu0 0.0
        %1975 = vmatprep.subr.mxu0 0.0
        %1976 = vmatpush2.msra.mxu0 0.0
        %1977 = vmatprep.subr.mxu0 0.0
        %1978 = vmatpush2.msra.mxu0 0.0
        %1979 = vmatprep.subr.mxu0 0.0
        %1980 = vmatpush2.msra.mxu0 0.0
        %1981 = vmatprep.subr.mxu0 0.0
        %1982 = vmatpush2.msra.mxu0 0.0
        %1983 = vmatprep.subr.mxu0 0.0
        %1984 = vmatpush2.msra.mxu0 0.0
        %1985 = vmatprep.subr.mxu0 0.0
        %1986 = vmatpush2.msra.mxu0 0.0
        %1987 = vmatprep.subr.mxu0 0.0
        %1988 = vmatpush2.msra.mxu0 0.0
        %1989 = vmatprep.subr.mxu0 0.0
        %1990 = vmatpush2.msra.mxu0 0.0
        %1991 = vmatprep.subr.mxu0 0.0
        %1992 = vmatpush2.msra.mxu0 0.0
        %1993 = vmatprep.subr.mxu0 0.0
        %1994 = vmatpush2.msra.mxu0 0.0
        %1995 = vmatprep.subr.mxu0 0.0
        %1996 = vmatpush2.msra.mxu0 0.0
        %1997 = vmatprep.subr.mxu0 0.0
        %1998 = vmatpush2.msra.mxu0 0.0
        %1999 = vmatprep.subr.mxu0 0.0
        %2000 = vmatpush2.msra.mxu0 0.0
        %2001 = vmatprep.mubr.f32.mxu0 0.0
        %2002 = vmatmul.mubr.f32.gmra.mxu0 %v1935
        %v2003 = vpop.f32.mrf.mxu0
        %v2004 = vadd.f32 %v1932, %v2003
        %v2005 = vpop.f32.mrf.mxu0
        %2006 = vdwg.mxu0
        %2008 = vrot.lane.b32.xlu0 %v2004, 96
        %v2009 = vpop.permute.xlu0 %2008
        %v2010 = vsel %vm696, %v2004, 0
        %v2012 = vsel %vm696, %v2009, 0
        %2014 = vmatprep.subr.mxu0 0.0
        %2015 = vmatpush1.xpose.msra.mxu0 0.0
        %2016 = vmatprep.subr.mxu0 0.0
        %2017 = vmatpush1.xpose.msra.mxu0 0.0
        %2018 = vmatprep.subr.mxu0 0.0
        %2019 = vmatpush1.xpose.msra.mxu0 0.0
        %2020 = vmatprep.subr.mxu0 0.0
        %2021 = vmatpush1.xpose.msra.mxu0 0.0
        %2022 = vmatprep.subr.mxu0 0.0
        %2023 = vmatpush1.xpose.msra.mxu0 0.0
        %2024 = vmatprep.subr.mxu0 0.0
        %2025 = vmatpush1.xpose.msra.mxu0 0.0
        %2026 = vmatprep.subr.mxu0 0.0
        %2027 = vmatpush1.xpose.msra.mxu0 0.0
        %2028 = vmatprep.subr.mxu0 0.0
        %2029 = vmatpush1.xpose.msra.mxu0 0.0
        %2030 = vmatprep.subr.mxu0 0.0
        %2031 = vmatpush1.xpose.msra.mxu0 0.0
        %2032 = vmatprep.subr.mxu0 0.0
        %2033 = vmatpush1.xpose.msra.mxu0 0.0
        %2034 = vmatprep.subr.mxu0 0.0
        %2035 = vmatpush1.xpose.msra.mxu0 0.0
        %2036 = vmatprep.subr.mxu0 0.0
        %2037 = vmatpush1.xpose.msra.mxu0 0.0
        %2038 = vmatprep.subr.mxu0 0.0
        %2039 = vmatpush1.xpose.msra.mxu0 0.0
        %2040 = vmatprep.subr.mxu0 0.0
        %2041 = vmatpush1.xpose.msra.mxu0 0.0
        %2042 = vmatprep.subr.mxu0 0.0
        %2043 = vmatpush1.xpose.msra.mxu0 0.0
        %2044 = vmatprep.subr.mxu0 0.0
        %2045 = vmatpush1.xpose.msra.mxu0 %v2012
        %2046 = vmatprep.subr.mxu0 0.0
        %2047 = vmatpush2.xpose.msra.mxu0 0.0
        %2048 = vmatprep.subr.mxu0 0.0
        %2049 = vmatpush2.xpose.msra.mxu0 0.0
        %2050 = vmatprep.subr.mxu0 0.0
        %2051 = vmatpush2.xpose.msra.mxu0 0.0
        %2052 = vmatprep.subr.mxu0 0.0
        %2053 = vmatpush2.xpose.msra.mxu0 0.0
        %2054 = vmatprep.subr.mxu0 0.0
        %2055 = vmatpush2.xpose.msra.mxu0 0.0
        %2056 = vmatprep.subr.mxu0 0.0
        %2057 = vmatpush2.xpose.msra.mxu0 0.0
        %2058 = vmatprep.subr.mxu0 0.0
        %2059 = vmatpush2.xpose.msra.mxu0 0.0
        %2060 = vmatprep.subr.mxu0 0.0
        %2061 = vmatpush2.xpose.msra.mxu0 0.0
        %2062 = vmatprep.subr.mxu0 0.0
        %2063 = vmatpush2.xpose.msra.mxu0 0.0
        %2064 = vmatprep.subr.mxu0 0.0
        %2065 = vmatpush2.xpose.msra.mxu0 0.0
        %2066 = vmatprep.subr.mxu0 0.0
        %2067 = vmatpush2.xpose.msra.mxu0 0.0
        %2068 = vmatprep.subr.mxu0 0.0
        %2069 = vmatpush2.xpose.msra.mxu0 0.0
        %2070 = vmatprep.subr.mxu0 0.0
        %2071 = vmatpush2.xpose.msra.mxu0 0.0
        %2072 = vmatprep.subr.mxu0 0.0
        %2073 = vmatpush2.xpose.msra.mxu0 0.0
        %2074 = vmatprep.subr.mxu0 0.0
        %2075 = vmatpush2.xpose.msra.mxu0 0.0
        %2076 = vmatprep.subr.mxu0 0.0
        %2077 = vmatpush2.xpose.msra.mxu0 0.0
        %2078 = vmatprep.mubr.f32.mxu0 0.0
        %2079 = vmatmul.mubr.f32.gmra.mxu0 %v2010
        %v2080 = vpop.f32.mrf.mxu0
        %v2081 = vadd.f32 0.0, %v2080
        %v2082 = vpop.f32.mrf.mxu0
        %2083 = vdwg.mxu0
        %v2084 = vmul.f32 %v2081, 0.35355338
        %v2085 = vsel %vm772, -1e+09, %v2084
        %v2086 = vsel %vm696, %v2085, -inf
        %2087 = vmax.xlane.f32.xlu0 %v2086
        %v2088 = vpop.xlane.xlu0 %2087
        %v2089 = vsub.f32 %v2085, %v2088
        %v2090 = vmul.f32 %v2089, 1.442695
        %v2091 = vpow.pop %v2090
        %v2092 = vsel %vm696, %v2091, 0.0
        %2093 = vadd.xlane.f32.xlu0 %v2092
        %v2094 = vpop.xlane.xlu0 %2093
        %v2095 = vrcp.pop %v2094
        %v2096 = vmul.f32 %v2091, %v2095
        %2097 = vrot.lane.b32.xlu0 %v2004, 64
        %v2098 = vpop.permute.xlu0 %2097
        %v2101 = vsel %vm696, %v2096, 0
        %2103 = vmatprep.subr.mxu0 0.0
        %2104 = vmatpush1.msra.mxu0 0.0
        %2105 = vmatprep.subr.mxu0 0.0
        %2106 = vmatpush1.msra.mxu0 0.0
        %2107 = vmatprep.subr.mxu0 0.0
        %2108 = vmatpush1.msra.mxu0 0.0
        %2109 = vmatprep.subr.mxu0 0.0
        %2110 = vmatpush1.msra.mxu0 0.0
        %2111 = vmatprep.subr.mxu0 0.0
        %2112 = vmatpush1.msra.mxu0 0.0
        %2113 = vmatprep.subr.mxu0 0.0
        %2114 = vmatpush1.msra.mxu0 0.0
        %2115 = vmatprep.subr.mxu0 0.0
        %2116 = vmatpush1.msra.mxu0 0.0
        %2117 = vmatprep.subr.mxu0 0.0
        %2118 = vmatpush1.msra.mxu0 0.0
        %2119 = vmatprep.subr.mxu0 0.0
        %2120 = vmatpush1.msra.mxu0 0.0
        %2121 = vmatprep.subr.mxu0 0.0
        %2122 = vmatpush1.msra.mxu0 0.0
        %2123 = vmatprep.subr.mxu0 0.0
        %2124 = vmatpush1.msra.mxu0 0.0
        %2125 = vmatprep.subr.mxu0 0.0
        %2126 = vmatpush1.msra.mxu0 0.0
        %2127 = vmatprep.subr.mxu0 0.0
        %2128 = vmatpush1.msra.mxu0 0.0
        %2129 = vmatprep.subr.mxu0 0.0
        %2130 = vmatpush1.msra.mxu0 0.0
        %2131 = vmatprep.subr.mxu0 0.0
        %2132 = vmatpush1.msra.mxu0 0.0
        %2133 = vmatprep.subr.mxu0 0.0
        %2134 = vmatpush1.msra.mxu0 %v2098
        %2135 = vmatprep.subr.mxu0 0.0
        %2136 = vmatpush2.msra.mxu0 0.0
        %2137 = vmatprep.subr.mxu0 0.0
        %2138 = vmatpush2.msra.mxu0 0.0
        %2139 = vmatprep.subr.mxu0 0.0
        %2140 = vmatpush2.msra.mxu0 0.0
        %2141 = vmatprep.subr.mxu0 0.0
        %2142 = vmatpush2.msra.mxu0 0.0
        %2143 = vmatprep.subr.mxu0 0.0
        %2144 = vmatpush2.msra.mxu0 0.0
        %2145 = vmatprep.subr.mxu0 0.0
        %2146 = vmatpush2.msra.mxu0 0.0
        %2147 = vmatprep.subr.mxu0 0.0
        %2148 = vmatpush2.msra.mxu0 0.0
        %2149 = vmatprep.subr.mxu0 0.0
        %2150 = vmatpush2.msra.mxu0 0.0
        %2151 = vmatprep.subr.mxu0 0.0
        %2152 = vmatpush2.msra.mxu0 0.0
        %2153 = vmatprep.subr.mxu0 0.0
        %2154 = vmatpush2.msra.mxu0 0.0
        %2155 = vmatprep.subr.mxu0 0.0
        %2156 = vmatpush2.msra.mxu0 0.0
        %2157 = vmatprep.subr.mxu0 0.0
        %2158 = vmatpush2.msra.mxu0 0.0
        %2159 = vmatprep.subr.mxu0 0.0
        %2160 = vmatpush2.msra.mxu0 0.0
        %2161 = vmatprep.subr.mxu0 0.0
        %2162 = vmatpush2.msra.mxu0 0.0
        %2163 = vmatprep.subr.mxu0 0.0
        %2164 = vmatpush2.msra.mxu0 0.0
        %2165 = vmatprep.subr.mxu0 0.0
        %2166 = vmatpush2.msra.mxu0 0.0
        %2167 = vmatprep.mubr.f32.mxu0 0.0
        %2168 = vmatmul.mubr.f32.gmra.mxu0 %v2101
        %v2169 = vpop.f32.mrf.mxu0
        %v2170 = vadd.f32 0.0, %v2169
        %v2171 = vpop.f32.mrf.mxu0
        %2172 = vdwg.mxu0
        %2173 = vrot.lane.b32.xlu0 %v2004, 120
        %v2174 = vpop.permute.xlu0 %2173
        %2175 = vrot.lane.b32.xlu0 %v2004, 88
        %v2176 = vpop.permute.xlu0 %2175
        %v2177 = vsel %vm696, %v2174, 0
        %v2179 = vsel %vm696, %v2176, 0
        %2181 = vmatprep.subr.mxu0 0.0
        %2182 = vmatpush1.xpose.msra.mxu0 0.0
        %2183 = vmatprep.subr.mxu0 0.0
        %2184 = vmatpush1.xpose.msra.mxu0 0.0
        %2185 = vmatprep.subr.mxu0 0.0
        %2186 = vmatpush1.xpose.msra.mxu0 0.0
        %2187 = vmatprep.subr.mxu0 0.0
        %2188 = vmatpush1.xpose.msra.mxu0 0.0
        %2189 = vmatprep.subr.mxu0 0.0
        %2190 = vmatpush1.xpose.msra.mxu0 0.0
        %2191 = vmatprep.subr.mxu0 0.0
        %2192 = vmatpush1.xpose.msra.mxu0 0.0
        %2193 = vmatprep.subr.mxu0 0.0
        %2194 = vmatpush1.xpose.msra.mxu0 0.0
        %2195 = vmatprep.subr.mxu0 0.0
        %2196 = vmatpush1.xpose.msra.mxu0 0.0
        %2197 = vmatprep.subr.mxu0 0.0
        %2198 = vmatpush1.xpose.msra.mxu0 0.0
        %2199 = vmatprep.subr.mxu0 0.0
        %2200 = vmatpush1.xpose.msra.mxu0 0.0
        %2201 = vmatprep.subr.mxu0 0.0
        %2202 = vmatpush1.xpose.msra.mxu0 0.0
        %2203 = vmatprep.subr.mxu0 0.0
        %2204 = vmatpush1.xpose.msra.mxu0 0.0
        %2205 = vmatprep.subr.mxu0 0.0
        %2206 = vmatpush1.xpose.msra.mxu0 0.0
        %2207 = vmatprep.subr.mxu0 0.0
        %2208 = vmatpush1.xpose.msra.mxu0 0.0
        %2209 = vmatprep.subr.mxu0 0.0
        %2210 = vmatpush1.xpose.msra.mxu0 0.0
        %2211 = vmatprep.subr.mxu0 0.0
        %2212 = vmatpush1.xpose.msra.mxu0 %v2179
        %2213 = vmatprep.subr.mxu0 0.0
        %2214 = vmatpush2.xpose.msra.mxu0 0.0
        %2215 = vmatprep.subr.mxu0 0.0
        %2216 = vmatpush2.xpose.msra.mxu0 0.0
        %2217 = vmatprep.subr.mxu0 0.0
        %2218 = vmatpush2.xpose.msra.mxu0 0.0
        %2219 = vmatprep.subr.mxu0 0.0
        %2220 = vmatpush2.xpose.msra.mxu0 0.0
        %2221 = vmatprep.subr.mxu0 0.0
        %2222 = vmatpush2.xpose.msra.mxu0 0.0
        %2223 = vmatprep.subr.mxu0 0.0
        %2224 = vmatpush2.xpose.msra.mxu0 0.0
        %2225 = vmatprep.subr.mxu0 0.0
        %2226 = vmatpush2.xpose.msra.mxu0 0.0
        %2227 = vmatprep.subr.mxu0 0.0
        %2228 = vmatpush2.xpose.msra.mxu0 0.0
        %2229 = vmatprep.subr.mxu0 0.0
        %2230 = vmatpush2.xpose.msra.mxu0 0.0
        %2231 = vmatprep.subr.mxu0 0.0
        %2232 = vmatpush2.xpose.msra.mxu0 0.0
        %2233 = vmatprep.subr.mxu0 0.0
        %2234 = vmatpush2.xpose.msra.mxu0 0.0
        %2235 = vmatprep.subr.mxu0 0.0
        %2236 = vmatpush2.xpose.msra.mxu0 0.0
        %2237 = vmatprep.subr.mxu0 0.0
        %2238 = vmatpush2.xpose.msra.mxu0 0.0
        %2239 = vmatprep.subr.mxu0 0.0
        %2240 = vmatpush2.xpose.msra.mxu0 0.0
        %2241 = vmatprep.subr.mxu0 0.0
        %2242 = vmatpush2.xpose.msra.mxu0 0.0
        %2243 = vmatprep.subr.mxu0 0.0
        %2244 = vmatpush2.xpose.msra.mxu0 0.0
        %2245 = vmatprep.mubr.f32.mxu0 0.0
        %2246 = vmatmul.mubr.f32.gmra.mxu0 %v2177
        %v2247 = vpop.f32.mrf.mxu0
        %v2248 = vadd.f32 0.0, %v2247
        %v2249 = vpop.f32.mrf.mxu0
        %2250 = vdwg.mxu0
        %v2251 = vmul.f32 %v2248, 0.35355338
        %v2252 = vsel %vm772, -1e+09, %v2251
        %v2253 = vsel %vm696, %v2252, -inf
        %2254 = vmax.xlane.f32.xlu0 %v2253
        %v2255 = vpop.xlane.xlu0 %2254
        %v2256 = vsub.f32 %v2252, %v2255
        %v2257 = vmul.f32 %v2256, 1.442695
        %v2258 = vpow.pop %v2257
        %v2259 = vsel %vm696, %v2258, 0.0
        %2260 = vadd.xlane.f32.xlu0 %v2259
        %v2261 = vpop.xlane.xlu0 %2260
        %v2262 = vrcp.pop %v2261
        %v2263 = vmul.f32 %v2258, %v2262
        %2264 = vrot.lane.b32.xlu0 %v2004, 56
        %v2265 = vpop.permute.xlu0 %2264
        %v2268 = vsel %vm696, %v2263, 0
        %2270 = vmatprep.subr.mxu0 0.0
        %2271 = vmatpush1.msra.mxu0 0.0
        %2272 = vmatprep.subr.mxu0 0.0
        %2273 = vmatpush1.msra.mxu0 0.0
        %2274 = vmatprep.subr.mxu0 0.0
        %2275 = vmatpush1.msra.mxu0 0.0
        %2276 = vmatprep.subr.mxu0 0.0
        %2277 = vmatpush1.msra.mxu0 0.0
        %2278 = vmatprep.subr.mxu0 0.0
        %2279 = vmatpush1.msra.mxu0 0.0
        %2280 = vmatprep.subr.mxu0 0.0
        %2281 = vmatpush1.msra.mxu0 0.0
        %2282 = vmatprep.subr.mxu0 0.0
        %2283 = vmatpush1.msra.mxu0 0.0
        %2284 = vmatprep.subr.mxu0 0.0
        %2285 = vmatpush1.msra.mxu0 0.0
        %2286 = vmatprep.subr.mxu0 0.0
        %2287 = vmatpush1.msra.mxu0 0.0
        %2288 = vmatprep.subr.mxu0 0.0
        %2289 = vmatpush1.msra.mxu0 0.0
        %2290 = vmatprep.subr.mxu0 0.0
        %2291 = vmatpush1.msra.mxu0 0.0
        %2292 = vmatprep.subr.mxu0 0.0
        %2293 = vmatpush1.msra.mxu0 0.0
        %2294 = vmatprep.subr.mxu0 0.0
        %2295 = vmatpush1.msra.mxu0 0.0
        %2296 = vmatprep.subr.mxu0 0.0
        %2297 = vmatpush1.msra.mxu0 0.0
        %2298 = vmatprep.subr.mxu0 0.0
        %2299 = vmatpush1.msra.mxu0 0.0
        %2300 = vmatprep.subr.mxu0 0.0
        %2301 = vmatpush1.msra.mxu0 %v2265
        %2302 = vmatprep.subr.mxu0 0.0
        %2303 = vmatpush2.msra.mxu0 0.0
        %2304 = vmatprep.subr.mxu0 0.0
        %2305 = vmatpush2.msra.mxu0 0.0
        %2306 = vmatprep.subr.mxu0 0.0
        %2307 = vmatpush2.msra.mxu0 0.0
        %2308 = vmatprep.subr.mxu0 0.0
        %2309 = vmatpush2.msra.mxu0 0.0
        %2310 = vmatprep.subr.mxu0 0.0
        %2311 = vmatpush2.msra.mxu0 0.0
        %2312 = vmatprep.subr.mxu0 0.0
        %2313 = vmatpush2.msra.mxu0 0.0
        %2314 = vmatprep.subr.mxu0 0.0
        %2315 = vmatpush2.msra.mxu0 0.0
        %2316 = vmatprep.subr.mxu0 0.0
        %2317 = vmatpush2.msra.mxu0 0.0
        %2318 = vmatprep.subr.mxu0 0.0
        %2319 = vmatpush2.msra.mxu0 0.0
        %2320 = vmatprep.subr.mxu0 0.0
        %2321 = vmatpush2.msra.mxu0 0.0
        %2322 = vmatprep.subr.mxu0 0.0
        %2323 = vmatpush2.msra.mxu0 0.0
        %2324 = vmatprep.subr.mxu0 0.0
        %2325 = vmatpush2.msra.mxu0 0.0
        %2326 = vmatprep.subr.mxu0 0.0
        %2327 = vmatpush2.msra.mxu0 0.0
        %2328 = vmatprep.subr.mxu0 0.0
        %2329 = vmatpush2.msra.mxu0 0.0
        %2330 = vmatprep.subr.mxu0 0.0
        %2331 = vmatpush2.msra.mxu0 0.0
        %2332 = vmatprep.subr.mxu0 0.0
        %2333 = vmatpush2.msra.mxu0 0.0
        %2334 = vmatprep.mubr.f32.mxu0 0.0
        %2335 = vmatmul.mubr.f32.gmra.mxu0 %v2268
        %v2336 = vpop.f32.mrf.mxu0
        %v2337 = vadd.f32 0.0, %v2336
        %v2338 = vpop.f32.mrf.mxu0
        %2339 = vdwg.mxu0
        %v2341 = vsel %vm696, %v2337, 0
        %2343 = vmatprep.subr.mxu0 0.0
        %2344 = vmatpush1.msra.mxu0 0.0
        %2345 = vmatprep.subr.mxu0 0.0
        %2346 = vmatpush1.msra.mxu0 0.0
        %2347 = vmatprep.subr.mxu0 0.0
        %2348 = vmatpush1.msra.mxu0 0.0
        %2349 = vmatprep.subr.mxu0 0.0
        %2350 = vmatpush1.msra.mxu0 0.0
        %2351 = vmatprep.subr.mxu0 0.0
        %2352 = vmatpush1.msra.mxu0 0.0
        %2353 = vmatprep.subr.mxu0 0.0
        %2354 = vmatpush1.msra.mxu0 0.0
        %2355 = vmatprep.subr.mxu0 0.0
        %2356 = vmatpush1.msra.mxu0 0.0
        %2357 = vmatprep.subr.mxu0 0.0
        %2358 = vmatpush1.msra.mxu0 0.0
        %2359 = vmatprep.subr.mxu0 0.0
        %2360 = vmatpush1.msra.mxu0 0.0
        %2361 = vmatprep.subr.mxu0 0.0
        %2362 = vmatpush1.msra.mxu0 0.0
        %2363 = vmatprep.subr.mxu0 0.0
        %2364 = vmatpush1.msra.mxu0 0.0
        %2365 = vmatprep.subr.mxu0 0.0
        %2366 = vmatpush1.msra.mxu0 0.0
        %2367 = vmatprep.subr.mxu0 0.0
        %2368 = vmatpush1.msra.mxu0 0.0
        %2369 = vmatprep.subr.mxu0 0.0
        %2370 = vmatpush1.msra.mxu0 0.0
        %2371 = vmatprep.subr.mxu0 0.0
        %2372 = vmatpush1.msra.mxu0 0.0
        %2373 = vmatprep.subr.mxu0 0.0
        %2374 = vmatpush1.msra.mxu0 %v1923
        %2375 = vmatprep.subr.mxu0 0.0
        %2376 = vmatpush2.msra.mxu0 0.0
        %2377 = vmatprep.subr.mxu0 0.0
        %2378 = vmatpush2.msra.mxu0 0.0
        %2379 = vmatprep.subr.mxu0 0.0
        %2380 = vmatpush2.msra.mxu0 0.0
        %2381 = vmatprep.subr.mxu0 0.0
        %2382 = vmatpush2.msra.mxu0 0.0
        %2383 = vmatprep.subr.mxu0 0.0
        %2384 = vmatpush2.msra.mxu0 0.0
        %2385 = vmatprep.subr.mxu0 0.0
        %2386 = vmatpush2.msra.mxu0 0.0
        %2387 = vmatprep.subr.mxu0 0.0
        %2388 = vmatpush2.msra.mxu0 0.0
        %2389 = vmatprep.subr.mxu0 0.0
        %2390 = vmatpush2.msra.mxu0 0.0
        %2391 = vmatprep.subr.mxu0 0.0
        %2392 = vmatpush2.msra.mxu0 0.0
        %2393 = vmatprep.subr.mxu0 0.0
        %2394 = vmatpush2.msra.mxu0 0.0
        %2395 = vmatprep.subr.mxu0 0.0
        %2396 = vmatpush2.msra.mxu0 0.0
        %2397 = vmatprep.subr.mxu0 0.0
        %2398 = vmatpush2.msra.mxu0 0.0
        %2399 = vmatprep.subr.mxu0 0.0
        %2400 = vmatpush2.msra.mxu0 0.0
        %2401 = vmatprep.subr.mxu0 0.0
        %2402 = vmatpush2.msra.mxu0 0.0
        %2403 = vmatprep.subr.mxu0 0.0
        %2404 = vmatpush2.msra.mxu0 0.0
        %2405 = vmatprep.subr.mxu0 0.0
        %2406 = vmatpush2.msra.mxu0 0.0
        %2407 = vmatprep.mubr.f32.mxu0 0.0
        %2408 = vmatmul.mubr.f32.gmra.mxu0 %v2341
        %v2409 = vpop.f32.mrf.mxu0
        %v2410 = vadd.f32 0.0, %v2409
        %v2411 = vpop.f32.mrf.mxu0
        %2412 = vdwg.mxu0
        %v2414 = vsel %vm696, %v2170, 0
        %2416 = vmatprep.subr.mxu0 0.0
        %2417 = vmatpush1.msra.mxu0 0.0
        %2418 = vmatprep.subr.mxu0 0.0
        %2419 = vmatpush1.msra.mxu0 0.0
        %2420 = vmatprep.subr.mxu0 0.0
        %2421 = vmatpush1.msra.mxu0 0.0
        %2422 = vmatprep.subr.mxu0 0.0
        %2423 = vmatpush1.msra.mxu0 0.0
        %2424 = vmatprep.subr.mxu0 0.0
        %2425 = vmatpush1.msra.mxu0 0.0
        %2426 = vmatprep.subr.mxu0 0.0
        %2427 = vmatpush1.msra.mxu0 0.0
        %2428 = vmatprep.subr.mxu0 0.0
        %2429 = vmatpush1.msra.mxu0 0.0
        %2430 = vmatprep.subr.mxu0 0.0
        %2431 = vmatpush1.msra.mxu0 0.0
        %2432 = vmatprep.subr.mxu0 0.0
        %2433 = vmatpush1.msra.mxu0 0.0
        %2434 = vmatprep.subr.mxu0 0.0
        %2435 = vmatpush1.msra.mxu0 0.0
        %2436 = vmatprep.subr.mxu0 0.0
        %2437 = vmatpush1.msra.mxu0 0.0
        %2438 = vmatprep.subr.mxu0 0.0
        %2439 = vmatpush1.msra.mxu0 0.0
        %2440 = vmatprep.subr.mxu0 0.0
        %2441 = vmatpush1.msra.mxu0 0.0
        %2442 = vmatprep.subr.mxu0 0.0
        %2443 = vmatpush1.msra.mxu0 0.0
        %2444 = vmatprep.subr.mxu0 0.0
        %2445 = vmatpush1.msra.mxu0 0.0
        %2446 = vmatprep.subr.mxu0 0.0
        %2447 = vmatpush1.msra.mxu0 %v1922
        %2448 = vmatprep.subr.mxu0 0.0
        %2449 = vmatpush2.msra.mxu0 0.0
        %2450 = vmatprep.subr.mxu0 0.0
        %2451 = vmatpush2.msra.mxu0 0.0
        %2452 = vmatprep.subr.mxu0 0.0
        %2453 = vmatpush2.msra.mxu0 0.0
        %2454 = vmatprep.subr.mxu0 0.0
        %2455 = vmatpush2.msra.mxu0 0.0
        %2456 = vmatprep.subr.mxu0 0.0
        %2457 = vmatpush2.msra.mxu0 0.0
        %2458 = vmatprep.subr.mxu0 0.0
        %2459 = vmatpush2.msra.mxu0 0.0
        %2460 = vmatprep.subr.mxu0 0.0
        %2461 = vmatpush2.msra.mxu0 0.0
        %2462 = vmatprep.subr.mxu0 0.0
        %2463 = vmatpush2.msra.mxu0 0.0
        %2464 = vmatprep.subr.mxu0 0.0
        %2465 = vmatpush2.msra.mxu0 0.0
        %2466 = vmatprep.subr.mxu0 0.0
        %2467 = vmatpush2.msra.mxu0 0.0
        %2468 = vmatprep.subr.mxu0 0.0
        %2469 = vmatpush2.msra.mxu0 0.0
        %2470 = vmatprep.subr.mxu0 0.0
        %2471 = vmatpush2.msra.mxu0 0.0
        %2472 = vmatprep.subr.mxu0 0.0
        %2473 = vmatpush2.msra.mxu0 0.0
        %2474 = vmatprep.subr.mxu0 0.0
        %2475 = vmatpush2.msra.mxu0 0.0
        %2476 = vmatprep.subr.mxu0 0.0
        %2477 = vmatpush2.msra.mxu0 0.0
        %2478 = vmatprep.subr.mxu0 0.0
        %2479 = vmatpush2.msra.mxu0 0.0
        %2480 = vmatprep.mubr.f32.mxu0 0.0
        %2481 = vmatmul.mubr.f32.gmra.mxu0 %v2414
        %v2482 = vpop.f32.mrf.mxu0
        %v2483 = vadd.f32 %v2410, %v2482
        %v2484 = vpop.f32.mrf.mxu0
        %2485 = vdwg.mxu0
        %2486 = vrot.lane.b32.xlu0 %v2004, 112
        %v2487 = vpop.permute.xlu0 %2486
        %2488 = vrot.lane.b32.xlu0 %v2004, 80
        %v2489 = vpop.permute.xlu0 %2488
        %v2490 = vsel %vm696, %v2487, 0
        %v2492 = vsel %vm696, %v2489, 0
        %2494 = vmatprep.subr.mxu0 0.0
        %2495 = vmatpush1.xpose.msra.mxu0 0.0
        %2496 = vmatprep.subr.mxu0 0.0
        %2497 = vmatpush1.xpose.msra.mxu0 0.0
        %2498 = vmatprep.subr.mxu0 0.0
        %2499 = vmatpush1.xpose.msra.mxu0 0.0
        %2500 = vmatprep.subr.mxu0 0.0
        %2501 = vmatpush1.xpose.msra.mxu0 0.0
        %2502 = vmatprep.subr.mxu0 0.0
        %2503 = vmatpush1.xpose.msra.mxu0 0.0
        %2504 = vmatprep.subr.mxu0 0.0
        %2505 = vmatpush1.xpose.msra.mxu0 0.0
        %2506 = vmatprep.subr.mxu0 0.0
        %2507 = vmatpush1.xpose.msra.mxu0 0.0
        %2508 = vmatprep.subr.mxu0 0.0
        %2509 = vmatpush1.xpose.msra.mxu0 0.0
        %2510 = vmatprep.subr.mxu0 0.0
        %2511 = vmatpush1.xpose.msra.mxu0 0.0
        %2512 = vmatprep.subr.mxu0 0.0
        %2513 = vmatpush1.xpose.msra.mxu0 0.0
        %2514 = vmatprep.subr.mxu0 0.0
        %2515 = vmatpush1.xpose.msra.mxu0 0.0
        %2516 = vmatprep.subr.mxu0 0.0
        %2517 = vmatpush1.xpose.msra.mxu0 0.0
        %2518 = vmatprep.subr.mxu0 0.0
        %2519 = vmatpush1.xpose.msra.mxu0 0.0
        %2520 = vmatprep.subr.mxu0 0.0
        %2521 = vmatpush1.xpose.msra.mxu0 0.0
        %2522 = vmatprep.subr.mxu0 0.0
        %2523 = vmatpush1.xpose.msra.mxu0 0.0
        %2524 = vmatprep.subr.mxu0 0.0
        %2525 = vmatpush1.xpose.msra.mxu0 %v2492
        %2526 = vmatprep.subr.mxu0 0.0
        %2527 = vmatpush2.xpose.msra.mxu0 0.0
        %2528 = vmatprep.subr.mxu0 0.0
        %2529 = vmatpush2.xpose.msra.mxu0 0.0
        %2530 = vmatprep.subr.mxu0 0.0
        %2531 = vmatpush2.xpose.msra.mxu0 0.0
        %2532 = vmatprep.subr.mxu0 0.0
        %2533 = vmatpush2.xpose.msra.mxu0 0.0
        %2534 = vmatprep.subr.mxu0 0.0
        %2535 = vmatpush2.xpose.msra.mxu0 0.0
        %2536 = vmatprep.subr.mxu0 0.0
        %2537 = vmatpush2.xpose.msra.mxu0 0.0
        %2538 = vmatprep.subr.mxu0 0.0
        %2539 = vmatpush2.xpose.msra.mxu0 0.0
        %2540 = vmatprep.subr.mxu0 0.0
        %2541 = vmatpush2.xpose.msra.mxu0 0.0
        %2542 = vmatprep.subr.mxu0 0.0
        %2543 = vmatpush2.xpose.msra.mxu0 0.0
        %2544 = vmatprep.subr.mxu0 0.0
        %2545 = vmatpush2.xpose.msra.mxu0 0.0
        %2546 = vmatprep.subr.mxu0 0.0
        %2547 = vmatpush2.xpose.msra.mxu0 0.0
        %2548 = vmatprep.subr.mxu0 0.0
        %2549 = vmatpush2.xpose.msra.mxu0 0.0
        %2550 = vmatprep.subr.mxu0 0.0
        %2551 = vmatpush2.xpose.msra.mxu0 0.0
        %2552 = vmatprep.subr.mxu0 0.0
        %2553 = vmatpush2.xpose.msra.mxu0 0.0
        %2554 = vmatprep.subr.mxu0 0.0
        %2555 = vmatpush2.xpose.msra.mxu0 0.0
        %2556 = vmatprep.subr.mxu0 0.0
        %2557 = vmatpush2.xpose.msra.mxu0 0.0
        %2558 = vmatprep.mubr.f32.mxu0 0.0
        %2559 = vmatmul.mubr.f32.gmra.mxu0 %v2490
        %v2560 = vpop.f32.mrf.mxu0
        %v2561 = vadd.f32 0.0, %v2560
        %v2562 = vpop.f32.mrf.mxu0
        %2563 = vdwg.mxu0
        %v2564 = vmul.f32 %v2561, 0.35355338
        %v2565 = vsel %vm772, -1e+09, %v2564
        %v2566 = vsel %vm696, %v2565, -inf
        %2567 = vmax.xlane.f32.xlu0 %v2566
        %v2568 = vpop.xlane.xlu0 %2567
        %v2569 = vsub.f32 %v2565, %v2568
        %v2570 = vmul.f32 %v2569, 1.442695
        %v2571 = vpow.pop %v2570
        %v2572 = vsel %vm696, %v2571, 0.0
        %2573 = vadd.xlane.f32.xlu0 %v2572
        %v2574 = vpop.xlane.xlu0 %2573
        %v2575 = vrcp.pop %v2574
        %v2576 = vmul.f32 %v2571, %v2575
        %2577 = vrot.lane.b32.xlu0 %v2004, 48
        %v2578 = vpop.permute.xlu0 %2577
        %v2581 = vsel %vm696, %v2576, 0
        %2583 = vmatprep.subr.mxu0 0.0
        %2584 = vmatpush1.msra.mxu0 0.0
        %2585 = vmatprep.subr.mxu0 0.0
        %2586 = vmatpush1.msra.mxu0 0.0
        %2587 = vmatprep.subr.mxu0 0.0
        %2588 = vmatpush1.msra.mxu0 0.0
        %2589 = vmatprep.subr.mxu0 0.0
        %2590 = vmatpush1.msra.mxu0 0.0
        %2591 = vmatprep.subr.mxu0 0.0
        %2592 = vmatpush1.msra.mxu0 0.0
        %2593 = vmatprep.subr.mxu0 0.0
        %2594 = vmatpush1.msra.mxu0 0.0
        %2595 = vmatprep.subr.mxu0 0.0
        %2596 = vmatpush1.msra.mxu0 0.0
        %2597 = vmatprep.subr.mxu0 0.0
        %2598 = vmatpush1.msra.mxu0 0.0
        %2599 = vmatprep.subr.mxu0 0.0
        %2600 = vmatpush1.msra.mxu0 0.0
        %2601 = vmatprep.subr.mxu0 0.0
        %2602 = vmatpush1.msra.mxu0 0.0
        %2603 = vmatprep.subr.mxu0 0.0
        %2604 = vmatpush1.msra.mxu0 0.0
        %2605 = vmatprep.subr.mxu0 0.0
        %2606 = vmatpush1.msra.mxu0 0.0
        %2607 = vmatprep.subr.mxu0 0.0
        %2608 = vmatpush1.msra.mxu0 0.0
        %2609 = vmatprep.subr.mxu0 0.0
        %2610 = vmatpush1.msra.mxu0 0.0
        %2611 = vmatprep.subr.mxu0 0.0
        %2612 = vmatpush1.msra.mxu0 0.0
        %2613 = vmatprep.subr.mxu0 0.0
        %2614 = vmatpush1.msra.mxu0 %v2578
        %2615 = vmatprep.subr.mxu0 0.0
        %2616 = vmatpush2.msra.mxu0 0.0
        %2617 = vmatprep.subr.mxu0 0.0
        %2618 = vmatpush2.msra.mxu0 0.0
        %2619 = vmatprep.subr.mxu0 0.0
        %2620 = vmatpush2.msra.mxu0 0.0
        %2621 = vmatprep.subr.mxu0 0.0
        %2622 = vmatpush2.msra.mxu0 0.0
        %2623 = vmatprep.subr.mxu0 0.0
        %2624 = vmatpush2.msra.mxu0 0.0
        %2625 = vmatprep.subr.mxu0 0.0
        %2626 = vmatpush2.msra.mxu0 0.0
        %2627 = vmatprep.subr.mxu0 0.0
        %2628 = vmatpush2.msra.mxu0 0.0
        %2629 = vmatprep.subr.mxu0 0.0
        %2630 = vmatpush2.msra.mxu0 0.0
        %2631 = vmatprep.subr.mxu0 0.0
        %2632 = vmatpush2.msra.mxu0 0.0
        %2633 = vmatprep.subr.mxu0 0.0
        %2634 = vmatpush2.msra.mxu0 0.0
        %2635 = vmatprep.subr.mxu0 0.0
        %2636 = vmatpush2.msra.mxu0 0.0
        %2637 = vmatprep.subr.mxu0 0.0
        %2638 = vmatpush2.msra.mxu0 0.0
        %2639 = vmatprep.subr.mxu0 0.0
        %2640 = vmatpush2.msra.mxu0 0.0
        %2641 = vmatprep.subr.mxu0 0.0
        %2642 = vmatpush2.msra.mxu0 0.0
        %2643 = vmatprep.subr.mxu0 0.0
        %2644 = vmatpush2.msra.mxu0 0.0
        %2645 = vmatprep.subr.mxu0 0.0
        %2646 = vmatpush2.msra.mxu0 0.0
        %2647 = vmatprep.mubr.f32.mxu0 0.0
        %2648 = vmatmul.mubr.f32.gmra.mxu0 %v2581
        %v2649 = vpop.f32.mrf.mxu0
        %v2650 = vadd.f32 0.0, %v2649
        %v2651 = vpop.f32.mrf.mxu0
        %2652 = vdwg.mxu0
        %v2654 = vsel %vm696, %v2650, 0
        %2656 = vmatprep.subr.mxu0 0.0
        %2657 = vmatpush1.msra.mxu0 0.0
        %2658 = vmatprep.subr.mxu0 0.0
        %2659 = vmatpush1.msra.mxu0 0.0
        %2660 = vmatprep.subr.mxu0 0.0
        %2661 = vmatpush1.msra.mxu0 0.0
        %2662 = vmatprep.subr.mxu0 0.0
        %2663 = vmatpush1.msra.mxu0 0.0
        %2664 = vmatprep.subr.mxu0 0.0
        %2665 = vmatpush1.msra.mxu0 0.0
        %2666 = vmatprep.subr.mxu0 0.0
        %2667 = vmatpush1.msra.mxu0 0.0
        %2668 = vmatprep.subr.mxu0 0.0
        %2669 = vmatpush1.msra.mxu0 0.0
        %2670 = vmatprep.subr.mxu0 0.0
        %2671 = vmatpush1.msra.mxu0 0.0
        %2672 = vmatprep.subr.mxu0 0.0
        %2673 = vmatpush1.msra.mxu0 0.0
        %2674 = vmatprep.subr.mxu0 0.0
        %2675 = vmatpush1.msra.mxu0 0.0
        %2676 = vmatprep.subr.mxu0 0.0
        %2677 = vmatpush1.msra.mxu0 0.0
        %2678 = vmatprep.subr.mxu0 0.0
        %2679 = vmatpush1.msra.mxu0 0.0
        %2680 = vmatprep.subr.mxu0 0.0
        %2681 = vmatpush1.msra.mxu0 0.0
        %2682 = vmatprep.subr.mxu0 0.0
        %2683 = vmatpush1.msra.mxu0 0.0
        %2684 = vmatprep.subr.mxu0 0.0
        %2685 = vmatpush1.msra.mxu0 0.0
        %2686 = vmatprep.subr.mxu0 0.0
        %2687 = vmatpush1.msra.mxu0 %v1924
        %2688 = vmatprep.subr.mxu0 0.0
        %2689 = vmatpush2.msra.mxu0 0.0
        %2690 = vmatprep.subr.mxu0 0.0
        %2691 = vmatpush2.msra.mxu0 0.0
        %2692 = vmatprep.subr.mxu0 0.0
        %2693 = vmatpush2.msra.mxu0 0.0
        %2694 = vmatprep.subr.mxu0 0.0
        %2695 = vmatpush2.msra.mxu0 0.0
        %2696 = vmatprep.subr.mxu0 0.0
        %2697 = vmatpush2.msra.mxu0 0.0
        %2698 = vmatprep.subr.mxu0 0.0
        %2699 = vmatpush2.msra.mxu0 0.0
        %2700 = vmatprep.subr.mxu0 0.0
        %2701 = vmatpush2.msra.mxu0 0.0
        %2702 = vmatprep.subr.mxu0 0.0
        %2703 = vmatpush2.msra.mxu0 0.0
        %2704 = vmatprep.subr.mxu0 0.0
        %2705 = vmatpush2.msra.mxu0 0.0
        %2706 = vmatprep.subr.mxu0 0.0
        %2707 = vmatpush2.msra.mxu0 0.0
        %2708 = vmatprep.subr.mxu0 0.0
        %2709 = vmatpush2.msra.mxu0 0.0
        %2710 = vmatprep.subr.mxu0 0.0
        %2711 = vmatpush2.msra.mxu0 0.0
        %2712 = vmatprep.subr.mxu0 0.0
        %2713 = vmatpush2.msra.mxu0 0.0
        %2714 = vmatprep.subr.mxu0 0.0
        %2715 = vmatpush2.msra.mxu0 0.0
        %2716 = vmatprep.subr.mxu0 0.0
        %2717 = vmatpush2.msra.mxu0 0.0
        %2718 = vmatprep.subr.mxu0 0.0
        %2719 = vmatpush2.msra.mxu0 0.0
        %2720 = vmatprep.mubr.f32.mxu0 0.0
        %2721 = vmatmul.mubr.f32.gmra.mxu0 %v2654
        %v2722 = vpop.f32.mrf.mxu0
        %v2723 = vadd.f32 0.0, %v2722
        %v2724 = vpop.f32.mrf.mxu0
        %2725 = vdwg.mxu0
        %v2726 = vadd.f32 %v2483, %v2723
        %2727 = vrot.lane.b32.xlu0 %v2004, 104
        %v2728 = vpop.permute.xlu0 %2727
        %2729 = vrot.lane.b32.xlu0 %v2004, 72
        %v2730 = vpop.permute.xlu0 %2729
        %v2731 = vsel %vm696, %v2728, 0
        %v2733 = vsel %vm696, %v2730, 0
        %2735 = vmatprep.subr.mxu0 0.0
        %2736 = vmatpush1.xpose.msra.mxu0 0.0
        %2737 = vmatprep.subr.mxu0 0.0
        %2738 = vmatpush1.xpose.msra.mxu0 0.0
        %2739 = vmatprep.subr.mxu0 0.0
        %2740 = vmatpush1.xpose.msra.mxu0 0.0
        %2741 = vmatprep.subr.mxu0 0.0
        %2742 = vmatpush1.xpose.msra.mxu0 0.0
        %2743 = vmatprep.subr.mxu0 0.0
        %2744 = vmatpush1.xpose.msra.mxu0 0.0
        %2745 = vmatprep.subr.mxu0 0.0
        %2746 = vmatpush1.xpose.msra.mxu0 0.0
        %2747 = vmatprep.subr.mxu0 0.0
        %2748 = vmatpush1.xpose.msra.mxu0 0.0
        %2749 = vmatprep.subr.mxu0 0.0
        %2750 = vmatpush1.xpose.msra.mxu0 0.0
        %2751 = vmatprep.subr.mxu0 0.0
        %2752 = vmatpush1.xpose.msra.mxu0 0.0
        %2753 = vmatprep.subr.mxu0 0.0
        %2754 = vmatpush1.xpose.msra.mxu0 0.0
        %2755 = vmatprep.subr.mxu0 0.0
        %2756 = vmatpush1.xpose.msra.mxu0 0.0
        %2757 = vmatprep.subr.mxu0 0.0
        %2758 = vmatpush1.xpose.msra.mxu0 0.0
        %2759 = vmatprep.subr.mxu0 0.0
        %2760 = vmatpush1.xpose.msra.mxu0 0.0
        %2761 = vmatprep.subr.mxu0 0.0
        %2762 = vmatpush1.xpose.msra.mxu0 0.0
        %2763 = vmatprep.subr.mxu0 0.0
        %2764 = vmatpush1.xpose.msra.mxu0 0.0
        %2765 = vmatprep.subr.mxu0 0.0
        %2766 = vmatpush1.xpose.msra.mxu0 %v2733
        %2767 = vmatprep.subr.mxu0 0.0
        %2768 = vmatpush2.xpose.msra.mxu0 0.0
        %2769 = vmatprep.subr.mxu0 0.0
        %2770 = vmatpush2.xpose.msra.mxu0 0.0
        %2771 = vmatprep.subr.mxu0 0.0
        %2772 = vmatpush2.xpose.msra.mxu0 0.0
        %2773 = vmatprep.subr.mxu0 0.0
        %2774 = vmatpush2.xpose.msra.mxu0 0.0
        %2775 = vmatprep.subr.mxu0 0.0
        %2776 = vmatpush2.xpose.msra.mxu0 0.0
        %2777 = vmatprep.subr.mxu0 0.0
        %2778 = vmatpush2.xpose.msra.mxu0 0.0
        %2779 = vmatprep.subr.mxu0 0.0
        %2780 = vmatpush2.xpose.msra.mxu0 0.0
        %2781 = vmatprep.subr.mxu0 0.0
        %2782 = vmatpush2.xpose.msra.mxu0 0.0
        %2783 = vmatprep.subr.mxu0 0.0
        %2784 = vmatpush2.xpose.msra.mxu0 0.0
        %2785 = vmatprep.subr.mxu0 0.0
        %2786 = vmatpush2.xpose.msra.mxu0 0.0
        %2787 = vmatprep.subr.mxu0 0.0
        %2788 = vmatpush2.xpose.msra.mxu0 0.0
        %2789 = vmatprep.subr.mxu0 0.0
        %2790 = vmatpush2.xpose.msra.mxu0 0.0
        %2791 = vmatprep.subr.mxu0 0.0
        %2792 = vmatpush2.xpose.msra.mxu0 0.0
        %2793 = vmatprep.subr.mxu0 0.0
        %2794 = vmatpush2.xpose.msra.mxu0 0.0
        %2795 = vmatprep.subr.mxu0 0.0
        %2796 = vmatpush2.xpose.msra.mxu0 0.0
        %2797 = vmatprep.subr.mxu0 0.0
        %2798 = vmatpush2.xpose.msra.mxu0 0.0
        %2799 = vmatprep.mubr.f32.mxu0 0.0
        %2800 = vmatmul.mubr.f32.gmra.mxu0 %v2731
        %v2801 = vpop.f32.mrf.mxu0
        %v2802 = vadd.f32 0.0, %v2801
        %v2803 = vpop.f32.mrf.mxu0
        %2804 = vdwg.mxu0
        %v2805 = vmul.f32 %v2802, 0.35355338
        %v2806 = vsel %vm772, -1e+09, %v2805
        %v2807 = vsel %vm696, %v2806, -inf
        %2808 = vmax.xlane.f32.xlu0 %v2807
        %v2809 = vpop.xlane.xlu0 %2808
        %v2810 = vsub.f32 %v2806, %v2809
        %v2811 = vmul.f32 %v2810, 1.442695
        %v2812 = vpow.pop %v2811
        %v2813 = vsel %vm696, %v2812, 0.0
        %2814 = vadd.xlane.f32.xlu0 %v2813
        %v2815 = vpop.xlane.xlu0 %2814
        %v2816 = vrcp.pop %v2815
        %v2817 = vmul.f32 %v2812, %v2816
        %2818 = vrot.lane.b32.xlu0 %v2004, 40
        %v2819 = vpop.permute.xlu0 %2818
        %v2822 = vsel %vm696, %v2817, 0
        %2824 = vmatprep.subr.mxu0 0.0
        %2825 = vmatpush1.msra.mxu0 0.0
        %2826 = vmatprep.subr.mxu0 0.0
        %2827 = vmatpush1.msra.mxu0 0.0
        %2828 = vmatprep.subr.mxu0 0.0
        %2829 = vmatpush1.msra.mxu0 0.0
        %2830 = vmatprep.subr.mxu0 0.0
        %2831 = vmatpush1.msra.mxu0 0.0
        %2832 = vmatprep.subr.mxu0 0.0
        %2833 = vmatpush1.msra.mxu0 0.0
        %2834 = vmatprep.subr.mxu0 0.0
        %2835 = vmatpush1.msra.mxu0 0.0
        %2836 = vmatprep.subr.mxu0 0.0
        %2837 = vmatpush1.msra.mxu0 0.0
        %2838 = vmatprep.subr.mxu0 0.0
        %2839 = vmatpush1.msra.mxu0 0.0
        %2840 = vmatprep.subr.mxu0 0.0
        %2841 = vmatpush1.msra.mxu0 0.0
        %2842 = vmatprep.subr.mxu0 0.0
        %2843 = vmatpush1.msra.mxu0 0.0
        %2844 = vmatprep.subr.mxu0 0.0
        %2845 = vmatpush1.msra.mxu0 0.0
        %2846 = vmatprep.subr.mxu0 0.0
        %2847 = vmatpush1.msra.mxu0 0.0
        %2848 = vmatprep.subr.mxu0 0.0
        %2849 = vmatpush1.msra.mxu0 0.0
        %2850 = vmatprep.subr.mxu0 0.0
        %2851 = vmatpush1.msra.mxu0 0.0
        %2852 = vmatprep.subr.mxu0 0.0
        %2853 = vmatpush1.msra.mxu0 0.0
        %2854 = vmatprep.subr.mxu0 0.0
        %2855 = vmatpush1.msra.mxu0 %v2819
        %2856 = vmatprep.subr.mxu0 0.0
        %2857 = vmatpush2.msra.mxu0 0.0
        %2858 = vmatprep.subr.mxu0 0.0
        %2859 = vmatpush2.msra.mxu0 0.0
        %2860 = vmatprep.subr.mxu0 0.0
        %2861 = vmatpush2.msra.mxu0 0.0
        %2862 = vmatprep.subr.mxu0 0.0
        %2863 = vmatpush2.msra.mxu0 0.0
        %2864 = vmatprep.subr.mxu0 0.0
        %2865 = vmatpush2.msra.mxu0 0.0
        %2866 = vmatprep.subr.mxu0 0.0
        %2867 = vmatpush2.msra.mxu0 0.0
        %2868 = vmatprep.subr.mxu0 0.0
        %2869 = vmatpush2.msra.mxu0 0.0
        %2870 = vmatprep.subr.mxu0 0.0
        %2871 = vmatpush2.msra.mxu0 0.0
        %2872 = vmatprep.subr.mxu0 0.0
        %2873 = vmatpush2.msra.mxu0 0.0
        %2874 = vmatprep.subr.mxu0 0.0
        %2875 = vmatpush2.msra.mxu0 0.0
        %2876 = vmatprep.subr.mxu0 0.0
        %2877 = vmatpush2.msra.mxu0 0.0
        %2878 = vmatprep.subr.mxu0 0.0
        %2879 = vmatpush2.msra.mxu0 0.0
        %2880 = vmatprep.subr.mxu0 0.0
        %2881 = vmatpush2.msra.mxu0 0.0
        %2882 = vmatprep.subr.mxu0 0.0
        %2883 = vmatpush2.msra.mxu0 0.0
        %2884 = vmatprep.subr.mxu0 0.0
        %2885 = vmatpush2.msra.mxu0 0.0
        %2886 = vmatprep.subr.mxu0 0.0
        %2887 = vmatpush2.msra.mxu0 0.0
        %2888 = vmatprep.mubr.f32.mxu0 0.0
        %2889 = vmatmul.mubr.f32.gmra.mxu0 %v2822
        %v2890 = vpop.f32.mrf.mxu0
        %v2891 = vadd.f32 0.0, %v2890
        %v2892 = vpop.f32.mrf.mxu0
        %2893 = vdwg.mxu0
        %v2895 = vsel %vm696, %v2891, 0
        %2897 = vmatprep.subr.mxu0 0.0
        %2898 = vmatpush1.msra.mxu0 0.0
        %2899 = vmatprep.subr.mxu0 0.0
        %2900 = vmatpush1.msra.mxu0 0.0
        %2901 = vmatprep.subr.mxu0 0.0
        %2902 = vmatpush1.msra.mxu0 0.0
        %2903 = vmatprep.subr.mxu0 0.0
        %2904 = vmatpush1.msra.mxu0 0.0
        %2905 = vmatprep.subr.mxu0 0.0
        %2906 = vmatpush1.msra.mxu0 0.0
        %2907 = vmatprep.subr.mxu0 0.0
        %2908 = vmatpush1.msra.mxu0 0.0
        %2909 = vmatprep.subr.mxu0 0.0
        %2910 = vmatpush1.msra.mxu0 0.0
        %2911 = vmatprep.subr.mxu0 0.0
        %2912 = vmatpush1.msra.mxu0 0.0
        %2913 = vmatprep.subr.mxu0 0.0
        %2914 = vmatpush1.msra.mxu0 0.0
        %2915 = vmatprep.subr.mxu0 0.0
        %2916 = vmatpush1.msra.mxu0 0.0
        %2917 = vmatprep.subr.mxu0 0.0
        %2918 = vmatpush1.msra.mxu0 0.0
        %2919 = vmatprep.subr.mxu0 0.0
        %2920 = vmatpush1.msra.mxu0 0.0
        %2921 = vmatprep.subr.mxu0 0.0
        %2922 = vmatpush1.msra.mxu0 0.0
        %2923 = vmatprep.subr.mxu0 0.0
        %2924 = vmatpush1.msra.mxu0 0.0
        %2925 = vmatprep.subr.mxu0 0.0
        %2926 = vmatpush1.msra.mxu0 0.0
        %2927 = vmatprep.subr.mxu0 0.0
        %2928 = vmatpush1.msra.mxu0 %v1925
        %2929 = vmatprep.subr.mxu0 0.0
        %2930 = vmatpush2.msra.mxu0 0.0
        %2931 = vmatprep.subr.mxu0 0.0
        %2932 = vmatpush2.msra.mxu0 0.0
        %2933 = vmatprep.subr.mxu0 0.0
        %2934 = vmatpush2.msra.mxu0 0.0
        %2935 = vmatprep.subr.mxu0 0.0
        %2936 = vmatpush2.msra.mxu0 0.0
        %2937 = vmatprep.subr.mxu0 0.0
        %2938 = vmatpush2.msra.mxu0 0.0
        %2939 = vmatprep.subr.mxu0 0.0
        %2940 = vmatpush2.msra.mxu0 0.0
        %2941 = vmatprep.subr.mxu0 0.0
        %2942 = vmatpush2.msra.mxu0 0.0
        %2943 = vmatprep.subr.mxu0 0.0
        %2944 = vmatpush2.msra.mxu0 0.0
        %2945 = vmatprep.subr.mxu0 0.0
        %2946 = vmatpush2.msra.mxu0 0.0
        %2947 = vmatprep.subr.mxu0 0.0
        %2948 = vmatpush2.msra.mxu0 0.0
        %2949 = vmatprep.subr.mxu0 0.0
        %2950 = vmatpush2.msra.mxu0 0.0
        %2951 = vmatprep.subr.mxu0 0.0
        %2952 = vmatpush2.msra.mxu0 0.0
        %2953 = vmatprep.subr.mxu0 0.0
        %2954 = vmatpush2.msra.mxu0 0.0
        %2955 = vmatprep.subr.mxu0 0.0
        %2956 = vmatpush2.msra.mxu0 0.0
        %2957 = vmatprep.subr.mxu0 0.0
        %2958 = vmatpush2.msra.mxu0 0.0
        %2959 = vmatprep.subr.mxu0 0.0
        %2960 = vmatpush2.msra.mxu0 0.0
        %2961 = vmatprep.mubr.f32.mxu0 0.0
        %2962 = vmatmul.mubr.f32.gmra.mxu0 %v2895
        %v2963 = vpop.f32.mrf.mxu0
        %v2964 = vadd.f32 0.0, %v2963
        %v2965 = vpop.f32.mrf.mxu0
        %2966 = vdwg.mxu0
        %v2967 = vadd.f32 %v2726, %v2964
        %v2969 = vlaneseq
        %v2970 = vshrl.u32 %v2969, 7
        %v2971 = vsub.s32 0, %v2970
        %v2972 = vrot.slane %v1927, %v2971
        %v2974 = vadd.f32 %v2967, %v2972
        %v2975 = vadd.f32 %v1875, %v2974
        %s2976 = scalar_lea.vmem %s12, 1
        %v2977 = vld [vmem:[%s2976] sm:$0x1]
        %s2978 = scalar_lea.vmem %s13, 1
        %v2979 = vld [vmem:[%s2978] sm:$0x1]
        %v2980 = vsel %vm568, %v2975, 0.0
        %2981 = vadd.xlane.f32.xlu0 %v2980
        %v2982 = vpop.xlane.xlu0 %2981
        %v2983 = vmul.f32 %v2982, %v572
        %v2984 = vsub.f32 %v2975, %v2983
        %v2985 = vmul.f32 %v2984, %v2984
        %v2986 = vsel %vm568, %v2985, 0.0
        %2987 = vadd.xlane.f32.xlu0 %v2986
        %v2988 = vpop.xlane.xlu0 %2987
        %v2989 = vmul.f32 %v2988, 0.032258064
        %v2990 = vrsqrt.pop %v2989
        %v2991 = vmul.f32 %v2989, %v2990
        %vm2992 = vcmp.eq.f32.partialorder %v2989, inf
        %v2993 = vsel %vm2992, %v2989, %v2991
        %vm2994 = vcmp.eq.f32.partialorder %v2989, 0.0
        %v2995 = vand.u32 %v2989, 2147483648
        %v2996 = vsel %vm2994, %v2995, %v2993
        %v2998 = vlaneseq
        %v2999 = vshrl.u32 %v2998, 7
        %v3000 = vsub.s32 0, %v2999
        %v3001 = vrot.slane %v2977, %v3000
        %v3003 = vmul.f32 %v3001, %v2984
        %v3004 = vadd.f32 %v2996, 1e-06
        %v3005 = vrcp.pop %v3004
        %v3006 = vmul.f32 %v3003, %v3005
        %v3008 = vlaneseq
        %v3009 = vshrl.u32 %v3008, 7
        %v3010 = vsub.s32 0, %v3009
        %v3011 = vrot.slane %v2979, %v3010
        %v3013 = vadd.f32 %v3006, %v3011
        %s3014 = scalar_lea.vmem %s6, 32
        %v3015 = vld [vmem:[%s3014] sm:$0xff]
        %v3016 = vld [vmem:[%s3014 + $0x8] sm:$0xff]
        %v3017 = vld [vmem:[%s3014 + $0x10] sm:$0xff]
        %v3018 = vld [vmem:[%s3014 + $0x18] sm:$0xff]
        %s3019 = scalar_lea.vmem [#allocation2], 1
        %v3020 = vld [vmem:[%s3019] sm:$0x1]
        %v3022 = vlaneseq
        %v3023 = vshrl.u32 %v3022, 7
        %v3024 = vsub.s32 0, %v3023
        %v3025 = vrot.slane %v3020, %v3024
        %v3028 = vsel %vm568, %v3013, 0
        %3030 = vmatprep.subr.mxu0 0.0
        %3031 = vmatpush1.msra.mxu0 0.0
        %3032 = vmatprep.subr.mxu0 0.0
        %3033 = vmatpush1.msra.mxu0 0.0
        %3034 = vmatprep.subr.mxu0 0.0
        %3035 = vmatpush1.msra.mxu0 0.0
        %3036 = vmatprep.subr.mxu0 0.0
        %3037 = vmatpush1.msra.mxu0 0.0
        %3038 = vmatprep.subr.mxu0 0.0
        %3039 = vmatpush1.msra.mxu0 0.0
        %3040 = vmatprep.subr.mxu0 0.0
        %3041 = vmatpush1.msra.mxu0 0.0
        %3042 = vmatprep.subr.mxu0 0.0
        %3043 = vmatpush1.msra.mxu0 0.0
        %3044 = vmatprep.subr.mxu0 0.0
        %3045 = vmatpush1.msra.mxu0 0.0
        %3046 = vmatprep.subr.mxu0 0.0
        %3047 = vmatpush1.msra.mxu0 0.0
        %3048 = vmatprep.subr.mxu0 0.0
        %3049 = vmatpush1.msra.mxu0 0.0
        %3050 = vmatprep.subr.mxu0 0.0
        %3051 = vmatpush1.msra.mxu0 0.0
        %3052 = vmatprep.subr.mxu0 0.0
        %3053 = vmatpush1.msra.mxu0 0.0
        %3054 = vmatprep.subr.mxu0 0.0
        %3055 = vmatpush1.msra.mxu0 %v3018
        %3056 = vmatprep.subr.mxu0 0.0
        %3057 = vmatpush1.msra.mxu0 %v3017
        %3058 = vmatprep.subr.mxu0 0.0
        %3059 = vmatpush1.msra.mxu0 %v3016
        %3060 = vmatprep.subr.mxu0 0.0
        %3061 = vmatpush1.msra.mxu0 %v3015
        %3062 = vmatprep.subr.mxu0 0.0
        %3063 = vmatpush2.msra.mxu0 0.0
        %3064 = vmatprep.subr.mxu0 0.0
        %3065 = vmatpush2.msra.mxu0 0.0
        %3066 = vmatprep.subr.mxu0 0.0
        %3067 = vmatpush2.msra.mxu0 0.0
        %3068 = vmatprep.subr.mxu0 0.0
        %3069 = vmatpush2.msra.mxu0 0.0
        %3070 = vmatprep.subr.mxu0 0.0
        %3071 = vmatpush2.msra.mxu0 0.0
        %3072 = vmatprep.subr.mxu0 0.0
        %3073 = vmatpush2.msra.mxu0 0.0
        %3074 = vmatprep.subr.mxu0 0.0
        %3075 = vmatpush2.msra.mxu0 0.0
        %3076 = vmatprep.subr.mxu0 0.0
        %3077 = vmatpush2.msra.mxu0 0.0
        %3078 = vmatprep.subr.mxu0 0.0
        %3079 = vmatpush2.msra.mxu0 0.0
        %3080 = vmatprep.subr.mxu0 0.0
        %3081 = vmatpush2.msra.mxu0 0.0
        %3082 = vmatprep.subr.mxu0 0.0
        %3083 = vmatpush2.msra.mxu0 0.0
        %3084 = vmatprep.subr.mxu0 0.0
        %3085 = vmatpush2.msra.mxu0 0.0
        %3086 = vmatprep.subr.mxu0 0.0
        %3087 = vmatpush2.msra.mxu0 0.0
        %3088 = vmatprep.subr.mxu0 0.0
        %3089 = vmatpush2.msra.mxu0 0.0
        %3090 = vmatprep.subr.mxu0 0.0
        %3091 = vmatpush2.msra.mxu0 0.0
        %3092 = vmatprep.subr.mxu0 0.0
        %3093 = vmatpush2.msra.mxu0 0.0
        %3094 = vmatprep.mubr.f32.mxu0 0.0
        %3095 = vmatmul.mubr.f32.gmra.mxu0 %v3028
        %v3096 = vpop.f32.mrf.mxu0
        %v3097 = vadd.f32 %v3025, %v3096
        %v3098 = vpop.f32.mrf.mxu0
        %3099 = vdwg.mxu0
        %v3100 = vmax.f32 %v3097, 0.0
        %s3101 = scalar_lea.vmem %s8, 64
        %v3102 = vld [vmem:[%s3101] sm:$0xff]
        %v3103 = vld [vmem:[%s3101 + $0x8] sm:$0xff]
        %v3104 = vld [vmem:[%s3101 + $0x10] sm:$0xff]
        %v3105 = vld [vmem:[%s3101 + $0x18] sm:$0xff]
        %v3106 = vld [vmem:[%s3101 + $0x20] sm:$0xff]
        %v3107 = vld [vmem:[%s3101 + $0x28] sm:$0xff]
        %v3108 = vld [vmem:[%s3101 + $0x30] sm:$0xff]
        %v3109 = vld [vmem:[%s3101 + $0x38] sm:$0xff]
        %v3111 = vsel %vm1793, %v3100, 0
        %3113 = vmatprep.subr.mxu0 0.0
        %3114 = vmatpush1.msra.mxu0 0.0
        %3115 = vmatprep.subr.mxu0 0.0
        %3116 = vmatpush1.msra.mxu0 0.0
        %3117 = vmatprep.subr.mxu0 0.0
        %3118 = vmatpush1.msra.mxu0 0.0
        %3119 = vmatprep.subr.mxu0 0.0
        %3120 = vmatpush1.msra.mxu0 0.0
        %3121 = vmatprep.subr.mxu0 0.0
        %3122 = vmatpush1.msra.mxu0 0.0
        %3123 = vmatprep.subr.mxu0 0.0
        %3124 = vmatpush1.msra.mxu0 0.0
        %3125 = vmatprep.subr.mxu0 0.0
        %3126 = vmatpush1.msra.mxu0 0.0
        %3127 = vmatprep.subr.mxu0 0.0
        %3128 = vmatpush1.msra.mxu0 0.0
        %3129 = vmatprep.subr.mxu0 0.0
        %3130 = vmatpush1.msra.mxu0 %v3109
        %3131 = vmatprep.subr.mxu0 0.0
        %3132 = vmatpush1.msra.mxu0 %v3108
        %3133 = vmatprep.subr.mxu0 0.0
        %3134 = vmatpush1.msra.mxu0 %v3107
        %3135 = vmatprep.subr.mxu0 0.0
        %3136 = vmatpush1.msra.mxu0 %v3106
        %3137 = vmatprep.subr.mxu0 0.0
        %3138 = vmatpush1.msra.mxu0 %v3105
        %3139 = vmatprep.subr.mxu0 0.0
        %3140 = vmatpush1.msra.mxu0 %v3104
        %3141 = vmatprep.subr.mxu0 0.0
        %3142 = vmatpush1.msra.mxu0 %v3103
        %3143 = vmatprep.subr.mxu0 0.0
        %3144 = vmatpush1.msra.mxu0 %v3102
        %3145 = vmatprep.subr.mxu0 0.0
        %3146 = vmatpush2.msra.mxu0 0.0
        %3147 = vmatprep.subr.mxu0 0.0
        %3148 = vmatpush2.msra.mxu0 0.0
        %3149 = vmatprep.subr.mxu0 0.0
        %3150 = vmatpush2.msra.mxu0 0.0
        %3151 = vmatprep.subr.mxu0 0.0
        %3152 = vmatpush2.msra.mxu0 0.0
        %3153 = vmatprep.subr.mxu0 0.0
        %3154 = vmatpush2.msra.mxu0 0.0
        %3155 = vmatprep.subr.mxu0 0.0
        %3156 = vmatpush2.msra.mxu0 0.0
        %3157 = vmatprep.subr.mxu0 0.0
        %3158 = vmatpush2.msra.mxu0 0.0
        %3159 = vmatprep.subr.mxu0 0.0
        %3160 = vmatpush2.msra.mxu0 0.0
        %3161 = vmatprep.subr.mxu0 0.0
        %3162 = vmatpush2.msra.mxu0 0.0
        %3163 = vmatprep.subr.mxu0 0.0
        %3164 = vmatpush2.msra.mxu0 0.0
        %3165 = vmatprep.subr.mxu0 0.0
        %3166 = vmatpush2.msra.mxu0 0.0
        %3167 = vmatprep.subr.mxu0 0.0
        %3168 = vmatpush2.msra.mxu0 0.0
        %3169 = vmatprep.subr.mxu0 0.0
        %3170 = vmatpush2.msra.mxu0 0.0
        %3171 = vmatprep.subr.mxu0 0.0
        %3172 = vmatpush2.msra.mxu0 0.0
        %3173 = vmatprep.subr.mxu0 0.0
        %3174 = vmatpush2.msra.mxu0 0.0
        %3175 = vmatprep.subr.mxu0 0.0
        %3176 = vmatpush2.msra.mxu0 0.0
        %3177 = vmatprep.mubr.f32.mxu0 0.0
        %3178 = vmatmul.mubr.f32.gmra.mxu0 %v3111
        %v3179 = vpop.f32.mrf.mxu0
        %v3180 = vadd.f32 0.0, %v3179
        %v3181 = vpop.f32.mrf.mxu0
        %3182 = vdwg.mxu0
        %v3183 = vadd.f32 %v2975, %v3180
        %s3184 = scalar_lea.vmem [#allocation5], 1
        %v3185 = vld [vmem:[%s3184] sm:$0x1]
        %v3187 = vlaneseq
        %v3188 = vshrl.u32 %v3187, 7
        %v3189 = vsub.s32 0, %v3188
        %v3190 = vrot.slane %v3185, %v3189
        %v3192 = vadd.f32 %v3183, %v3190
        %v3193 = vld [vmem:[%s14] sm:$0x1]
        %v3194 = vld [vmem:[%s15] sm:$0x1]
        %v3195 = vsel %vm568, %v3192, 0.0
        %3196 = vadd.xlane.f32.xlu0 %v3195
        %v3197 = vpop.xlane.xlu0 %3196
        %v3198 = vmul.f32 %v3197, %v572
        %v3199 = vsub.f32 %v3192, %v3198
        %v3200 = vmul.f32 %v3199, %v3199
        %v3201 = vsel %vm568, %v3200, 0.0
        %3202 = vadd.xlane.f32.xlu0 %v3201
        %v3203 = vpop.xlane.xlu0 %3202
        %v3204 = vmul.f32 %v3203, 0.032258064
        %v3205 = vrsqrt.pop %v3204
        %v3206 = vmul.f32 %v3204, %v3205
        %vm3207 = vcmp.eq.f32.partialorder %v3204, inf
        %v3208 = vsel %vm3207, %v3204, %v3206
        %vm3209 = vcmp.eq.f32.partialorder %v3204, 0.0
        %v3210 = vand.u32 %v3204, 2147483648
        %v3211 = vsel %vm3209, %v3210, %v3208
        %v3213 = vlaneseq
        %v3214 = vshrl.u32 %v3213, 7
        %v3215 = vsub.s32 0, %v3214
        %v3216 = vrot.slane %v3193, %v3215
        %v3218 = vmul.f32 %v3216, %v3199
        %v3219 = vadd.f32 %v3211, 1e-06
        %v3220 = vrcp.pop %v3219
        %v3221 = vmul.f32 %v3218, %v3220
        %v3223 = vlaneseq
        %v3224 = vshrl.u32 %v3223, 7
        %v3225 = vsub.s32 0, %v3224
        %v3226 = vrot.slane %v3194, %v3225
        %v3228 = vadd.f32 %v3221, %v3226
        %3229 = vst.msk [vmem:[%s555] sm:$0xff] %vm568, %v3228
        %s3230 = sand.u32 %s386, 1
        %s3231 = scalar_lea.sflag [#allocation4], %s3230
        %s3232 = sand.u32 %s386, 1
        %s3233 = smul.addr %s3232, 8
        %s3234 = scalar_lea.vmem [#allocation7], %s3233
        // Predicated region
        $region93: #{encoder_forward.1} parent=83 // pred_check
          %p3235 = pneg %p396
        $region94: #{encoder_forward.1} parent=83 // pred_check_branch
          %3237 = sbr.rel (%p3235) target = $region96
        $region95: #{encoder_forward.1} parent=83 // pred_region
          %s3239 = ssub.s32 128, 128
          %3240 = vsyncadd %s3231, %s3239
          %s3241 = smul.addr %s32, 128
          %s3242 = scalar_lea.hbm %s16, %s3241
          %s3244 = sshll.u32 %s3234, 4
          %s3245 = int_to_ptr.vmem [resolvable:$true] %s3244
          %3247 = dma.vmem_to_hbm [thread:$0]  %s3245, 128, %s3242, %s3231
        $region96: #{encoder_forward.1} parent=83 // pred_fallthru
          _
      $region84: #{encoder_forward.1} parent=5 // pred_fallthru
        _
      %p3248 = scmp.le.s32.totalorder 2, %s27
      // Predicated region
      $region97: #{encoder_forward.1} parent=5 // pred_check
        %p3249 = pneg %p3248
      $region98: #{encoder_forward.1} parent=5 // pred_check_branch
        %3251 = sbr.rel (%p3249) target = $region100
      $region99: #{encoder_forward.1} parent=5 // pred_region
        %s3252 = ssub.s32 %s27, 2
        // Predicated region
        $region101: #{encoder_forward.1} parent=99 // pred_check
          %p3253 = pneg %p402
        $region102: #{encoder_forward.1} parent=99 // pred_check_branch
          %3255 = sbr.rel (%p3253) target = $region104
        $region103: #{encoder_forward.1} parent=99 // pred_region
          %s3256 = sand.u32 %s387, 1
          %s3257 = scalar_lea.sflag [#allocation4], %s3256
          %s3258 = sand.u32 %s387, 1
          %s3259 = smul.addr %s3258, 8
          %s3260 = scalar_lea.vmem [#allocation7], %s3259
          %3261 = dma.done %s3257, 128
        $region104: #{encoder_forward.1} parent=99 // pred_fallthru
          _
      $region100: #{encoder_forward.1} parent=5 // pred_fallthru
        _
    $region6: #{encoder_forward.1} parent=1 // loop_footer
      %s31 = sadd.s32 1, %s27
    $region7: #{encoder_forward.1} parent=1 // loop_footer_branch
      %26 = sbr.rel target = $region3
    $region8: #{encoder_forward.1} parent=1 // loop_exit
      _
    %3262 = vsyncpa [#allocation3], 1
    %s3263 = scalar_lea.sflag [#allocation3], 1
    %3264 = vsyncpa %s3263, 1
    %3265 = vsyncpa [#allocation6], 1
    %3266 = vsyncpa [#allocation4], 1
    %s3267 = scalar_lea.sflag [#allocation4], 1
    %3268 = vsyncpa %s3267, 1

</llo_original>
